<compile_context>
chip_gen: v7x
topology: tpu7x:2x2x1
jax: 0.10.0
libtpu: 0.0.40
codegen_flags: <defaults>
</compile_context>

<pallas_src>
import functools

import jax
import jax.numpy as jnp
from jax import lax
from jax.experimental import pallas as pl
from jax.experimental.pallas import tpu as pltpu

BN_EPS = 1e-5
LANE = 128


def _round_up(x, m):
    return (x + m - 1) // m * m


# -------------------- generation-aware tuning knobs ------------------------ #

_HW_CACHE = {}


def _vmem_limit():
    """VMEM budget: ~100 MiB on 128-MiB parts (v5e/v6e), 48 MiB on v7x."""
    if "vmem" not in _HW_CACHE:
        limit = 48 * 1024 * 1024                      # safe under v7x 64 MiB/TC
        try:
            cap = getattr(pltpu.get_tpu_info(), "vmem_capacity_bytes", None)
            if cap is not None and cap >= 96 * 1024 * 1024:
                limit = 100 * 1024 * 1024             # v5e / v6e: 128 MiB VMEM
        except Exception:
            pass
        _HW_CACHE["vmem"] = limit
    return _HW_CACHE["vmem"]


def _default_tm():
    # Bigger row tiles amortize the ~0.35us/grid-step overhead on 128-MiB parts;
    # keep 256 on v7x (64 MiB VMEM, and >=2 parallel steps for its two TCs).
    return 512 if _vmem_limit() > 64 * 1024 * 1024 else 256


def _pick_row_tile(ho, wo, target_rows=256):
    """Largest divisor th of ho with th*wo ~ target output rows per tile and
    (th*wo) % 8 == 0 (so the output block tiles cleanly); falls back to ho."""
    limit = max(1, target_rows // max(wo, 1))
    if limit >= ho:
        return ho
    best = None
    for th in range(1, limit + 1):
        if ho % th == 0 and (th * wo) % 8 == 0:
            best = th
    return best if best is not None else ho


# ----------------------------- Pallas kernels ------------------------------ #

def _mm_bn_kernel(x_ref, w_ref, s_ref, b_ref, o_ref, *, relu):
    """out = maybe_relu((x @ w) * scale + bias)   (1x1 conv + folded BN)."""
    acc = jnp.dot(x_ref[...], w_ref[...], preferred_element_type=jnp.float32)
    y = acc * s_ref[...] + b_ref[...]
    if relu:
        y = jnp.maximum(y, 0.0)
    o_ref[...] = y.astype(o_ref.dtype)


def _mm_bn_res_kernel(x_ref, w_ref, s_ref, b_ref, r_ref, o_ref, *, relu):
    """out = relu((x @ w) * scale + bias + residual)  (conv3 + identity shortcut)."""
    acc = jnp.dot(x_ref[...], w_ref[...], preferred_element_type=jnp.float32)
    y = acc * s_ref[...] + b_ref[...] + r_ref[...].astype(jnp.float32)
    if relu:
        y = jnp.maximum(y, 0.0)
    o_ref[...] = y.astype(o_ref.dtype)


def _mm_bn_shortcut_kernel(x_ref, w_ref, s_ref, b_ref,
                           xs_ref, ws_ref, ss_ref, bs_ref, o_ref, *, relu):
    """out = relu((x@w)*s + b + (xs@ws)*ss + bs)  (conv3 + 1x1-conv shortcut)."""
    main = jnp.dot(x_ref[...], w_ref[...], preferred_element_type=jnp.float32)
    main = main * s_ref[...] + b_ref[...]
    sc = jnp.dot(xs_ref[...], ws_ref[...], preferred_element_type=jnp.float32)
    sc = sc * ss_ref[...] + bs_ref[...]
    y = main + sc
    if relu:
        y = jnp.maximum(y, 0.0)
    o_ref[...] = y.astype(o_ref.dtype)


def _conv3x3_bn_relu_kernel(x_ref, w_ref, s_ref, b_ref, o_ref, xpad_ref,
                            *, stride, th, wo, h, w):
    """3x3 conv (pad=1) + folded BN + ReLU for one row tile of one image.

    x_ref   : (1, h, w, cin)  unpadded image (bf16); block index changes only
              with batch, so it is DMA'd once per image.
    w_ref   : stride==1 -> (3, 3*cin, cout); else (3, 3, cin, cout)  (bf16)
    o_ref   : (1, th*wo, cout) output row tile
    xpad_ref: (h+2, w+2, cin) bf16 VMEM scratch — zero-padded copy of the image
              built once per image (halo never touches HBM).
    The tap accumulator lives in values (f32); no VMEM RMW passes.
    """
    rt = pl.program_id(1)
    cin = x_ref.shape[-1]

    @pl.when(rt == 0)
    def _():
        xpad_ref[...] = jnp.zeros_like(xpad_ref)
        xpad_ref[pl.ds(1, h), pl.ds(1, w), :] = x_ref[0]

    r0 = rt * th                          # first output row of this tile
    acc = None
    if stride == 1:
        # K-deepened contraction: per kh, concat the 3 kw windows along K.
        for kh in range(3):
            win = jnp.concatenate(
                [xpad_ref[pl.ds(r0 + kh, th), pl.ds(kw, wo), :]
                 for kw in range(3)],
                axis=-1).reshape(th * wo, 3 * cin)
            part = jnp.dot(win, w_ref[kh], preferred_element_type=jnp.float32)
            acc = part if acc is None else acc + part
    else:
        # TODO(synk): replace strided reads with a 2x2 space-to-depth repack so
        # stride-2 blocks run stride-1 with 4*cin channels (lane-dense reads).
        base = r0 * stride
        for kh in range(3):
            for kw in range(3):
                v = xpad_ref[pl.ds(base + kh, th, stride=stride),
                             pl.ds(kw, wo, stride=stride), :]
                part = jnp.dot(v.reshape(th * wo, cin), w_ref[kh, kw],
                               preferred_element_type=jnp.float32)
                acc = part if acc is None else acc + part

    y = acc * s_ref[...] + b_ref[...]
    o_ref[0] = jnp.maximum(y, 0.0).astype(o_ref.dtype)


# ------------------------------ kernel wrappers ----------------------------- #

def matmul_bn(x, w, scale, bias, *, relu, out_dtype,
              residual=None, shortcut=None, tm=None):
    """Row-tiled fused matmul + folded BN (+ fused shortcut / residual) (+ ReLU).

    x: (M, K), w: (K, N), scale/bias: (N,).
    residual: (M, N) added before the final ReLU (identity shortcut, kept f32).
    shortcut: (xs, ws, ss, bs) fused 1x1-conv shortcut (adds (xs@ws)*ss + bs).
    """
    M, K = x.shape
    K2, N = w.shape
    assert K == K2
    if tm is None:
        tm = _default_tm()
    tm = min(tm, M)
    grid = (pl.cdiv(M, tm),)              # ragged last tile is masked

    def row_spec(cols):
        return pl.BlockSpec((tm, cols), lambda i: (i, 0))

    def const_spec(shape):
        return pl.BlockSpec(shape, lambda i: (0,) * len(shape))

    in_specs = [row_spec(K), const_spec((K, N)),
                const_spec((1, N)), const_spec((1, N))]
    args = [x.astype(jnp.bfloat16), w.astype(jnp.bfloat16),
            scale.reshape(1, N).astype(jnp.float32),
            bias.reshape(1, N).astype(jnp.float32)]

    if shortcut is not None:
        xs, ws, ss, bs = shortcut
        ks = xs.shape[1]
        assert ws.shape == (ks, N)
        kernel = functools.partial(_mm_bn_shortcut_kernel, relu=relu)
        in_specs += [row_spec(ks), const_spec((ks, N)),
                     const_spec((1, N)), const_spec((1, N))]
        args += [xs.astype(jnp.bfloat16), ws.astype(jnp.bfloat16),
                 ss.reshape(1, N).astype(jnp.float32),
                 bs.reshape(1, N).astype(jnp.float32)]
    elif residual is not None:
        kernel = functools.partial(_mm_bn_res_kernel, relu=relu)
        in_specs.append(row_spec(N))
        args.append(residual.astype(jnp.float32))   # skip path stays f32
    else:
        kernel = functools.partial(_mm_bn_kernel, relu=relu)

    return pl.pallas_call(
        kernel,
        out_shape=jax.ShapeDtypeStruct((M, N), out_dtype),
        grid_spec=pltpu.PrefetchScalarGridSpec(
            num_scalar_prefetch=0,
            grid=grid,
            in_specs=in_specs,
            out_specs=pl.BlockSpec((tm, N), lambda i: (i, 0)),
        ),
        compiler_params=pltpu.CompilerParams(
            dimension_semantics=("parallel",),
            vmem_limit_bytes=_vmem_limit()),
    )(*args)


def conv3x3_bn_relu(x, w_hwio, scale, bias, *, stride, out_dtype):
    """3x3 conv (pad=1, stride) + folded BN + ReLU.

    x: (n, h, w, cin) NHWC (cin lane-padded), unpadded spatially.
    w_hwio: (3, 3, cin, cout). Returns (n, ho*wo, cout).
    """
    n, h, w, cin = x.shape
    cout = w_hwio.shape[-1]
    ho = (h - 1) // stride + 1
    wo = (w - 1) // stride + 1
    th = _pick_row_tile(ho, wo)
    assert ho % th == 0
    ntiles = ho // th

    if stride == 1:
        w_arg = w_hwio.reshape(3, 3 * cin, cout).astype(jnp.bfloat16)
    else:
        w_arg = w_hwio.astype(jnp.bfloat16)
    w_shape = w_arg.shape

    kernel = functools.partial(_conv3x3_bn_relu_kernel,
                               stride=stride, th=th, wo=wo, h=h, w=w)
    return pl.pallas_call(
        kernel,
        out_shape=jax.ShapeDtypeStruct((n, ho * wo, cout), out_dtype),
        grid_spec=pltpu.PrefetchScalarGridSpec(
            num_scalar_prefetch=0,
            grid=(n, ntiles),
            in_specs=[
                pl.BlockSpec((1, h, w, cin), lambda b, r: (b, 0, 0, 0)),
                pl.BlockSpec(w_shape, lambda b, r: (0,) * len(w_shape)),
                pl.BlockSpec((1, cout), lambda b, r: (0, 0)),
                pl.BlockSpec((1, cout), lambda b, r: (0, 0)),
            ],
            out_specs=pl.BlockSpec((1, th * wo, cout), lambda b, r: (b, r, 0)),
            scratch_shapes=[pltpu.VMEM((h + 2, w + 2, cin), jnp.bfloat16)],
        ),
        compiler_params=pltpu.CompilerParams(
            dimension_semantics=("parallel", "arbitrary"),
            vmem_limit_bytes=_vmem_limit()),
    )(x.astype(jnp.bfloat16), w_arg,
      scale.reshape(1, cout).astype(jnp.float32),
      bias.reshape(1, cout).astype(jnp.float32))


# ------------------------------ JAX glue ----------------------------------- #

def _fold_bn(gamma, beta, mean, var):
    scale = gamma / jnp.sqrt(var + BN_EPS)
    return scale, beta - mean * scale


def _pad_last(a, target):
    pad = target - a.shape[-1]
    if pad == 0:
        return a
    return jnp.pad(a, [(0, 0)] * (a.ndim - 1) + [(0, pad)])


def _pad_mat(a, rows, cols):
    return jnp.pad(a, ((0, rows - a.shape[0]), (0, cols - a.shape[1])))


def _pad_vec(v, n):
    return jnp.pad(v, (0, n - v.shape[0]))


def bottleneck_forward_nhwc(x_nhwc, params, stride, *, out_dtype=jnp.float32):
    """Bottleneck.forward on NHWC activations (use this form when chaining
    blocks, with out_dtype=jnp.bfloat16 to halve the writeback of conv3)."""
    expansion = 4
    n, h, w, cin = x_nhwc.shape
    planes = params["w1"].shape[0]
    cout = expansion * planes
    cin_p, planes_p, cout_p = (_round_up(c, LANE) for c in (cin, planes, cout))

    s1, b1 = _fold_bn(params["bn1_g"], params["bn1_b"], params["bn1_m"], params["bn1_v"])
    s2, b2 = _fold_bn(params["bn2_g"], params["bn2_b"], params["bn2_m"], params["bn2_v"])
    s3, b3 = _fold_bn(params["bn3_g"], params["bn3_b"], params["bn3_m"], params["bn3_v"])

    # Lane-pad channels once; padded channels carry exact zeros end-to-end.
    xc = _pad_last(x_nhwc, cin_p)

    # conv1 (1x1) + bn1 + relu  -> bf16
    w1m = _pad_mat(params["w1"][:, :, 0, 0].T, cin_p, planes_p)
    out1 = matmul_bn(xc.reshape(n * h * w, cin_p), w1m,
                     _pad_vec(s1, planes_p), _pad_vec(b1, planes_p),
                     relu=True, out_dtype=jnp.bfloat16)

    # conv2 (3x3, stride, pad=1) + bn2 + relu — halo built inside the kernel,
    # no host-side jnp.pad HBM pass.
    w2m = jnp.pad(jnp.transpose(params["w2"], (2, 3, 1, 0)),
                  ((0, 0), (0, 0), (0, planes_p - planes), (0, planes_p - planes)))
    ho = (h - 1) // stride + 1
    wo = (w - 1) // stride + 1
    out2 = conv3x3_bn_relu(out1.reshape(n, h, w, planes_p), w2m,
                           _pad_vec(s2, planes_p), _pad_vec(b2, planes_p),
                           stride=stride, out_dtype=jnp.bfloat16)
    out2 = out2.reshape(n * ho * wo, planes_p)

    # conv3 (1x1) + bn3 + shortcut + relu — one fused kernel
    w3m = _pad_mat(params["w3"][:, :, 0, 0].T, planes_p, cout_p)
    s3p, b3p = _pad_vec(s3, cout_p), _pad_vec(b3, cout_p)
    if stride != 1 or cin != cout:
        ss, bs = _fold_bn(params["bns_g"], params["bns_b"], params["bns_m"], params["bns_v"])
        # TODO(synk): for stride != 1, gather the strided shortcut rows inside
        # the fused kernel instead of this host-side slice.
        xs = xc[:, ::stride, ::stride, :].reshape(n * ho * wo, cin_p)
        wsm = _pad_mat(params["ws"][:, :, 0, 0].T, cin_p, cout_p)
        out3 = matmul_bn(out2, w3m, s3p, b3p, relu=True, out_dtype=out_dtype,
                         shortcut=(xs, wsm, _pad_vec(ss, cout_p), _pad_vec(bs, cout_p)))
    else:
        res = xc.reshape(n * ho * wo, cout_p)          # cin_p == cout_p here
        out3 = matmul_bn(out2, w3m, s3p, b3p, relu=True, out_dtype=out_dtype,
                         residual=res)

    return out3.reshape(n, ho, wo, cout_p)[..., :cout]


def bottleneck_forward(x_nchw, params, stride):
    """NCHW wrapper matching the PyTorch module interface."""
    x = jnp.transpose(x_nchw, (0, 2, 3, 1))            # NCHW -> NHWC
    out = bottleneck_forward_nhwc(x, params, stride, out_dtype=jnp.float32)
    return jnp.transpose(out, (0, 3, 1, 2))            # NHWC -> NCHW


# --------------------------- pure-JAX reference ----------------------------- #

def _reference(x_nchw, params, stride):
    def conv(x, w_torch, s=1, pad=0):
        return lax.conv_general_dilated(
            x, jnp.transpose(w_torch, (2, 3, 1, 0)), (s, s),
            [(pad, pad), (pad, pad)],
            dimension_numbers=("NHWC", "HWIO", "NHWC"))

    def bn(x, g, b, m, v):
        return (x - m) / jnp.sqrt(v + BN_EPS) * g + b

    x = jnp.transpose(x_nchw, (0, 2, 3, 1))
    out = jax.nn.relu(bn(conv(x, params["w1"]),
                         params["bn1_g"], params["bn1_b"], params["bn1_m"], params["bn1_v"]))
    out = jax.nn.relu(bn(conv(out, params["w2"], s=stride, pad=1),
                         params["bn2_g"], params["bn2_b"], params["bn2_m"], params["bn2_v"]))
    out = bn(conv(out, params["w3"]),
             params["bn3_g"], params["bn3_b"], params["bn3_m"], params["bn3_v"])
    cin, cout = x.shape[-1], params["w3"].shape[0]
    if stride != 1 or cin != cout:
        sc = bn(conv(x, params["ws"], s=stride),
                params["bns_g"], params["bns_b"], params["bns_m"], params["bns_v"])
    else:
        sc = x
    out = jax.nn.relu(out + sc)
    return jnp.transpose(out, (0, 3, 1, 2))


# --------------------------------- main ------------------------------------ #

def _make_params(key, in_planes, planes, stride):
    expansion = 4
    ks = jax.random.split(key, 24)
    f32 = jnp.float32

    def w(k, shape):
        return (0.1 * jax.random.normal(k, shape)).astype(f32)

    def bn(kg, kb, km, kv, c):
        return (1.0 + 0.1 * jax.random.normal(kg, (c,)).astype(f32),
                0.1 * jax.random.normal(kb, (c,)).astype(f32),
                0.1 * jax.random.normal(km, (c,)).astype(f32),
                1.0 + 0.5 * jax.random.uniform(kv, (c,)).astype(f32))

    p = {}
    p["w1"] = w(ks[0], (planes, in_planes, 1, 1))
    p["bn1_g"], p["bn1_b"], p["bn1_m"], p["bn1_v"] = bn(*ks[1:5], planes)
    p["w2"] = w(ks[5], (planes, planes, 3, 3))
    p["bn2_g"], p["bn2_b"], p["bn2_m"], p["bn2_v"] = bn(*ks[6:10], planes)
    p["w3"] = w(ks[10], (expansion * planes, planes, 1, 1))
    p["bn3_g"], p["bn3_b"], p["bn3_m"], p["bn3_v"] = bn(*ks[11:15], expansion * planes)
    if stride != 1 or in_planes != expansion * planes:
        p["ws"] = w(ks[15], (expansion * planes, in_planes, 1, 1))
        p["bns_g"], p["bns_b"], p["bns_m"], p["bns_v"] = bn(*ks[16:20], expansion * planes)
    return p


if __name__ == "__main__":
    in_planes, planes, stride = 4, 4, 1
    key = jax.random.PRNGKey(0)
    kx, kp = jax.random.split(key)

    x = jax.random.normal(kx, (2, in_planes, 16, 16), dtype=jnp.float32)  # NCHW
    params = _make_params(kp, in_planes, planes, stride)

    fwd = jax.jit(bottleneck_forward, static_argnums=2)
    out = jax.block_until_ready(fwd(x, params, stride))

    ref = jax.block_until_ready(_reference(x, params, stride))
    assert out.shape == ref.shape == (2, 4 * planes, 16, 16)
    err = float(jnp.max(jnp.abs(out - ref)))
    # bf16 matmul operands with f32 accumulation/epilogue -> loosened abs tol
    assert err < 5e-2, err

    print("KERNEL_OK")
</pallas_src>

<mosaic_0001>
module attributes {stable_mosaic.version = 11 : i64} {
  func.func @_mm_bn_kernel(%arg0: i32, %arg1: memref<256x128xbf16, #tpu.memory_space<vmem>>, %arg2: memref<128x128xbf16, #tpu.memory_space<vmem>>, %arg3: memref<1x128xf32, #tpu.memory_space<vmem>>, %arg4: memref<1x128xf32, #tpu.memory_space<vmem>>, %arg5: memref<256x128xbf16, #tpu.memory_space<vmem>>) attributes {dimension_semantics = [#tpu.dimension_semantics<parallel>], iteration_bounds = array<i64: 2>, scalar_prefetch = 0 : i64, scratch_operands = 0 : i64, tpu.core_type = #tpu.core_type<tc>, window_params = [{transform_indices = @transform_0, window_bounds = array<i64: 256, 128>}, {pipeline_mode = #tpu.pipeline_mode<synchronous>, transform_indices = @transform_1, window_bounds = array<i64: 128, 128>}, {pipeline_mode = #tpu.pipeline_mode<synchronous>, transform_indices = @transform_2, window_bounds = array<i64: 1, 128>}, {pipeline_mode = #tpu.pipeline_mode<synchronous>, transform_indices = @transform_3, window_bounds = array<i64: 1, 128>}, {transform_indices = @transform_4, window_bounds = array<i64: 256, 128>}]} {
    %c0 = arith.constant 0 : index
    %c0_0 = arith.constant 0 : index
    %0 = vector.load %arg1[%c0, %c0_0] : memref<256x128xbf16, #tpu.memory_space<vmem>>, vector<256x128xbf16>
    %c0_1 = arith.constant 0 : index
    %c0_2 = arith.constant 0 : index
    %1 = vector.load %arg2[%c0_1, %c0_2] : memref<128x128xbf16, #tpu.memory_space<vmem>>, vector<128x128xbf16>
    %cst = arith.constant dense<0.000000e+00> : vector<256x128xf32>
    %2 = tpu.matmul %0, %1, %cst {dimension_numbers = #tpu.dot_dimension_numbers<[1], [0], [0], [1], [0, 0, 1, 1], [], []>} : vector<256x128xbf16>, vector<128x128xbf16>, vector<256x128xf32> -> vector<256x128xf32>
    %c0_3 = arith.constant 0 : index
    %c0_4 = arith.constant 0 : index
    %3 = vector.load %arg3[%c0_3, %c0_4] : memref<1x128xf32, #tpu.memory_space<vmem>>, vector<1x128xf32>
    %4 = vector.broadcast %3 : vector<1x128xf32> to vector<256x128xf32>
    %5 = arith.mulf %2, %4 : vector<256x128xf32>
    %c0_5 = arith.constant 0 : index
    %c0_6 = arith.constant 0 : index
    %6 = vector.load %arg4[%c0_5, %c0_6] : memref<1x128xf32, #tpu.memory_space<vmem>>, vector<1x128xf32>
    %7 = vector.broadcast %6 : vector<1x128xf32> to vector<256x128xf32>
    %8 = arith.addf %5, %7 : vector<256x128xf32>
    %cst_7 = arith.constant 0.000000e+00 : f32
    %9 = vector.broadcast %cst_7 : f32 to vector<256x128xf32>
    %10 = arith.maximumf %8, %9 : vector<256x128xf32>
    %11 = arith.truncf %10 : vector<256x128xf32> to vector<256x128xbf16>
    %c0_8 = arith.constant 0 : index
    %c0_9 = arith.constant 0 : index
    %12 = vector.load %arg5[%c0_8, %c0_9] : memref<256x128xbf16, #tpu.memory_space<vmem>>, vector<256x128xbf16>
    tpu.vector_store %arg5[%c0_8, %c0_9], %11 {strides = array<i32>} : memref<256x128xbf16, #tpu.memory_space<vmem>>, vector<256x128xbf16>,
    return
  }
  func.func @transform_0(%arg0: i32) -> (i32, i32) {
    %c0_i32 = arith.constant 0 : i32
    %c0_i32_0 = arith.constant 0 : i32
    return %arg0, %c0_i32 : i32, i32
  }
  func.func @transform_1(%arg0: i32) -> (i32, i32) {
    %c0_i32 = arith.constant 0 : i32
    %c0_i32_0 = arith.constant 0 : i32
    %c0_i32_1 = arith.constant 0 : i32
    return %c0_i32, %c0_i32_0 : i32, i32
  }
  func.func @transform_2(%arg0: i32) -> (i32, i32) {
    %c0_i32 = arith.constant 0 : i32
    %c0_i32_0 = arith.constant 0 : i32
    %c0_i32_1 = arith.constant 0 : i32
    return %c0_i32, %c0_i32_0 : i32, i32
  }
  func.func @transform_3(%arg0: i32) -> (i32, i32) {
    %c0_i32 = arith.constant 0 : i32
    %c0_i32_0 = arith.constant 0 : i32
    %c0_i32_1 = arith.constant 0 : i32
    return %c0_i32, %c0_i32_0 : i32, i32
  }
  func.func @transform_4(%arg0: i32) -> (i32, i32) {
    %c0_i32 = arith.constant 0 : i32
    %c0_i32_0 = arith.constant 0 : i32
    return %arg0, %c0_i32 : i32, i32
  }
}

module attributes {stable_mosaic.version = 11 : i64} {
  func.func @_conv3x3_bn_relu_kernel(%arg0: i32, %arg1: i32, %arg2: memref<1x16x16x128xbf16, #tpu.memory_space<vmem>>, %arg3: memref<3x384x128xbf16, #tpu.memory_space<vmem>>, %arg4: memref<1x128xf32, #tpu.memory_space<vmem>>, %arg5: memref<1x128xf32, #tpu.memory_space<vmem>>, %arg6: memref<1x256x128xbf16, #tpu.memory_space<vmem>>, %arg7: memref<18x18x128xbf16, #tpu.memory_space<vmem>>) attributes {dimension_semantics = [#tpu.dimension_semantics<parallel>, #tpu.dimension_semantics<arbitrary>], iteration_bounds = array<i64: 2, 1>, scalar_prefetch = 0 : i64, scratch_operands = 1 : i64, tpu.core_type = #tpu.core_type<tc>, window_params = [{transform_indices = @transform_0, window_bounds = array<i64: 1, 16, 16, 128>}, {pipeline_mode = #tpu.pipeline_mode<synchronous>, transform_indices = @transform_1, window_bounds = array<i64: 3, 384, 128>}, {pipeline_mode = #tpu.pipeline_mode<synchronous>, transform_indices = @transform_2, window_bounds = array<i64: 1, 128>}, {pipeline_mode = #tpu.pipeline_mode<synchronous>, transform_indices = @transform_3, window_bounds = array<i64: 1, 128>}, {transform_indices = @transform_4, window_bounds = array<i64: 1, 256, 128>}]} {
    %c0_i32 = arith.constant 0 : i32
    %0 = arith.cmpi eq, %arg1, %c0_i32 : i32
    %1 = arith.extui %0 : i1 to i32
    %c0_i32_0 = arith.constant 0 : i32
    %2 = arith.cmpi ne, %1, %c0_i32_0 : i32
    scf.if %2 {
      %cst_42 = arith.constant 0.000000e+00 : bf16
      %60 = vector.broadcast %cst_42 : bf16 to vector<18x18x128xbf16>
      %c0_43 = arith.constant 0 : index
      %c0_44 = arith.constant 0 : index
      %c0_45 = arith.constant 0 : index
      %61 = vector.load %arg7[%c0_43, %c0_44, %c0_45] : memref<18x18x128xbf16, #tpu.memory_space<vmem>>, vector<18x18x128xbf16>
      tpu.vector_store %arg7[%c0_43, %c0_44, %c0_45], %60 {strides = array<i32>} : memref<18x18x128xbf16, #tpu.memory_space<vmem>>, vector<18x18x128xbf16>,
      %c0_46 = arith.constant 0 : index
      %c0_47 = arith.constant 0 : index
      %c0_48 = arith.constant 0 : index
      %c0_49 = arith.constant 0 : index
      %62 = vector.load %arg2[%c0_46, %c0_47, %c0_48, %c0_49] : memref<1x16x16x128xbf16, #tpu.memory_space<vmem>>, vector<1x16x16x128xbf16>
      %63 = vector.shape_cast %62 : vector<1x16x16x128xbf16> to vector<16x16x128xbf16>
      %c1_50 = arith.constant 1 : index
      %c1_51 = arith.constant 1 : index
      %c0_52 = arith.constant 0 : index
      %64 = vector.load %arg7[%c1_50, %c1_51, %c0_52] : memref<18x18x128xbf16, #tpu.memory_space<vmem>>, vector<16x16x128xbf16>
      tpu.vector_store %arg7[%c1_50, %c1_51, %c0_52], %63 {strides = array<i32>} : memref<18x18x128xbf16, #tpu.memory_space<vmem>>, vector<16x16x128xbf16>,
    } else {
    }
    %c16_i32 = arith.constant 16 : i32
    %3 = arith.muli %arg1, %c16_i32 : i32
    %c0_i32_1 = arith.constant 0 : i32
    %4 = arith.addi %3, %c0_i32_1 : i32
    %5 = arith.index_cast %4 : i32 to index
    %c0 = arith.constant 0 : index
    %c0_2 = arith.constant 0 : index
    %6 = vector.load %arg7[%5, %c0, %c0_2] : memref<18x18x128xbf16, #tpu.memory_space<vmem>>, vector<16x16x128xbf16>
    %c0_i32_3 = arith.constant 0 : i32
    %7 = arith.addi %3, %c0_i32_3 : i32
    %8 = arith.index_cast %7 : i32 to index
    %c1 = arith.constant 1 : index
    %c0_4 = arith.constant 0 : index
    %9 = vector.load %arg7[%8, %c1, %c0_4] : memref<18x18x128xbf16, #tpu.memory_space<vmem>>, vector<16x16x128xbf16>
    %c0_i32_5 = arith.constant 0 : i32
    %10 = arith.addi %3, %c0_i32_5 : i32
    %11 = arith.index_cast %10 : i32 to index
    %c2 = arith.constant 2 : index
    %c0_6 = arith.constant 0 : index
    %12 = vector.load %arg7[%11, %c2, %c0_6] : memref<18x18x128xbf16, #tpu.memory_space<vmem>>, vector<16x16x128xbf16>
    %13 = tpu.concatenate %6, %9, %12 in 2 : vector<16x16x128xbf16>, vector<16x16x128xbf16>, vector<16x16x128xbf16> -> vector<16x16x384xbf16>
    %14 = vector.shape_cast %13 : vector<16x16x384xbf16> to vector<256x384xbf16>
    %c0_7 = arith.constant 0 : index
    %c0_8 = arith.constant 0 : index
    %c0_9 = arith.constant 0 : index
    %15 = vector.load %arg3[%c0_7, %c0_8, %c0_9] : memref<3x384x128xbf16, #tpu.memory_space<vmem>>, vector<1x384x128xbf16>
    %16 = vector.shape_cast %15 : vector<1x384x128xbf16> to vector<384x128xbf16>
    %cst = arith.constant dense<0.000000e+00> : vector<256x128xf32>
    %17 = tpu.matmul %14, %16, %cst {dimension_numbers = #tpu.dot_dimension_numbers<[1], [0], [0], [1], [0, 0, 1, 1], [], []>} : vector<256x384xbf16>, vector<384x128xbf16>, vector<256x128xf32> -> vector<256x128xf32>
    %c1_i32 = arith.constant 1 : i32
    %18 = arith.addi %3, %c1_i32 : i32
    %19 = arith.index_cast %18 : i32 to index
    %c0_10 = arith.constant 0 : index
    %c0_11 = arith.constant 0 : index
    %20 = vector.load %arg7[%19, %c0_10, %c0_11] : memref<18x18x128xbf16, #tpu.memory_space<vmem>>, vector<16x16x128xbf16>
    %c1_i32_12 = arith.constant 1 : i32
    %21 = arith.addi %3, %c1_i32_12 : i32
    %22 = arith.index_cast %21 : i32 to index
    %c1_13 = arith.constant 1 : index
    %c0_14 = arith.constant 0 : index
    %23 = vector.load %arg7[%22, %c1_13, %c0_14] : memref<18x18x128xbf16, #tpu.memory_space<vmem>>, vector<16x16x128xbf16>
    %c1_i32_15 = arith.constant 1 : i32
    %24 = arith.addi %3, %c1_i32_15 : i32
    %25 = arith.index_cast %24 : i32 to index
    %c2_16 = arith.constant 2 : index
    %c0_17 = arith.constant 0 : index
    %26 = vector.load %arg7[%25, %c2_16, %c0_17] : memref<18x18x128xbf16, #tpu.memory_space<vmem>>, vector<16x16x128xbf16>
    %27 = tpu.concatenate %20, %23, %26 in 2 : vector<16x16x128xbf16>, vector<16x16x128xbf16>, vector<16x16x128xbf16> -> vector<16x16x384xbf16>
    %28 = vector.shape_cast %27 : vector<16x16x384xbf16> to vector<256x384xbf16>
    %c1_18 = arith.constant 1 : index
    %c0_19 = arith.constant 0 : index
    %c0_20 = arith.constant 0 : index
    %29 = vector.load %arg3[%c1_18, %c0_19, %c0_20] : memref<3x384x128xbf16, #tpu.memory_space<vmem>>, vector<1x384x128xbf16>
    %30 = vector.shape_cast %29 : vector<1x384x128xbf16> to vector<384x128xbf16>
    %cst_21 = arith.constant dense<0.000000e+00> : vector<256x128xf32>
    %31 = tpu.matmul %28, %30, %cst_21 {dimension_numbers = #tpu.dot_dimension_numbers<[1], [0], [0], [1], [0, 0, 1, 1], [], []>} : vector<256x384xbf16>, vector<384x128xbf16>, vector<256x128xf32> -> vector<256x128xf32>
    %32 = arith.addf %17, %31 : vector<256x128xf32>
    %c2_i32 = arith.constant 2 : i32
    %33 = arith.addi %3, %c2_i32 : i32
    %34 = arith.index_cast %33 : i32 to index
    %c0_22 = arith.constant 0 : index
    %c0_23 = arith.constant 0 : index
    %35 = vector.load %arg7[%34, %c0_22, %c0_23] : memref<18x18x128xbf16, #tpu.memory_space<vmem>>, vector<16x16x128xbf16>
    %c2_i32_24 = arith.constant 2 : i32
    %36 = arith.addi %3, %c2_i32_24 : i32
    %37 = arith.index_cast %36 : i32 to index
    %c1_25 = arith.constant 1 : index
    %c0_26 = arith.constant 0 : index
    %38 = vector.load %arg7[%37, %c1_25, %c0_26] : memref<18x18x128xbf16, #tpu.memory_space<vmem>>, vector<16x16x128xbf16>
    %c2_i32_27 = arith.constant 2 : i32
    %39 = arith.addi %3, %c2_i32_27 : i32
    %40 = arith.index_cast %39 : i32 to index
    %c2_28 = arith.constant 2 : index
    %c0_29 = arith.constant 0 : index
    %41 = vector.load %arg7[%40, %c2_28, %c0_29] : memref<18x18x128xbf16, #tpu.memory_space<vmem>>, vector<16x16x128xbf16>
    %42 = tpu.concatenate %35, %38, %41 in 2 : vector<16x16x128xbf16>, vector<16x16x128xbf16>, vector<16x16x128xbf16> -> vector<16x16x384xbf16>
    %43 = vector.shape_cast %42 : vector<16x16x384xbf16> to vector<256x384xbf16>
    %c2_30 = arith.constant 2 : index
    %c0_31 = arith.constant 0 : index
    %c0_32 = arith.constant 0 : index
    %44 = vector.load %arg3[%c2_30, %c0_31, %c0_32] : memref<3x384x128xbf16, #tpu.memory_space<vmem>>, vector<1x384x128xbf16>
    %45 = vector.shape_cast %44 : vector<1x384x128xbf16> to vector<384x128xbf16>
    %cst_33 = arith.constant dense<0.000000e+00> : vector<256x128xf32>
    %46 = tpu.matmul %43, %45, %cst_33 {dimension_numbers = #tpu.dot_dimension_numbers<[1], [0], [0], [1], [0, 0, 1, 1], [], []>} : vector<256x384xbf16>, vector<384x128xbf16>, vector<256x128xf32> -> vector<256x128xf32>
    %47 = arith.addf %32, %46 : vector<256x128xf32>
    %c0_34 = arith.constant 0 : index
    %c0_35 = arith.constant 0 : index
    %48 = vector.load %arg4[%c0_34, %c0_35] : memref<1x128xf32, #tpu.memory_space<vmem>>, vector<1x128xf32>
    %49 = vector.broadcast %48 : vector<1x128xf32> to vector<256x128xf32>
    %50 = arith.mulf %47, %49 : vector<256x128xf32>
    %c0_36 = arith.constant 0 : index
    %c0_37 = arith.constant 0 : index
    %51 = vector.load %arg5[%c0_36, %c0_37] : memref<1x128xf32, #tpu.memory_space<vmem>>, vector<1x128xf32>
    %52 = vector.broadcast %51 : vector<1x128xf32> to vector<256x128xf32>
    %53 = arith.addf %50, %52 : vector<256x128xf32>
    %cst_38 = arith.constant 0.000000e+00 : f32
    %54 = vector.broadcast %cst_38 : f32 to vector<256x128xf32>
    %55 = arith.maximumf %53, %54 : vector<256x128xf32>
    %56 = arith.truncf %55 : vector<256x128xf32> to vector<256x128xbf16>
    %c0_39 = arith.constant 0 : index
    %c0_40 = arith.constant 0 : index
    %c0_41 = arith.constant 0 : index
    %57 = vector.load %arg6[%c0_39, %c0_40, %c0_41] : memref<1x256x128xbf16, #tpu.memory_space<vmem>>, vector<1x256x128xbf16>
    %58 = vector.shape_cast %57 : vector<1x256x128xbf16> to vector<256x128xbf16>
    %59 = vector.shape_cast %56 : vector<256x128xbf16> to vector<1x256x128xbf16>
    tpu.vector_store %arg6[%c0_39, %c0_40, %c0_41], %59 {strides = array<i32>} : memref<1x256x128xbf16, #tpu.memory_space<vmem>>, vector<1x256x128xbf16>,
    return
  }
  func.func @transform_0(%arg0: i32, %arg1: i32) -> (i32, i32, i32, i32) {
    %c0_i32 = arith.constant 0 : i32
    %c0_i32_0 = arith.constant 0 : i32
    %c0_i32_1 = arith.constant 0 : i32
    %c0_i32_2 = arith.constant 0 : i32
    return %arg0, %c0_i32, %c0_i32_0, %c0_i32_1 : i32, i32, i32, i32
  }
  func.func @transform_1(%arg0: i32, %arg1: i32) -> (i32, i32, i32) {
    %c0_i32 = arith.constant 0 : i32
    %c0_i32_0 = arith.constant 0 : i32
    %c0_i32_1 = arith.constant 0 : i32
    %c0_i32_2 = arith.constant 0 : i32
    return %c0_i32, %c0_i32_0, %c0_i32_1 : i32, i32, i32
  }
  func.func @transform_2(%arg0: i32, %arg1: i32) -> (i32, i32) {
    %c0_i32 = arith.constant 0 : i32
    %c0_i32_0 = arith.constant 0 : i32
    %c0_i32_1 = arith.constant 0 : i32
    return %c0_i32, %c0_i32_0 : i32, i32
  }
  func.func @transform_3(%arg0: i32, %arg1: i32) -> (i32, i32) {
    %c0_i32 = arith.constant 0 : i32
    %c0_i32_0 = arith.constant 0 : i32
    %c0_i32_1 = arith.constant 0 : i32
    return %c0_i32, %c0_i32_0 : i32, i32
  }
  func.func @transform_4(%arg0: i32, %arg1: i32) -> (i32, i32, i32) {
    %c0_i32 = arith.constant 0 : i32
    %c0_i32_0 = arith.constant 0 : i32
    return %arg0, %arg1, %c0_i32 : i32, i32, i32
  }
}

module attributes {stable_mosaic.version = 11 : i64} {
  func.func @_mm_bn_shortcut_kernel(%arg0: i32, %arg1: memref<256x128xbf16, #tpu.memory_space<vmem>>, %arg2: memref<128x128xbf16, #tpu.memory_space<vmem>>, %arg3: memref<1x128xf32, #tpu.memory_space<vmem>>, %arg4: memref<1x128xf32, #tpu.memory_space<vmem>>, %arg5: memref<256x128xbf16, #tpu.memory_space<vmem>>, %arg6: memref<128x128xbf16, #tpu.memory_space<vmem>>, %arg7: memref<1x128xf32, #tpu.memory_space<vmem>>, %arg8: memref<1x128xf32, #tpu.memory_space<vmem>>, %arg9: memref<256x128xf32, #tpu.memory_space<vmem>>) attributes {dimension_semantics = [#tpu.dimension_semantics<parallel>], iteration_bounds = array<i64: 2>, scalar_prefetch = 0 : i64, scratch_operands = 0 : i64, tpu.core_type = #tpu.core_type<tc>, window_params = [{transform_indices = @transform_0, window_bounds = array<i64: 256, 128>}, {pipeline_mode = #tpu.pipeline_mode<synchronous>, transform_indices = @transform_1, window_bounds = array<i64: 128, 128>}, {pipeline_mode = #tpu.pipeline_mode<synchronous>, transform_indices = @transform_2, window_bounds = array<i64: 1, 128>}, {pipeline_mode = #tpu.pipeline_mode<synchronous>, transform_indices = @transform_3, window_bounds = array<i64: 1, 128>}, {transform_indices = @transform_4, window_bounds = array<i64: 256, 128>}, {pipeline_mode = #tpu.pipeline_mode<synchronous>, transform_indices = @transform_5, window_bounds = array<i64: 128, 128>}, {pipeline_mode = #tpu.pipeline_mode<synchronous>, transform_indices = @transform_6, window_bounds = array<i64: 1, 128>}, {pipeline_mode = #tpu.pipeline_mode<synchronous>, transform_indices = @transform_7, window_bounds = array<i64: 1, 128>}, {transform_indices = @transform_8, window_bounds = array<i64: 256, 128>}]} {
    %c0 = arith.constant 0 : index
    %c0_0 = arith.constant 0 : index
    %0 = vector.load %arg1[%c0, %c0_0] : memref<256x128xbf16, #tpu.memory_space<vmem>>, vector<256x128xbf16>
    %c0_1 = arith.constant 0 : index
    %c0_2 = arith.constant 0 : index
    %1 = vector.load %arg2[%c0_1, %c0_2] : memref<128x128xbf16, #tpu.memory_space<vmem>>, vector<128x128xbf16>
    %cst = arith.constant dense<0.000000e+00> : vector<256x128xf32>
    %2 = tpu.matmul %0, %1, %cst {dimension_numbers = #tpu.dot_dimension_numbers<[1], [0], [0], [1], [0, 0, 1, 1], [], []>} : vector<256x128xbf16>, vector<128x128xbf16>, vector<256x128xf32> -> vector<256x128xf32>
    %c0_3 = arith.constant 0 : index
    %c0_4 = arith.constant 0 : index
    %3 = vector.load %arg3[%c0_3, %c0_4] : memref<1x128xf32, #tpu.memory_space<vmem>>, vector<1x128xf32>
    %4 = vector.broadcast %3 : vector<1x128xf32> to vector<256x128xf32>
    %5 = arith.mulf %2, %4 : vector<256x128xf32>
    %c0_5 = arith.constant 0 : index
    %c0_6 = arith.constant 0 : index
    %6 = vector.load %arg4[%c0_5, %c0_6] : memref<1x128xf32, #tpu.memory_space<vmem>>, vector<1x128xf32>
    %7 = vector.broadcast %6 : vector<1x128xf32> to vector<256x128xf32>
    %8 = arith.addf %5, %7 : vector<256x128xf32>
    %c0_7 = arith.constant 0 : index
    %c0_8 = arith.constant 0 : index
    %9 = vector.load %arg5[%c0_7, %c0_8] : memref<256x128xbf16, #tpu.memory_space<vmem>>, vector<256x128xbf16>
    %c0_9 = arith.constant 0 : index
    %c0_10 = arith.constant 0 : index
    %10 = vector.load %arg6[%c0_9, %c0_10] : memref<128x128xbf16, #tpu.memory_space<vmem>>, vector<128x128xbf16>
    %cst_11 = arith.constant dense<0.000000e+00> : vector<256x128xf32>
    %11 = tpu.matmul %9, %10, %cst_11 {dimension_numbers = #tpu.dot_dimension_numbers<[1], [0], [0], [1], [0, 0, 1, 1], [], []>} : vector<256x128xbf16>, vector<128x128xbf16>, vector<256x128xf32> -> vector<256x128xf32>
    %c0_12 = arith.constant 0 : index
    %c0_13 = arith.constant 0 : index
    %12 = vector.load %arg7[%c0_12, %c0_13] : memref<1x128xf32, #tpu.memory_space<vmem>>, vector<1x128xf32>
    %13 = vector.broadcast %12 : vector<1x128xf32> to vector<256x128xf32>
    %14 = arith.mulf %11, %13 : vector<256x128xf32>
    %c0_14 = arith.constant 0 : index
    %c0_15 = arith.constant 0 : index
    %15 = vector.load %arg8[%c0_14, %c0_15] : memref<1x128xf32, #tpu.memory_space<vmem>>, vector<1x128xf32>
    %16 = vector.broadcast %15 : vector<1x128xf32> to vector<256x128xf32>
    %17 = arith.addf %14, %16 : vector<256x128xf32>
    %18 = arith.addf %8, %17 : vector<256x128xf32>
    %cst_16 = arith.constant 0.000000e+00 : f32
    %19 = vector.broadcast %cst_16 : f32 to vector<256x128xf32>
    %20 = arith.maximumf %18, %19 : vector<256x128xf32>
    %c0_17 = arith.constant 0 : index
    %c0_18 = arith.constant 0 : index
    %21 = vector.load %arg9[%c0_17, %c0_18] : memref<256x128xf32, #tpu.memory_space<vmem>>, vector<256x128xf32>
    tpu.vector_store %arg9[%c0_17, %c0_18], %20 {strides = array<i32>} : memref<256x128xf32, #tpu.memory_space<vmem>>, vector<256x128xf32>,
    return
  }
  func.func @transform_0(%arg0: i32) -> (i32, i32) {
    %c0_i32 = arith.constant 0 : i32
    %c0_i32_0 = arith.constant 0 : i32
    return %arg0, %c0_i32 : i32, i32
  }
  func.func @transform_1(%arg0: i32) -> (i32, i32) {
    %c0_i32 = arith.constant 0 : i32
    %c0_i32_0 = arith.constant 0 : i32
    %c0_i32_1 = arith.constant 0 : i32
    return %c0_i32, %c0_i32_0 : i32, i32
  }
  func.func @transform_2(%arg0: i32) -> (i32, i32) {
    %c0_i32 = arith.constant 0 : i32
    %c0_i32_0 = arith.constant 0 : i32
    %c0_i32_1 = arith.constant 0 : i32
    return %c0_i32, %c0_i32_0 : i32, i32
  }
  func.func @transform_3(%arg0: i32) -> (i32, i32) {
    %c0_i32 = arith.constant 0 : i32
    %c0_i32_0 = arith.constant 0 : i32
    %c0_i32_1 = arith.constant 0 : i32
    return %c0_i32, %c0_i32_0 : i32, i32
  }
  func.func @transform_4(%arg0: i32) -> (i32, i32) {
    %c0_i32 = arith.constant 0 : i32
    %c0_i32_0 = arith.constant 0 : i32
    return %arg0, %c0_i32 : i32, i32
  }
  func.func @transform_5(%arg0: i32) -> (i32, i32) {
    %c0_i32 = arith.constant 0 : i32
    %c0_i32_0 = arith.constant 0 : i32
    %c0_i32_1 = arith.constant 0 : i32
    return %c0_i32, %c0_i32_0 : i32, i32
  }
  func.func @transform_6(%arg0: i32) -> (i32, i32) {
    %c0_i32 = arith.constant 0 : i32
    %c0_i32_0 = arith.constant 0 : i32
    %c0_i32_1 = arith.constant 0 : i32
    return %c0_i32, %c0_i32_0 : i32, i32
  }
  func.func @transform_7(%arg0: i32) -> (i32, i32) {
    %c0_i32 = arith.constant 0 : i32
    %c0_i32_0 = arith.constant 0 : i32
    %c0_i32_1 = arith.constant 0 : i32
    return %c0_i32, %c0_i32_0 : i32, i32
  }
  func.func @transform_8(%arg0: i32) -> (i32, i32) {
    %c0_i32 = arith.constant 0 : i32
    %c0_i32_0 = arith.constant 0 : i32
    return %arg0, %c0_i32 : i32, i32
  }
}

</mosaic_0001>

<llo_original>
// kernel: bottleneck_forward.3
$region0: #{bottleneck_forward.3}
  #allocation0 [shape = 'u32[]', space=smem, size = 0x4, offset = 0x4, fixed_abs, tag = 'smem constant byte address 0x4 - core index']
  #allocation1 [shape = 'u32[144,128]{1,0:T(1,128)}', space=vmem, size = 0x12000, scoped, tag = 'internal scratch']
  %s0 = inlined_call_operand.vmem [shape: bf16[512,128], index: 0, kind: input, shape index: {}]
  %s1 = inlined_call_operand.vmem [shape: bf16[128,128], index: 1, kind: input, shape index: {}]
  %s2 = inlined_call_operand.vmem [shape: f32[1,128], index: 2, kind: input, shape index: {}]
  %s3 = inlined_call_operand.vmem [shape: f32[1,128], index: 3, kind: input, shape index: {}]
  %s4 = inlined_call_operand.vmem [shape: bf16[512,128], index: 4, kind: output, shape index: {}]
  %s5 = sld [smem:[#allocation0]]
  $region49: #{bottleneck_forward.3} parent=0
    _
  %s7 = ssub.s32 1, %s5
  %s8 = scalar_select 0, %s7, %s5
  loop: start=0, step=1, limit=4
  $region2: #{bottleneck_forward.3} parent=0 // loop_pre_header
    _
  $region3: #{bottleneck_forward.3} parent=0 // loop_header
    %s10 = sphi 0, %s14
    %p11 = scmp.ge.s32.totalorder %s10, 4
    %s20 = sphi 0, %s22
    %s23 = sphi 0, %s20
    %s24 = sphi 0, %s23
    %s40 = sphi 0, %s24
    %s44 = sphi 0, %s44
    %s46 = sphi 0, %s44
    %s47 = sphi 0, %s46
    %s61 = sphi 0, %s47
    %s65 = sphi 0, %s65
    %s67 = sphi 0, %s65
    %s68 = sphi 0, %s67
    %s82 = sphi 0, %s68
    %s86 = sphi 0, %s86
    %s88 = sphi 0, %s86
    %s89 = sphi 0, %s88
    %s103 = sphi 0, %s89
    %s109 = sphi 0, %s111
    %s112 = sphi 0, %s109
    %s113 = sphi 0, %s112
    %s129 = sphi 0, %s113
  $region4: #{bottleneck_forward.3} parent=0 // loop_header_branch
    %13 = sbr.rel (%p11) target = $region8
  $region5: #{bottleneck_forward.3} parent=0 // loop_body
    %s15 = ssub.s32 %s10, 1
    %s16 = ssub.s32 %s10, 2
    %s17 = sadd.s32 %s10, 1
    %s18 = ssub.s32 %s10, %s17
    %p19 = scmp.eq.s32.totalorder %s18, 0
    %s21 = sadd.s32 %s20, 1
    %s22 = scalar_select %p19, %s20, %s21
    %p25 = pneg %p19
    %p26 = scmp.eq.s32.totalorder %s10, 1
    %p27 = por %p25, %p26
    %p28 = scmp.ne.s32.totalorder %s20, %s23
    %p29 = scmp.eq.s32.totalorder %s10, 0
    %p30 = por %p28, %p29
    %p31 = scmp.ne.s32.totalorder %s20, %s23
    %p32 = scmp.eq.s32.totalorder %s15, 1
    %p33 = por %p31, %p32
    %p34 = scmp.ne.s32.totalorder %s23, %s24
    %p35 = scmp.eq.s32.totalorder %s15, 0
    %p36 = por %p34, %p35
    %p37 = scmp.ne.s32.totalorder %s23, %s24
    %p38 = scmp.eq.s32.totalorder %s16, 1
    %p39 = por %p37, %p38
    %p41 = scmp.ne.s32.totalorder %s24, %s40
    %p42 = scmp.eq.s32.totalorder %s16, 0
    %p43 = por %p41, %p42
    %s45 = sadd.s32 %s44, 1
    %p48 = scmp.eq.s32.totalorder %s10, 1
    %p49 = scmp.ne.s32.totalorder %s44, %s46
    %p50 = scmp.eq.s32.totalorder %s10, 0
    %p51 = por %p49, %p50
    %p52 = scmp.ne.s32.totalorder %s44, %s46
    %p53 = scmp.eq.s32.totalorder %s15, 1
    %p54 = por %p52, %p53
    %p55 = scmp.ne.s32.totalorder %s46, %s47
    %p56 = scmp.eq.s32.totalorder %s15, 0
    %p57 = por %p55, %p56
    %p58 = scmp.ne.s32.totalorder %s46, %s47
    %p59 = scmp.eq.s32.totalorder %s16, 1
    %p60 = por %p58, %p59
    %p62 = scmp.ne.s32.totalorder %s47, %s61
    %p63 = scmp.eq.s32.totalorder %s16, 0
    %p64 = por %p62, %p63
    %s66 = sadd.s32 %s65, 1
    %p69 = scmp.eq.s32.totalorder %s10, 1
    %p70 = scmp.ne.s32.totalorder %s65, %s67
    %p71 = scmp.eq.s32.totalorder %s10, 0
    %p72 = por %p70, %p71
    %p73 = scmp.ne.s32.totalorder %s65, %s67
    %p74 = scmp.eq.s32.totalorder %s15, 1
    %p75 = por %p73, %p74
    %p76 = scmp.ne.s32.totalorder %s67, %s68
    %p77 = scmp.eq.s32.totalorder %s15, 0
    %p78 = por %p76, %p77
    %p79 = scmp.ne.s32.totalorder %s67, %s68
    %p80 = scmp.eq.s32.totalorder %s16, 1
    %p81 = por %p79, %p80
    %p83 = scmp.ne.s32.totalorder %s68, %s82
    %p84 = scmp.eq.s32.totalorder %s16, 0
    %p85 = por %p83, %p84
    %s87 = sadd.s32 %s86, 1
    %p90 = scmp.eq.s32.totalorder %s10, 1
    %p91 = scmp.ne.s32.totalorder %s86, %s88
    %p92 = scmp.eq.s32.totalorder %s10, 0
    %p93 = por %p91, %p92
    %p94 = scmp.ne.s32.totalorder %s86, %s88
    %p95 = scmp.eq.s32.totalorder %s15, 1
    %p96 = por %p94, %p95
    %p97 = scmp.ne.s32.totalorder %s88, %s89
    %p98 = scmp.eq.s32.totalorder %s15, 0
    %p99 = por %p97, %p98
    %p100 = scmp.ne.s32.totalorder %s88, %s89
    %p101 = scmp.eq.s32.totalorder %s16, 1
    %p102 = por %p100, %p101
    %p104 = scmp.ne.s32.totalorder %s89, %s103
    %p105 = scmp.eq.s32.totalorder %s16, 0
    %p106 = por %p104, %p105
    %s107 = ssub.s32 %s10, %s17
    %p108 = scmp.eq.s32.totalorder %s107, 0
    %s110 = sadd.s32 %s109, 1
    %s111 = scalar_select %p108, %s109, %s110
    %p114 = pneg %p108
    %p115 = scmp.eq.s32.totalorder %s10, 1
    %p116 = por %p114, %p115
    %p117 = scmp.ne.s32.totalorder %s109, %s112
    %p118 = scmp.eq.s32.totalorder %s10, 0
    %p119 = por %p117, %p118
    %p120 = scmp.ne.s32.totalorder %s109, %s112
    %p121 = scmp.eq.s32.totalorder %s15, 1
    %p122 = por %p120, %p121
    %p123 = scmp.ne.s32.totalorder %s112, %s113
    %p124 = scmp.eq.s32.totalorder %s15, 0
    %p125 = por %p123, %p124
    %p126 = scmp.ne.s32.totalorder %s112, %s113
    %p127 = scmp.eq.s32.totalorder %s16, 1
    %p128 = por %p126, %p127
    %p130 = scmp.ne.s32.totalorder %s113, %s129
    %p131 = scmp.eq.s32.totalorder %s16, 0
    %p132 = por %p130, %p131
    %p133 = scmp.le.s32.totalorder 1, %s10
    %p134 = scmp.lt.s32.totalorder %s10, 3
    %p135 = pnand %p133, %p134
    %p136 = pneg %p135
    // Predicated region
    $region9: #{bottleneck_forward.3} parent=5 // pred_check
      _
    $region10: #{bottleneck_forward.3} parent=5 // pred_check_branch
      %138 = sbr.rel (%p135) target = $region12
    $region11: #{bottleneck_forward.3} parent=5 // pred_region
      %s139 = ssub.s32 %s10, 1
      // Predicated region
      $region13: #{bottleneck_forward.3} parent=11 // pred_check
        %p140 = pneg %p57
      $region14: #{bottleneck_forward.3} parent=11 // pred_check_branch
        %142 = sbr.rel (%p140) target = $region16
      $region15: #{bottleneck_forward.3} parent=11 // pred_region
        _
      $region16: #{bottleneck_forward.3} parent=11 // pred_fallthru
        _
      // Predicated region
      $region17: #{bottleneck_forward.3} parent=11 // pred_check
        %p143 = pneg %p78
      $region18: #{bottleneck_forward.3} parent=11 // pred_check_branch
        %145 = sbr.rel (%p143) target = $region20
      $region19: #{bottleneck_forward.3} parent=11 // pred_region
        _
      $region20: #{bottleneck_forward.3} parent=11 // pred_fallthru
        _
      // Predicated region
      $region21: #{bottleneck_forward.3} parent=11 // pred_check
        %p146 = pneg %p99
      $region22: #{bottleneck_forward.3} parent=11 // pred_check_branch
        %148 = sbr.rel (%p146) target = $region24
      $region23: #{bottleneck_forward.3} parent=11 // pred_region
        _
      $region24: #{bottleneck_forward.3} parent=11 // pred_fallthru
        _
    $region12: #{bottleneck_forward.3} parent=5 // pred_fallthru
      _
    %p149 = scmp.lt.s32.totalorder %s10, 2
    // Predicated region
    $region25: #{bottleneck_forward.3} parent=5 // pred_check
      %p150 = pneg %p149
    $region26: #{bottleneck_forward.3} parent=5 // pred_check_branch
      %152 = sbr.rel (%p150) target = $region28
    $region27: #{bottleneck_forward.3} parent=5 // pred_region
      // Predicated region
      $region29: #{bottleneck_forward.3} parent=27 // pred_check
        %p153 = pneg %p30
      $region30: #{bottleneck_forward.3} parent=27 // pred_check_branch
        %155 = sbr.rel (%p153) target = $region32
      $region31: #{bottleneck_forward.3} parent=27 // pred_region
        %s156 = smul.u32 32, %s10
        %p157 = scmp.lt.s32.totalorder %s156, 63
        %s158 = scalar_select %p157, %s156, 63
        %s159 = smul.addr %s158, 4
        %s160 = scalar_lea.vmem %s0, %s159
        %s161 = smul.u32 32, %s10
      $region32: #{bottleneck_forward.3} parent=27 // pred_fallthru
        _
    $region28: #{bottleneck_forward.3} parent=5 // pred_fallthru
      _
    %p162 = scmp.le.s32.totalorder 1, %s10
    %p163 = scmp.lt.s32.totalorder %s10, 3
    %p164 = pnand %p162, %p163
    %p165 = pneg %p164
    // Predicated region
    $region33: #{bottleneck_forward.3} parent=5 // pred_check
      _
    $region34: #{bottleneck_forward.3} parent=5 // pred_check_branch
      %167 = sbr.rel (%p164) target = $region36
    $region35: #{bottleneck_forward.3} parent=5 // pred_region
      %s168 = ssub.s32 %s10, 1
      %s169 = smul.u32 32, %s15
      %p170 = scmp.lt.s32.totalorder %s169, 63
      %s171 = scalar_select %p170, %s169, 63
      %s172 = smul.addr %s171, 4
      %s173 = scalar_lea.vmem %s0, %s172
      %p174 = pneg %p36
      %p175 = pneg %p33
      %p176 = pneg %p57
      %p177 = pneg %p54
      %p178 = pneg %p78
      %p179 = pneg %p75
      %p180 = pneg %p99
      %p181 = pneg %p96
      %p182 = pneg %p125
      %p183 = pneg %p122
      %s184 = smul.u32 32, %s15
      %p185 = scmp.lt.s32.totalorder %s184, 63
      %s186 = scalar_select %p185, %s184, 63
      %s187 = smul.addr %s186, 4
      %s188 = scalar_lea.vmem %s4, %s187
      %s189 = smul.u32 32, %s15
      %p190 = scmp.lt.s32.totalorder %s189, 63
      %s191 = scalar_select %p190, %s189, 63
      %s192 = smul.addr %s191, 4
      %s193 = scalar_lea.vmem %s0, %s192
      %s194 = smul.u32 32, %s15
      %s195 = smul.u32 32, %s15
      %p196 = scmp.lt.s32.totalorder %s195, 63
      %s197 = scalar_select %p196, %s195, 63
      %s198 = smul.addr %s197, 4
      %s199 = scalar_lea.vmem %s4, %s198
      %s200 = smul.u32 32, %s15
      %v202 = vld [vmem:[%s193] sm:$0xf]
      %v203 = vld [vmem:[%s193 + $0x4] sm:$0xf]
      %v204 = vld [vmem:[%s193 + $0x8] sm:$0xf]
      %v205 = vld [vmem:[%s193 + $0xc] sm:$0xf]
      %v206 = vld [vmem:[%s193 + $0x10] sm:$0xf]
      %v207 = vld [vmem:[%s193 + $0x14] sm:$0xf]
      %v208 = vld [vmem:[%s193 + $0x18] sm:$0xf]
      %v209 = vld [vmem:[%s193 + $0x1c] sm:$0xf]
      %v210 = vld [vmem:[%s193 + $0x20] sm:$0xf]
      %v211 = vld [vmem:[%s193 + $0x24] sm:$0xf]
      %v212 = vld [vmem:[%s193 + $0x28] sm:$0xf]
      %v213 = vld [vmem:[%s193 + $0x2c] sm:$0xf]
      %v214 = vld [vmem:[%s193 + $0x30] sm:$0xf]
      %v215 = vld [vmem:[%s193 + $0x34] sm:$0xf]
      %v216 = vld [vmem:[%s193 + $0x38] sm:$0xf]
      %v217 = vld [vmem:[%s193 + $0x3c] sm:$0xf]
      %v218 = vld [vmem:[%s193 + $0x40] sm:$0xf]
      %v219 = vld [vmem:[%s193 + $0x44] sm:$0xf]
      %v220 = vld [vmem:[%s193 + $0x48] sm:$0xf]
      %v221 = vld [vmem:[%s193 + $0x4c] sm:$0xf]
      %v222 = vld [vmem:[%s193 + $0x50] sm:$0xf]
      %v223 = vld [vmem:[%s193 + $0x54] sm:$0xf]
      %v224 = vld [vmem:[%s193 + $0x58] sm:$0xf]
      %v225 = vld [vmem:[%s193 + $0x5c] sm:$0xf]
      %v226 = vld [vmem:[%s193 + $0x60] sm:$0xf]
      %v227 = vld [vmem:[%s193 + $0x64] sm:$0xf]
      %v228 = vld [vmem:[%s193 + $0x68] sm:$0xf]
      %v229 = vld [vmem:[%s193 + $0x6c] sm:$0xf]
      %v230 = vld [vmem:[%s193 + $0x70] sm:$0xf]
      %v231 = vld [vmem:[%s193 + $0x74] sm:$0xf]
      %v232 = vld [vmem:[%s193 + $0x78] sm:$0xf]
      %v233 = vld [vmem:[%s193 + $0x7c] sm:$0xf]
      %v234 = vld [vmem:[%s1] sm:$0xf]
      %v235 = vld [vmem:[%s1 + $0x4] sm:$0xf]
      %v236 = vld [vmem:[%s1 + $0x8] sm:$0xf]
      %v237 = vld [vmem:[%s1 + $0xc] sm:$0xf]
      %v238 = vld [vmem:[%s1 + $0x10] sm:$0xf]
      %v239 = vld [vmem:[%s1 + $0x14] sm:$0xf]
      %v240 = vld [vmem:[%s1 + $0x18] sm:$0xf]
      %v241 = vld [vmem:[%s1 + $0x1c] sm:$0xf]
      %v242 = vld [vmem:[%s1 + $0x20] sm:$0xf]
      %v243 = vld [vmem:[%s1 + $0x24] sm:$0xf]
      %v244 = vld [vmem:[%s1 + $0x28] sm:$0xf]
      %v245 = vld [vmem:[%s1 + $0x2c] sm:$0xf]
      %v246 = vld [vmem:[%s1 + $0x30] sm:$0xf]
      %v247 = vld [vmem:[%s1 + $0x34] sm:$0xf]
      %v248 = vld [vmem:[%s1 + $0x38] sm:$0xf]
      %v249 = vld [vmem:[%s1 + $0x3c] sm:$0xf]
      %v282 = vunpack.c.l.b16 %v202
      %v283 = vunpack.c.l.b16 %v203
      %v284 = vunpack.c.l.b16 %v204
      %v285 = vunpack.c.l.b16 %v205
      %v286 = vunpack.c.l.b16 %v206
      %v287 = vunpack.c.l.b16 %v207
      %v288 = vunpack.c.l.b16 %v208
      %v289 = vunpack.c.l.b16 %v209
      %v290 = vunpack.c.l.b16 %v210
      %v291 = vunpack.c.l.b16 %v211
      %v292 = vunpack.c.l.b16 %v212
      %v293 = vunpack.c.l.b16 %v213
      %v294 = vunpack.c.l.b16 %v214
      %v295 = vunpack.c.l.b16 %v215
      %v296 = vunpack.c.l.b16 %v216
      %v297 = vunpack.c.l.b16 %v217
      %v298 = vunpack.c.l.b16 %v218
      %v299 = vunpack.c.l.b16 %v219
      %v300 = vunpack.c.l.b16 %v220
      %v301 = vunpack.c.l.b16 %v221
      %v302 = vunpack.c.l.b16 %v222
      %v303 = vunpack.c.l.b16 %v223
      %v304 = vunpack.c.l.b16 %v224
      %v305 = vunpack.c.l.b16 %v225
      %v306 = vunpack.c.l.b16 %v226
      %v307 = vunpack.c.l.b16 %v227
      %v308 = vunpack.c.l.b16 %v228
      %v309 = vunpack.c.l.b16 %v229
      %v310 = vunpack.c.l.b16 %v230
      %v311 = vunpack.c.l.b16 %v231
      %v312 = vunpack.c.l.b16 %v232
      %v313 = vunpack.c.l.b16 %v233
      %v314 = vpack.c.b16 %v283, %v282
      %v315 = vpack.c.b16 %v285, %v284
      %v316 = vpack.c.b16 %v287, %v286
      %v317 = vpack.c.b16 %v289, %v288
      %v318 = vpack.c.b16 %v291, %v290
      %v319 = vpack.c.b16 %v293, %v292
      %v320 = vpack.c.b16 %v295, %v294
      %v321 = vpack.c.b16 %v297, %v296
      %v322 = vpack.c.b16 %v299, %v298
      %v323 = vpack.c.b16 %v301, %v300
      %v324 = vpack.c.b16 %v303, %v302
      %v325 = vpack.c.b16 %v305, %v304
      %v326 = vpack.c.b16 %v307, %v306
      %v327 = vpack.c.b16 %v309, %v308
      %v328 = vpack.c.b16 %v311, %v310
      %v329 = vpack.c.b16 %v313, %v312
      %v362 = vunpack.c.l.b16 %v234
      %v363 = vunpack.c.l.b16 %v235
      %v364 = vunpack.c.l.b16 %v236
      %v365 = vunpack.c.l.b16 %v237
      %v366 = vunpack.c.l.b16 %v238
      %v367 = vunpack.c.l.b16 %v239
      %v368 = vunpack.c.l.b16 %v240
      %v369 = vunpack.c.l.b16 %v241
      %v370 = vunpack.c.l.b16 %v242
      %v371 = vunpack.c.l.b16 %v243
      %v372 = vunpack.c.l.b16 %v244
      %v373 = vunpack.c.l.b16 %v245
      %v374 = vunpack.c.l.b16 %v246
      %v375 = vunpack.c.l.b16 %v247
      %v376 = vunpack.c.l.b16 %v248
      %v377 = vunpack.c.l.b16 %v249
      %v378 = vpack.c.b16 %v363, %v362
      %v379 = vpack.c.b16 %v365, %v364
      %v380 = vpack.c.b16 %v367, %v366
      %v381 = vpack.c.b16 %v369, %v368
      %v382 = vpack.c.b16 %v371, %v370
      %v383 = vpack.c.b16 %v373, %v372
      %v384 = vpack.c.b16 %v375, %v374
      %v385 = vpack.c.b16 %v377, %v376
      %394 = vmatprep.subr.bf16.mxu0 0
      %395 = vmatpush1.bf16.msra.mxu0 %v378
      %396 = vmatprep.subr.bf16.mxu0 0
      %397 = vmatpush1.bf16.msra.mxu0 %v379
      %398 = vmatprep.subr.bf16.mxu0 0
      %399 = vmatpush1.bf16.msra.mxu0 %v380
      %400 = vmatprep.subr.bf16.mxu0 0
      %401 = vmatpush1.bf16.msra.mxu0 %v381
      %402 = vmatprep.subr.bf16.mxu0 0
      %403 = vmatpush1.bf16.msra.mxu0 %v382
      %404 = vmatprep.subr.bf16.mxu0 0
      %405 = vmatpush1.bf16.msra.mxu0 %v383
      %406 = vmatprep.subr.bf16.mxu0 0
      %407 = vmatpush1.bf16.msra.mxu0 %v384
      %408 = vmatprep.subr.bf16.mxu0 0
      %409 = vmatpush1.bf16.msra.mxu0 %v385
      %410 = vmatprep.subr.bf16.mxu0 0
      %411 = vmatpush1.bf16.msra.mxu0 0
      %412 = vmatprep.subr.bf16.mxu0 0
      %413 = vmatpush1.bf16.msra.mxu0 0
      %414 = vmatprep.subr.bf16.mxu0 0
      %415 = vmatpush1.bf16.msra.mxu0 0
      %416 = vmatprep.subr.bf16.mxu0 0
      %417 = vmatpush1.bf16.msra.mxu0 0
      %418 = vmatprep.subr.bf16.mxu0 0
      %419 = vmatpush1.bf16.msra.mxu0 0
      %420 = vmatprep.subr.bf16.mxu0 0
      %421 = vmatpush1.bf16.msra.mxu0 0
      %422 = vmatprep.subr.bf16.mxu0 0
      %423 = vmatpush1.bf16.msra.mxu0 0
      %424 = vmatprep.subr.bf16.mxu0 0
      %425 = vmatpush1.bf16.msra.mxu0 0
      %426 = vmatprep.mubr.bf16.mxu0 0
      %427 = vmatmul.mubr.bf16.gmra.mrb[0].mxu0 %v314
      %v428 = vpop.f32.mrb[0].mxu0
      %v429 = vadd.f32 0.0, %v428
      %v430 = vpop.f32.mrb[0].mxu0
      %v431 = vpop.f32.mrb[0].mxu0
      %v432 = vadd.f32 0.0, %v431
      %v433 = vpop.f32.mrb[0].mxu0
      %434 = vmatprep.mubr.bf16.mxu0 0
      %435 = vmatmul.mubr.bf16.gmra.mrb[0].mxu0 %v315
      %v436 = vpop.f32.mrb[0].mxu0
      %v437 = vadd.f32 0.0, %v436
      %v438 = vpop.f32.mrb[0].mxu0
      %v439 = vpop.f32.mrb[0].mxu0
      %v440 = vadd.f32 0.0, %v439
      %v441 = vpop.f32.mrb[0].mxu0
      %442 = vmatprep.mubr.bf16.mxu0 0
      %443 = vmatmul.mubr.bf16.gmra.mrb[0].mxu0 %v316
      %v444 = vpop.f32.mrb[0].mxu0
      %v445 = vadd.f32 0.0, %v444
      %v446 = vpop.f32.mrb[0].mxu0
      %v447 = vpop.f32.mrb[0].mxu0
      %v448 = vadd.f32 0.0, %v447
      %v449 = vpop.f32.mrb[0].mxu0
      %450 = vmatprep.mubr.bf16.mxu0 0
      %451 = vmatmul.mubr.bf16.gmra.mrb[0].mxu0 %v317
      %v452 = vpop.f32.mrb[0].mxu0
      %v453 = vadd.f32 0.0, %v452
      %v454 = vpop.f32.mrb[0].mxu0
      %v455 = vpop.f32.mrb[0].mxu0
      %v456 = vadd.f32 0.0, %v455
      %v457 = vpop.f32.mrb[0].mxu0
      %458 = vmatprep.mubr.bf16.mxu0 0
      %459 = vmatmul.mubr.bf16.gmra.mrb[0].mxu0 %v318
      %v460 = vpop.f32.mrb[0].mxu0
      %v461 = vadd.f32 0.0, %v460
      %v462 = vpop.f32.mrb[0].mxu0
      %v463 = vpop.f32.mrb[0].mxu0
      %v464 = vadd.f32 0.0, %v463
      %v465 = vpop.f32.mrb[0].mxu0
      %466 = vmatprep.mubr.bf16.mxu0 0
      %467 = vmatmul.mubr.bf16.gmra.mrb[0].mxu0 %v319
      %v468 = vpop.f32.mrb[0].mxu0
      %v469 = vadd.f32 0.0, %v468
      %v470 = vpop.f32.mrb[0].mxu0
      %v471 = vpop.f32.mrb[0].mxu0
      %v472 = vadd.f32 0.0, %v471
      %v473 = vpop.f32.mrb[0].mxu0
      %474 = vmatprep.mubr.bf16.mxu0 0
      %475 = vmatmul.mubr.bf16.gmra.mrb[0].mxu0 %v320
      %v476 = vpop.f32.mrb[0].mxu0
      %v477 = vadd.f32 0.0, %v476
      %v478 = vpop.f32.mrb[0].mxu0
      %v479 = vpop.f32.mrb[0].mxu0
      %v480 = vadd.f32 0.0, %v479
      %v481 = vpop.f32.mrb[0].mxu0
      %482 = vmatprep.mubr.bf16.mxu0 0
      %483 = vmatmul.mubr.bf16.gmra.mrb[0].mxu0 %v321
      %v484 = vpop.f32.mrb[0].mxu0
      %v485 = vadd.f32 0.0, %v484
      %v486 = vpop.f32.mrb[0].mxu0
      %v487 = vpop.f32.mrb[0].mxu0
      %v488 = vadd.f32 0.0, %v487
      %v489 = vpop.f32.mrb[0].mxu0
      %490 = vmatprep.mubr.bf16.mxu0 0
      %491 = vmatmul.mubr.bf16.gmra.mrb[0].mxu0 %v322
      %v492 = vpop.f32.mrb[0].mxu0
      %v493 = vadd.f32 0.0, %v492
      %v494 = vpop.f32.mrb[0].mxu0
      %v495 = vpop.f32.mrb[0].mxu0
      %v496 = vadd.f32 0.0, %v495
      %v497 = vpop.f32.mrb[0].mxu0
      %498 = vmatprep.mubr.bf16.mxu0 0
      %499 = vmatmul.mubr.bf16.gmra.mrb[0].mxu0 %v323
      %v500 = vpop.f32.mrb[0].mxu0
      %v501 = vadd.f32 0.0, %v500
      %v502 = vpop.f32.mrb[0].mxu0
      %v503 = vpop.f32.mrb[0].mxu0
      %v504 = vadd.f32 0.0, %v503
      %v505 = vpop.f32.mrb[0].mxu0
      %506 = vmatprep.mubr.bf16.mxu0 0
      %507 = vmatmul.mubr.bf16.gmra.mrb[0].mxu0 %v324
      %v508 = vpop.f32.mrb[0].mxu0
      %v509 = vadd.f32 0.0, %v508
      %v510 = vpop.f32.mrb[0].mxu0
      %v511 = vpop.f32.mrb[0].mxu0
      %v512 = vadd.f32 0.0, %v511
      %v513 = vpop.f32.mrb[0].mxu0
      %514 = vmatprep.mubr.bf16.mxu0 0
      %515 = vmatmul.mubr.bf16.gmra.mrb[0].mxu0 %v325
      %v516 = vpop.f32.mrb[0].mxu0
      %v517 = vadd.f32 0.0, %v516
      %v518 = vpop.f32.mrb[0].mxu0
      %v519 = vpop.f32.mrb[0].mxu0
      %v520 = vadd.f32 0.0, %v519
      %v521 = vpop.f32.mrb[0].mxu0
      %522 = vmatprep.mubr.bf16.mxu0 0
      %523 = vmatmul.mubr.bf16.gmra.mrb[0].mxu0 %v326
      %v524 = vpop.f32.mrb[0].mxu0
      %v525 = vadd.f32 0.0, %v524
      %v526 = vpop.f32.mrb[0].mxu0
      %v527 = vpop.f32.mrb[0].mxu0
      %v528 = vadd.f32 0.0, %v527
      %v529 = vpop.f32.mrb[0].mxu0
      %530 = vmatprep.mubr.bf16.mxu0 0
      %531 = vmatmul.mubr.bf16.gmra.mrb[0].mxu0 %v327
      %v532 = vpop.f32.mrb[0].mxu0
      %v533 = vadd.f32 0.0, %v532
      %v534 = vpop.f32.mrb[0].mxu0
      %v535 = vpop.f32.mrb[0].mxu0
      %v536 = vadd.f32 0.0, %v535
      %v537 = vpop.f32.mrb[0].mxu0
      %538 = vmatprep.mubr.bf16.mxu0 0
      %539 = vmatmul.mubr.bf16.gmra.mrb[0].mxu0 %v328
      %v540 = vpop.f32.mrb[0].mxu0
      %v541 = vadd.f32 0.0, %v540
      %v542 = vpop.f32.mrb[0].mxu0
      %v543 = vpop.f32.mrb[0].mxu0
      %v544 = vadd.f32 0.0, %v543
      %v545 = vpop.f32.mrb[0].mxu0
      %546 = vmatprep.mubr.bf16.mxu0 0
      %547 = vmatmul.mubr.bf16.gmra.mrb[0].mxu0 %v329
      %v548 = vpop.f32.mrb[0].mxu0
      %v549 = vadd.f32 0.0, %v548
      %v550 = vpop.f32.mrb[0].mxu0
      %v551 = vpop.f32.mrb[0].mxu0
      %v552 = vadd.f32 0.0, %v551
      %v553 = vpop.f32.mrb[0].mxu0
      %554 = vdwg.mxu0
      %v555 = vld [vmem:[%s2] sm:$0x1]
      %v557 = vlaneseq
      %v558 = vshrl.u32 %v557, 7
      %v559 = vsub.s32 0, %v558
      %v560 = vrot.slane %v555, %v559
      %v562 = vmul.f32 %v429, %v560
      %v563 = vmul.f32 %v432, %v560
      %v564 = vmul.f32 %v437, %v560
      %v565 = vmul.f32 %v440, %v560
      %v566 = vmul.f32 %v445, %v560
      %v567 = vmul.f32 %v448, %v560
      %v568 = vmul.f32 %v453, %v560
      %v569 = vmul.f32 %v456, %v560
      %v570 = vmul.f32 %v461, %v560
      %v571 = vmul.f32 %v464, %v560
      %v572 = vmul.f32 %v469, %v560
      %v573 = vmul.f32 %v472, %v560
      %v574 = vmul.f32 %v477, %v560
      %v575 = vmul.f32 %v480, %v560
      %v576 = vmul.f32 %v485, %v560
      %v577 = vmul.f32 %v488, %v560
      %v578 = vmul.f32 %v493, %v560
      %v579 = vmul.f32 %v496, %v560
      %v580 = vmul.f32 %v501, %v560
      %v581 = vmul.f32 %v504, %v560
      %v582 = vmul.f32 %v509, %v560
      %v583 = vmul.f32 %v512, %v560
      %v584 = vmul.f32 %v517, %v560
      %v585 = vmul.f32 %v520, %v560
      %v586 = vmul.f32 %v525, %v560
      %v587 = vmul.f32 %v528, %v560
      %v588 = vmul.f32 %v533, %v560
      %v589 = vmul.f32 %v536, %v560
      %v590 = vmul.f32 %v541, %v560
      %v591 = vmul.f32 %v544, %v560
      %v592 = vmul.f32 %v549, %v560
      %v593 = vmul.f32 %v552, %v560
      %v594 = vld [vmem:[%s3] sm:$0x1]
      %v596 = vlaneseq
      %v597 = vshrl.u32 %v596, 7
      %v598 = vsub.s32 0, %v597
      %v599 = vrot.slane %v594, %v598
      %v601 = vadd.f32 %v562, %v599
      %v602 = vadd.f32 %v563, %v599
      %v603 = vadd.f32 %v564, %v599
      %v604 = vadd.f32 %v565, %v599
      %v605 = vadd.f32 %v566, %v599
      %v606 = vadd.f32 %v567, %v599
      %v607 = vadd.f32 %v568, %v599
      %v608 = vadd.f32 %v569, %v599
      %v609 = vadd.f32 %v570, %v599
      %v610 = vadd.f32 %v571, %v599
      %v611 = vadd.f32 %v572, %v599
      %v612 = vadd.f32 %v573, %v599
      %v613 = vadd.f32 %v574, %v599
      %v614 = vadd.f32 %v575, %v599
      %v615 = vadd.f32 %v576, %v599
      %v616 = vadd.f32 %v577, %v599
      %v617 = vadd.f32 %v578, %v599
      %v618 = vadd.f32 %v579, %v599
      %v619 = vadd.f32 %v580, %v599
      %v620 = vadd.f32 %v581, %v599
      %v621 = vadd.f32 %v582, %v599
      %v622 = vadd.f32 %v583, %v599
      %v623 = vadd.f32 %v584, %v599
      %v624 = vadd.f32 %v585, %v599
      %v625 = vadd.f32 %v586, %v599
      %v626 = vadd.f32 %v587, %v599
      %v627 = vadd.f32 %v588, %v599
      %v628 = vadd.f32 %v589, %v599
      %v629 = vadd.f32 %v590, %v599
      %v630 = vadd.f32 %v591, %v599
      %v631 = vadd.f32 %v592, %v599
      %v632 = vadd.f32 %v593, %v599
      %v633 = vmax.f32 %v601, 0.0
      %v634 = vmax.f32 %v602, 0.0
      %v635 = vmax.f32 %v603, 0.0
      %v636 = vmax.f32 %v604, 0.0
      %v637 = vmax.f32 %v605, 0.0
      %v638 = vmax.f32 %v606, 0.0
      %v639 = vmax.f32 %v607, 0.0
      %v640 = vmax.f32 %v608, 0.0
      %v641 = vmax.f32 %v609, 0.0
      %v642 = vmax.f32 %v610, 0.0
      %v643 = vmax.f32 %v611, 0.0
      %v644 = vmax.f32 %v612, 0.0
      %v645 = vmax.f32 %v613, 0.0
      %v646 = vmax.f32 %v614, 0.0
      %v647 = vmax.f32 %v615, 0.0
      %v648 = vmax.f32 %v616, 0.0
      %v649 = vmax.f32 %v617, 0.0
      %v650 = vmax.f32 %v618, 0.0
      %v651 = vmax.f32 %v619, 0.0
      %v652 = vmax.f32 %v620, 0.0
      %v653 = vmax.f32 %v621, 0.0
      %v654 = vmax.f32 %v622, 0.0
      %v655 = vmax.f32 %v623, 0.0
      %v656 = vmax.f32 %v624, 0.0
      %v657 = vmax.f32 %v625, 0.0
      %v658 = vmax.f32 %v626, 0.0
      %v659 = vmax.f32 %v627, 0.0
      %v660 = vmax.f32 %v628, 0.0
      %v661 = vmax.f32 %v629, 0.0
      %v662 = vmax.f32 %v630, 0.0
      %v663 = vmax.f32 %v631, 0.0
      %v664 = vmax.f32 %v632, 0.0
      %v665 = vpack.c.bf16 %v634, %v633
      %v666 = vpack.c.bf16 %v636, %v635
      %v667 = vpack.c.bf16 %v638, %v637
      %v668 = vpack.c.bf16 %v640, %v639
      %v669 = vpack.c.bf16 %v642, %v641
      %v670 = vpack.c.bf16 %v644, %v643
      %v671 = vpack.c.bf16 %v646, %v645
      %v672 = vpack.c.bf16 %v648, %v647
      %v673 = vpack.c.bf16 %v650, %v649
      %v674 = vpack.c.bf16 %v652, %v651
      %v675 = vpack.c.bf16 %v654, %v653
      %v676 = vpack.c.bf16 %v656, %v655
      %v677 = vpack.c.bf16 %v658, %v657
      %v678 = vpack.c.bf16 %v660, %v659
      %v679 = vpack.c.bf16 %v662, %v661
      %v680 = vpack.c.bf16 %v664, %v663
      %v697 = vunpack.c.l.b16 %v665
      %v698 = vunpack.c.h.b16 %v665
      %v699 = vunpack.c.l.b16 %v666
      %v700 = vunpack.c.h.b16 %v666
      %v701 = vunpack.c.l.b16 %v667
      %v702 = vunpack.c.h.b16 %v667
      %v703 = vunpack.c.l.b16 %v668
      %v704 = vunpack.c.h.b16 %v668
      %v705 = vunpack.c.l.b16 %v669
      %v706 = vunpack.c.h.b16 %v669
      %v707 = vunpack.c.l.b16 %v670
      %v708 = vunpack.c.h.b16 %v670
      %v709 = vunpack.c.l.b16 %v671
      %v710 = vunpack.c.h.b16 %v671
      %v711 = vunpack.c.l.b16 %v672
      %v712 = vunpack.c.h.b16 %v672
      %v713 = vunpack.c.l.b16 %v673
      %v714 = vunpack.c.h.b16 %v673
      %v715 = vunpack.c.l.b16 %v674
      %v716 = vunpack.c.h.b16 %v674
      %v717 = vunpack.c.l.b16 %v675
      %v718 = vunpack.c.h.b16 %v675
      %v719 = vunpack.c.l.b16 %v676
      %v720 = vunpack.c.h.b16 %v676
      %v721 = vunpack.c.l.b16 %v677
      %v722 = vunpack.c.h.b16 %v677
      %v723 = vunpack.c.l.b16 %v678
      %v724 = vunpack.c.h.b16 %v678
      %v725 = vunpack.c.l.b16 %v679
      %v726 = vunpack.c.h.b16 %v679
      %v727 = vunpack.c.l.b16 %v680
      %v728 = vunpack.c.h.b16 %v680
      %v729 = vpack.c.b16 %v697, %v697
      %v730 = vpack.c.b16 %v698, %v698
      %v731 = vpack.c.b16 %v699, %v699
      %v732 = vpack.c.b16 %v700, %v700
      %v733 = vpack.c.b16 %v701, %v701
      %v734 = vpack.c.b16 %v702, %v702
      %v735 = vpack.c.b16 %v703, %v703
      %v736 = vpack.c.b16 %v704, %v704
      %v737 = vpack.c.b16 %v705, %v705
      %v738 = vpack.c.b16 %v706, %v706
      %v739 = vpack.c.b16 %v707, %v707
      %v740 = vpack.c.b16 %v708, %v708
      %v741 = vpack.c.b16 %v709, %v709
      %v742 = vpack.c.b16 %v710, %v710
      %v743 = vpack.c.b16 %v711, %v711
      %v744 = vpack.c.b16 %v712, %v712
      %v745 = vpack.c.b16 %v713, %v713
      %v746 = vpack.c.b16 %v714, %v714
      %v747 = vpack.c.b16 %v715, %v715
      %v748 = vpack.c.b16 %v716, %v716
      %v749 = vpack.c.b16 %v717, %v717
      %v750 = vpack.c.b16 %v718, %v718
      %v751 = vpack.c.b16 %v719, %v719
      %v752 = vpack.c.b16 %v720, %v720
      %v753 = vpack.c.b16 %v721, %v721
      %v754 = vpack.c.b16 %v722, %v722
      %v755 = vpack.c.b16 %v723, %v723
      %v756 = vpack.c.b16 %v724, %v724
      %v757 = vpack.c.b16 %v725, %v725
      %v758 = vpack.c.b16 %v726, %v726
      %v759 = vpack.c.b16 %v727, %v727
      %v760 = vpack.c.b16 %v728, %v728
      %793 = vst [vmem:[%s199] sm:$0xf] %v729
      %794 = vst [vmem:[%s199 + $0x4] sm:$0xf] %v730
      %795 = vst [vmem:[%s199 + $0x8] sm:$0xf] %v731
      %796 = vst [vmem:[%s199 + $0xc] sm:$0xf] %v732
      %797 = vst [vmem:[%s199 + $0x10] sm:$0xf] %v733
      %798 = vst [vmem:[%s199 + $0x14] sm:$0xf] %v734
      %799 = vst [vmem:[%s199 + $0x18] sm:$0xf] %v735
      %800 = vst [vmem:[%s199 + $0x1c] sm:$0xf] %v736
      %801 = vst [vmem:[%s199 + $0x20] sm:$0xf] %v737
      %802 = vst [vmem:[%s199 + $0x24] sm:$0xf] %v738
      %803 = vst [vmem:[%s199 + $0x28] sm:$0xf] %v739
      %804 = vst [vmem:[%s199 + $0x2c] sm:$0xf] %v740
      %805 = vst [vmem:[%s199 + $0x30] sm:$0xf] %v741
      %806 = vst [vmem:[%s199 + $0x34] sm:$0xf] %v742
      %807 = vst [vmem:[%s199 + $0x38] sm:$0xf] %v743
      %808 = vst [vmem:[%s199 + $0x3c] sm:$0xf] %v744
      %809 = vst [vmem:[%s199 + $0x40] sm:$0xf] %v745
      %810 = vst [vmem:[%s199 + $0x44] sm:$0xf] %v746
      %811 = vst [vmem:[%s199 + $0x48] sm:$0xf] %v747
      %812 = vst [vmem:[%s199 + $0x4c] sm:$0xf] %v748
      %813 = vst [vmem:[%s199 + $0x50] sm:$0xf] %v749
      %814 = vst [vmem:[%s199 + $0x54] sm:$0xf] %v750
      %815 = vst [vmem:[%s199 + $0x58] sm:$0xf] %v751
      %816 = vst [vmem:[%s199 + $0x5c] sm:$0xf] %v752
      %817 = vst [vmem:[%s199 + $0x60] sm:$0xf] %v753
      %818 = vst [vmem:[%s199 + $0x64] sm:$0xf] %v754
      %819 = vst [vmem:[%s199 + $0x68] sm:$0xf] %v755
      %820 = vst [vmem:[%s199 + $0x6c] sm:$0xf] %v756
      %821 = vst [vmem:[%s199 + $0x70] sm:$0xf] %v757
      %822 = vst [vmem:[%s199 + $0x74] sm:$0xf] %v758
      %823 = vst [vmem:[%s199 + $0x78] sm:$0xf] %v759
      %824 = vst [vmem:[%s199 + $0x7c] sm:$0xf] %v760
      %s825 = smul.u32 32, %s15
      %p826 = scmp.lt.s32.totalorder %s825, 63
      %s827 = scalar_select %p826, %s825, 63
      %s828 = smul.addr %s827, 4
      %s829 = scalar_lea.vmem %s4, %s828
      // Predicated region
      $region37: #{bottleneck_forward.3} parent=35 // pred_check
        %p830 = pneg %p122
      $region38: #{bottleneck_forward.3} parent=35 // pred_check_branch
        %832 = sbr.rel (%p830) target = $region40
      $region39: #{bottleneck_forward.3} parent=35 // pred_region
        %s833 = smul.u32 32, %s15
      $region40: #{bottleneck_forward.3} parent=35 // pred_fallthru
        _
    $region36: #{bottleneck_forward.3} parent=5 // pred_fallthru
      _
    %p834 = scmp.le.s32.totalorder 2, %s10
    // Predicated region
    $region41: #{bottleneck_forward.3} parent=5 // pred_check
      %p835 = pneg %p834
    $region42: #{bottleneck_forward.3} parent=5 // pred_check_branch
      %837 = sbr.rel (%p835) target = $region44
    $region43: #{bottleneck_forward.3} parent=5 // pred_region
      %s838 = ssub.s32 %s10, 2
      // Predicated region
      $region45: #{bottleneck_forward.3} parent=43 // pred_check
        %p839 = pneg %p128
      $region46: #{bottleneck_forward.3} parent=43 // pred_check_branch
        %841 = sbr.rel (%p839) target = $region48
      $region47: #{bottleneck_forward.3} parent=43 // pred_region
        %s842 = smul.u32 32, %s16
        %p843 = scmp.lt.s32.totalorder %s842, 63
        %s844 = scalar_select %p843, %s842, 63
        %s845 = smul.addr %s844, 4
        %s846 = scalar_lea.vmem %s4, %s845
      $region48: #{bottleneck_forward.3} parent=43 // pred_fallthru
        _
    $region44: #{bottleneck_forward.3} parent=5 // pred_fallthru
      _
  $region6: #{bottleneck_forward.3} parent=0 // loop_footer
    %s14 = sadd.s32 1, %s10
  $region7: #{bottleneck_forward.3} parent=0 // loop_footer_branch
    %9 = sbr.rel target = $region3
  $region8: #{bottleneck_forward.3} parent=0 // loop_exit
    _

// kernel: bottleneck_forward.5
$region0: #{bottleneck_forward.5}
  #allocation0 [shape = 'u32[]', space=smem, size = 0x4, offset = 0x4, fixed_abs, tag = 'smem constant byte address 0x4 - core index']
  #allocation1 [shape = 'u32[144,128]{1,0:T(1,128)}', space=vmem, size = 0x12000, scoped, tag = 'internal scratch']
  %s0 = inlined_call_operand.vmem [shape: bf16[512,128], index: 0, kind: input, shape index: {}]
  %s1 = inlined_call_operand.vmem [shape: bf16[128,128], index: 1, kind: input, shape index: {}]
  %s2 = inlined_call_operand.vmem [shape: f32[1,128], index: 2, kind: input, shape index: {}]
  %s3 = inlined_call_operand.vmem [shape: f32[1,128], index: 3, kind: input, shape index: {}]
  %s4 = inlined_call_operand.vmem [shape: bf16[512,128], index: 4, kind: input, shape index: {}]
  %s5 = inlined_call_operand.vmem [shape: bf16[128,128], index: 5, kind: input, shape index: {}]
  %s6 = inlined_call_operand.vmem [shape: f32[1,128], index: 6, kind: input, shape index: {}]
  %s7 = inlined_call_operand.vmem [shape: f32[1,128], index: 7, kind: input, shape index: {}]
  %s8 = inlined_call_operand.vmem [shape: f32[512,128], index: 8, kind: output, shape index: {}]
  %s9 = sld [smem:[#allocation0]]
  $region65: #{bottleneck_forward.5} parent=0
    _
  %s11 = ssub.s32 1, %s9
  %s12 = scalar_select 0, %s11, %s9
  loop: start=0, step=1, limit=4
  $region2: #{bottleneck_forward.5} parent=0 // loop_pre_header
    _
  $region3: #{bottleneck_forward.5} parent=0 // loop_header
    %s14 = sphi 0, %s18
    %p15 = scmp.ge.s32.totalorder %s14, 4
    %s24 = sphi 0, %s26
    %s27 = sphi 0, %s24
    %s28 = sphi 0, %s27
    %s44 = sphi 0, %s28
    %s48 = sphi 0, %s48
    %s50 = sphi 0, %s48
    %s51 = sphi 0, %s50
    %s65 = sphi 0, %s51
    %s69 = sphi 0, %s69
    %s71 = sphi 0, %s69
    %s72 = sphi 0, %s71
    %s86 = sphi 0, %s72
    %s90 = sphi 0, %s90
    %s92 = sphi 0, %s90
    %s93 = sphi 0, %s92
    %s107 = sphi 0, %s93
    %s113 = sphi 0, %s115
    %s116 = sphi 0, %s113
    %s117 = sphi 0, %s116
    %s133 = sphi 0, %s117
    %s137 = sphi 0, %s137
    %s139 = sphi 0, %s137
    %s140 = sphi 0, %s139
    %s154 = sphi 0, %s140
    %s158 = sphi 0, %s158
    %s160 = sphi 0, %s158
    %s161 = sphi 0, %s160
    %s175 = sphi 0, %s161
    %s179 = sphi 0, %s179
    %s181 = sphi 0, %s179
    %s182 = sphi 0, %s181
    %s196 = sphi 0, %s182
    %s202 = sphi 0, %s204
    %s205 = sphi 0, %s202
    %s206 = sphi 0, %s205
    %s222 = sphi 0, %s206
  $region4: #{bottleneck_forward.5} parent=0 // loop_header_branch
    %17 = sbr.rel (%p15) target = $region8
  $region5: #{bottleneck_forward.5} parent=0 // loop_body
    %s19 = ssub.s32 %s14, 1
    %s20 = ssub.s32 %s14, 2
    %s21 = sadd.s32 %s14, 1
    %s22 = ssub.s32 %s14, %s21
    %p23 = scmp.eq.s32.totalorder %s22, 0
    %s25 = sadd.s32 %s24, 1
    %s26 = scalar_select %p23, %s24, %s25
    %p29 = pneg %p23
    %p30 = scmp.eq.s32.totalorder %s14, 1
    %p31 = por %p29, %p30
    %p32 = scmp.ne.s32.totalorder %s24, %s27
    %p33 = scmp.eq.s32.totalorder %s14, 0
    %p34 = por %p32, %p33
    %p35 = scmp.ne.s32.totalorder %s24, %s27
    %p36 = scmp.eq.s32.totalorder %s19, 1
    %p37 = por %p35, %p36
    %p38 = scmp.ne.s32.totalorder %s27, %s28
    %p39 = scmp.eq.s32.totalorder %s19, 0
    %p40 = por %p38, %p39
    %p41 = scmp.ne.s32.totalorder %s27, %s28
    %p42 = scmp.eq.s32.totalorder %s20, 1
    %p43 = por %p41, %p42
    %p45 = scmp.ne.s32.totalorder %s28, %s44
    %p46 = scmp.eq.s32.totalorder %s20, 0
    %p47 = por %p45, %p46
    %s49 = sadd.s32 %s48, 1
    %p52 = scmp.eq.s32.totalorder %s14, 1
    %p53 = scmp.ne.s32.totalorder %s48, %s50
    %p54 = scmp.eq.s32.totalorder %s14, 0
    %p55 = por %p53, %p54
    %p56 = scmp.ne.s32.totalorder %s48, %s50
    %p57 = scmp.eq.s32.totalorder %s19, 1
    %p58 = por %p56, %p57
    %p59 = scmp.ne.s32.totalorder %s50, %s51
    %p60 = scmp.eq.s32.totalorder %s19, 0
    %p61 = por %p59, %p60
    %p62 = scmp.ne.s32.totalorder %s50, %s51
    %p63 = scmp.eq.s32.totalorder %s20, 1
    %p64 = por %p62, %p63
    %p66 = scmp.ne.s32.totalorder %s51, %s65
    %p67 = scmp.eq.s32.totalorder %s20, 0
    %p68 = por %p66, %p67
    %s70 = sadd.s32 %s69, 1
    %p73 = scmp.eq.s32.totalorder %s14, 1
    %p74 = scmp.ne.s32.totalorder %s69, %s71
    %p75 = scmp.eq.s32.totalorder %s14, 0
    %p76 = por %p74, %p75
    %p77 = scmp.ne.s32.totalorder %s69, %s71
    %p78 = scmp.eq.s32.totalorder %s19, 1
    %p79 = por %p77, %p78
    %p80 = scmp.ne.s32.totalorder %s71, %s72
    %p81 = scmp.eq.s32.totalorder %s19, 0
    %p82 = por %p80, %p81
    %p83 = scmp.ne.s32.totalorder %s71, %s72
    %p84 = scmp.eq.s32.totalorder %s20, 1
    %p85 = por %p83, %p84
    %p87 = scmp.ne.s32.totalorder %s72, %s86
    %p88 = scmp.eq.s32.totalorder %s20, 0
    %p89 = por %p87, %p88
    %s91 = sadd.s32 %s90, 1
    %p94 = scmp.eq.s32.totalorder %s14, 1
    %p95 = scmp.ne.s32.totalorder %s90, %s92
    %p96 = scmp.eq.s32.totalorder %s14, 0
    %p97 = por %p95, %p96
    %p98 = scmp.ne.s32.totalorder %s90, %s92
    %p99 = scmp.eq.s32.totalorder %s19, 1
    %p100 = por %p98, %p99
    %p101 = scmp.ne.s32.totalorder %s92, %s93
    %p102 = scmp.eq.s32.totalorder %s19, 0
    %p103 = por %p101, %p102
    %p104 = scmp.ne.s32.totalorder %s92, %s93
    %p105 = scmp.eq.s32.totalorder %s20, 1
    %p106 = por %p104, %p105
    %p108 = scmp.ne.s32.totalorder %s93, %s107
    %p109 = scmp.eq.s32.totalorder %s20, 0
    %p110 = por %p108, %p109
    %s111 = ssub.s32 %s14, %s21
    %p112 = scmp.eq.s32.totalorder %s111, 0
    %s114 = sadd.s32 %s113, 1
    %s115 = scalar_select %p112, %s113, %s114
    %p118 = pneg %p112
    %p119 = scmp.eq.s32.totalorder %s14, 1
    %p120 = por %p118, %p119
    %p121 = scmp.ne.s32.totalorder %s113, %s116
    %p122 = scmp.eq.s32.totalorder %s14, 0
    %p123 = por %p121, %p122
    %p124 = scmp.ne.s32.totalorder %s113, %s116
    %p125 = scmp.eq.s32.totalorder %s19, 1
    %p126 = por %p124, %p125
    %p127 = scmp.ne.s32.totalorder %s116, %s117
    %p128 = scmp.eq.s32.totalorder %s19, 0
    %p129 = por %p127, %p128
    %p130 = scmp.ne.s32.totalorder %s116, %s117
    %p131 = scmp.eq.s32.totalorder %s20, 1
    %p132 = por %p130, %p131
    %p134 = scmp.ne.s32.totalorder %s117, %s133
    %p135 = scmp.eq.s32.totalorder %s20, 0
    %p136 = por %p134, %p135
    %s138 = sadd.s32 %s137, 1
    %p141 = scmp.eq.s32.totalorder %s14, 1
    %p142 = scmp.ne.s32.totalorder %s137, %s139
    %p143 = scmp.eq.s32.totalorder %s14, 0
    %p144 = por %p142, %p143
    %p145 = scmp.ne.s32.totalorder %s137, %s139
    %p146 = scmp.eq.s32.totalorder %s19, 1
    %p147 = por %p145, %p146
    %p148 = scmp.ne.s32.totalorder %s139, %s140
    %p149 = scmp.eq.s32.totalorder %s19, 0
    %p150 = por %p148, %p149
    %p151 = scmp.ne.s32.totalorder %s139, %s140
    %p152 = scmp.eq.s32.totalorder %s20, 1
    %p153 = por %p151, %p152
    %p155 = scmp.ne.s32.totalorder %s140, %s154
    %p156 = scmp.eq.s32.totalorder %s20, 0
    %p157 = por %p155, %p156
    %s159 = sadd.s32 %s158, 1
    %p162 = scmp.eq.s32.totalorder %s14, 1
    %p163 = scmp.ne.s32.totalorder %s158, %s160
    %p164 = scmp.eq.s32.totalorder %s14, 0
    %p165 = por %p163, %p164
    %p166 = scmp.ne.s32.totalorder %s158, %s160
    %p167 = scmp.eq.s32.totalorder %s19, 1
    %p168 = por %p166, %p167
    %p169 = scmp.ne.s32.totalorder %s160, %s161
    %p170 = scmp.eq.s32.totalorder %s19, 0
    %p171 = por %p169, %p170
    %p172 = scmp.ne.s32.totalorder %s160, %s161
    %p173 = scmp.eq.s32.totalorder %s20, 1
    %p174 = por %p172, %p173
    %p176 = scmp.ne.s32.totalorder %s161, %s175
    %p177 = scmp.eq.s32.totalorder %s20, 0
    %p178 = por %p176, %p177
    %s180 = sadd.s32 %s179, 1
    %p183 = scmp.eq.s32.totalorder %s14, 1
    %p184 = scmp.ne.s32.totalorder %s179, %s181
    %p185 = scmp.eq.s32.totalorder %s14, 0
    %p186 = por %p184, %p185
    %p187 = scmp.ne.s32.totalorder %s179, %s181
    %p188 = scmp.eq.s32.totalorder %s19, 1
    %p189 = por %p187, %p188
    %p190 = scmp.ne.s32.totalorder %s181, %s182
    %p191 = scmp.eq.s32.totalorder %s19, 0
    %p192 = por %p190, %p191
    %p193 = scmp.ne.s32.totalorder %s181, %s182
    %p194 = scmp.eq.s32.totalorder %s20, 1
    %p195 = por %p193, %p194
    %p197 = scmp.ne.s32.totalorder %s182, %s196
    %p198 = scmp.eq.s32.totalorder %s20, 0
    %p199 = por %p197, %p198
    %s200 = ssub.s32 %s14, %s21
    %p201 = scmp.eq.s32.totalorder %s200, 0
    %s203 = sadd.s32 %s202, 1
    %s204 = scalar_select %p201, %s202, %s203
    %p207 = pneg %p201
    %p208 = scmp.eq.s32.totalorder %s14, 1
    %p209 = por %p207, %p208
    %p210 = scmp.ne.s32.totalorder %s202, %s205
    %p211 = scmp.eq.s32.totalorder %s14, 0
    %p212 = por %p210, %p211
    %p213 = scmp.ne.s32.totalorder %s202, %s205
    %p214 = scmp.eq.s32.totalorder %s19, 1
    %p215 = por %p213, %p214
    %p216 = scmp.ne.s32.totalorder %s205, %s206
    %p217 = scmp.eq.s32.totalorder %s19, 0
    %p218 = por %p216, %p217
    %p219 = scmp.ne.s32.totalorder %s205, %s206
    %p220 = scmp.eq.s32.totalorder %s20, 1
    %p221 = por %p219, %p220
    %p223 = scmp.ne.s32.totalorder %s206, %s222
    %p224 = scmp.eq.s32.totalorder %s20, 0
    %p225 = por %p223, %p224
    %p226 = scmp.le.s32.totalorder 1, %s14
    %p227 = scmp.lt.s32.totalorder %s14, 3
    %p228 = pnand %p226, %p227
    %p229 = pneg %p228
    // Predicated region
    $region9: #{bottleneck_forward.5} parent=5 // pred_check
      _
    $region10: #{bottleneck_forward.5} parent=5 // pred_check_branch
      %231 = sbr.rel (%p228) target = $region12
    $region11: #{bottleneck_forward.5} parent=5 // pred_region
      %s232 = ssub.s32 %s14, 1
      // Predicated region
      $region13: #{bottleneck_forward.5} parent=11 // pred_check
        %p233 = pneg %p61
      $region14: #{bottleneck_forward.5} parent=11 // pred_check_branch
        %235 = sbr.rel (%p233) target = $region16
      $region15: #{bottleneck_forward.5} parent=11 // pred_region
        _
      $region16: #{bottleneck_forward.5} parent=11 // pred_fallthru
        _
      // Predicated region
      $region17: #{bottleneck_forward.5} parent=11 // pred_check
        %p236 = pneg %p82
      $region18: #{bottleneck_forward.5} parent=11 // pred_check_branch
        %238 = sbr.rel (%p236) target = $region20
      $region19: #{bottleneck_forward.5} parent=11 // pred_region
        _
      $region20: #{bottleneck_forward.5} parent=11 // pred_fallthru
        _
      // Predicated region
      $region21: #{bottleneck_forward.5} parent=11 // pred_check
        %p239 = pneg %p103
      $region22: #{bottleneck_forward.5} parent=11 // pred_check_branch
        %241 = sbr.rel (%p239) target = $region24
      $region23: #{bottleneck_forward.5} parent=11 // pred_region
        _
      $region24: #{bottleneck_forward.5} parent=11 // pred_fallthru
        _
      // Predicated region
      $region25: #{bottleneck_forward.5} parent=11 // pred_check
        %p242 = pneg %p150
      $region26: #{bottleneck_forward.5} parent=11 // pred_check_branch
        %244 = sbr.rel (%p242) target = $region28
      $region27: #{bottleneck_forward.5} parent=11 // pred_region
        _
      $region28: #{bottleneck_forward.5} parent=11 // pred_fallthru
        _
      // Predicated region
      $region29: #{bottleneck_forward.5} parent=11 // pred_check
        %p245 = pneg %p171
      $region30: #{bottleneck_forward.5} parent=11 // pred_check_branch
        %247 = sbr.rel (%p245) target = $region32
      $region31: #{bottleneck_forward.5} parent=11 // pred_region
        _
      $region32: #{bottleneck_forward.5} parent=11 // pred_fallthru
        _
      // Predicated region
      $region33: #{bottleneck_forward.5} parent=11 // pred_check
        %p248 = pneg %p192
      $region34: #{bottleneck_forward.5} parent=11 // pred_check_branch
        %250 = sbr.rel (%p248) target = $region36
      $region35: #{bottleneck_forward.5} parent=11 // pred_region
        _
      $region36: #{bottleneck_forward.5} parent=11 // pred_fallthru
        _
    $region12: #{bottleneck_forward.5} parent=5 // pred_fallthru
      _
    %p251 = scmp.lt.s32.totalorder %s14, 2
    // Predicated region
    $region37: #{bottleneck_forward.5} parent=5 // pred_check
      %p252 = pneg %p251
    $region38: #{bottleneck_forward.5} parent=5 // pred_check_branch
      %254 = sbr.rel (%p252) target = $region40
    $region39: #{bottleneck_forward.5} parent=5 // pred_region
      // Predicated region
      $region41: #{bottleneck_forward.5} parent=39 // pred_check
        %p255 = pneg %p34
      $region42: #{bottleneck_forward.5} parent=39 // pred_check_branch
        %257 = sbr.rel (%p255) target = $region44
      $region43: #{bottleneck_forward.5} parent=39 // pred_region
        %s258 = smul.u32 32, %s14
        %p259 = scmp.lt.s32.totalorder %s258, 63
        %s260 = scalar_select %p259, %s258, 63
        %s261 = smul.addr %s260, 4
        %s262 = scalar_lea.vmem %s0, %s261
        %s263 = smul.u32 32, %s14
      $region44: #{bottleneck_forward.5} parent=39 // pred_fallthru
        _
      // Predicated region
      $region45: #{bottleneck_forward.5} parent=39 // pred_check
        %p264 = pneg %p123
      $region46: #{bottleneck_forward.5} parent=39 // pred_check_branch
        %266 = sbr.rel (%p264) target = $region48
      $region47: #{bottleneck_forward.5} parent=39 // pred_region
        %s267 = smul.u32 32, %s14
        %p268 = scmp.lt.s32.totalorder %s267, 63
        %s269 = scalar_select %p268, %s267, 63
        %s270 = smul.addr %s269, 4
        %s271 = scalar_lea.vmem %s4, %s270
        %s272 = smul.u32 32, %s14
      $region48: #{bottleneck_forward.5} parent=39 // pred_fallthru
        _
    $region40: #{bottleneck_forward.5} parent=5 // pred_fallthru
      _
    %p273 = scmp.le.s32.totalorder 1, %s14
    %p274 = scmp.lt.s32.totalorder %s14, 3
    %p275 = pnand %p273, %p274
    %p276 = pneg %p275
    // Predicated region
    $region49: #{bottleneck_forward.5} parent=5 // pred_check
      _
    $region50: #{bottleneck_forward.5} parent=5 // pred_check_branch
      %278 = sbr.rel (%p275) target = $region52
    $region51: #{bottleneck_forward.5} parent=5 // pred_region
      %s279 = ssub.s32 %s14, 1
      %s280 = smul.u32 32, %s19
      %p281 = scmp.lt.s32.totalorder %s280, 63
      %s282 = scalar_select %p281, %s280, 63
      %s283 = smul.addr %s282, 4
      %s284 = scalar_lea.vmem %s0, %s283
      %p285 = pneg %p40
      %p286 = pneg %p37
      %p287 = pneg %p61
      %p288 = pneg %p58
      %p289 = pneg %p82
      %p290 = pneg %p79
      %p291 = pneg %p103
      %p292 = pneg %p100
      %s293 = smul.u32 32, %s19
      %p294 = scmp.lt.s32.totalorder %s293, 63
      %s295 = scalar_select %p294, %s293, 63
      %s296 = smul.addr %s295, 4
      %s297 = scalar_lea.vmem %s4, %s296
      %p298 = pneg %p129
      %p299 = pneg %p126
      %p300 = pneg %p150
      %p301 = pneg %p147
      %p302 = pneg %p171
      %p303 = pneg %p168
      %p304 = pneg %p192
      %p305 = pneg %p189
      %p306 = pneg %p218
      %p307 = pneg %p215
      %s308 = smul.u32 32, %s19
      %p309 = scmp.lt.s32.totalorder %s308, 63
      %s310 = scalar_select %p309, %s308, 63
      %s311 = smul.addr %s310, 8
      %s312 = scalar_lea.vmem %s8, %s311
      %s313 = smul.u32 32, %s19
      %p314 = scmp.lt.s32.totalorder %s313, 63
      %s315 = scalar_select %p314, %s313, 63
      %s316 = smul.addr %s315, 4
      %s317 = scalar_lea.vmem %s0, %s316
      %s318 = smul.u32 32, %s19
      %s319 = smul.u32 32, %s19
      %p320 = scmp.lt.s32.totalorder %s319, 63
      %s321 = scalar_select %p320, %s319, 63
      %s322 = smul.addr %s321, 4
      %s323 = scalar_lea.vmem %s4, %s322
      %s324 = smul.u32 32, %s19
      %s325 = smul.u32 32, %s19
      %p326 = scmp.lt.s32.totalorder %s325, 63
      %s327 = scalar_select %p326, %s325, 63
      %s328 = smul.addr %s327, 8
      %s329 = scalar_lea.vmem %s8, %s328
      %s330 = smul.u32 32, %s19
      %v332 = vld [vmem:[%s317] sm:$0xf]
      %v333 = vld [vmem:[%s317 + $0x4] sm:$0xf]
      %v334 = vld [vmem:[%s317 + $0x8] sm:$0xf]
      %v335 = vld [vmem:[%s317 + $0xc] sm:$0xf]
      %v336 = vld [vmem:[%s317 + $0x10] sm:$0xf]
      %v337 = vld [vmem:[%s317 + $0x14] sm:$0xf]
      %v338 = vld [vmem:[%s317 + $0x18] sm:$0xf]
      %v339 = vld [vmem:[%s317 + $0x1c] sm:$0xf]
      %v340 = vld [vmem:[%s317 + $0x20] sm:$0xf]
      %v341 = vld [vmem:[%s317 + $0x24] sm:$0xf]
      %v342 = vld [vmem:[%s317 + $0x28] sm:$0xf]
      %v343 = vld [vmem:[%s317 + $0x2c] sm:$0xf]
      %v344 = vld [vmem:[%s317 + $0x30] sm:$0xf]
      %v345 = vld [vmem:[%s317 + $0x34] sm:$0xf]
      %v346 = vld [vmem:[%s317 + $0x38] sm:$0xf]
      %v347 = vld [vmem:[%s317 + $0x3c] sm:$0xf]
      %v348 = vld [vmem:[%s317 + $0x40] sm:$0xf]
      %v349 = vld [vmem:[%s317 + $0x44] sm:$0xf]
      %v350 = vld [vmem:[%s317 + $0x48] sm:$0xf]
      %v351 = vld [vmem:[%s317 + $0x4c] sm:$0xf]
      %v352 = vld [vmem:[%s317 + $0x50] sm:$0xf]
      %v353 = vld [vmem:[%s317 + $0x54] sm:$0xf]
      %v354 = vld [vmem:[%s317 + $0x58] sm:$0xf]
      %v355 = vld [vmem:[%s317 + $0x5c] sm:$0xf]
      %v356 = vld [vmem:[%s317 + $0x60] sm:$0xf]
      %v357 = vld [vmem:[%s317 + $0x64] sm:$0xf]
      %v358 = vld [vmem:[%s317 + $0x68] sm:$0xf]
      %v359 = vld [vmem:[%s317 + $0x6c] sm:$0xf]
      %v360 = vld [vmem:[%s317 + $0x70] sm:$0xf]
      %v361 = vld [vmem:[%s317 + $0x74] sm:$0xf]
      %v362 = vld [vmem:[%s317 + $0x78] sm:$0xf]
      %v363 = vld [vmem:[%s317 + $0x7c] sm:$0xf]
      %v364 = vld [vmem:[%s1] sm:$0xf]
      %v365 = vld [vmem:[%s1 + $0x4] sm:$0xf]
      %v366 = vld [vmem:[%s1 + $0x8] sm:$0xf]
      %v367 = vld [vmem:[%s1 + $0xc] sm:$0xf]
      %v368 = vld [vmem:[%s1 + $0x10] sm:$0xf]
      %v369 = vld [vmem:[%s1 + $0x14] sm:$0xf]
      %v370 = vld [vmem:[%s1 + $0x18] sm:$0xf]
      %v371 = vld [vmem:[%s1 + $0x1c] sm:$0xf]
      %v372 = vld [vmem:[%s1 + $0x20] sm:$0xf]
      %v373 = vld [vmem:[%s1 + $0x24] sm:$0xf]
      %v374 = vld [vmem:[%s1 + $0x28] sm:$0xf]
      %v375 = vld [vmem:[%s1 + $0x2c] sm:$0xf]
      %v376 = vld [vmem:[%s1 + $0x30] sm:$0xf]
      %v377 = vld [vmem:[%s1 + $0x34] sm:$0xf]
      %v378 = vld [vmem:[%s1 + $0x38] sm:$0xf]
      %v379 = vld [vmem:[%s1 + $0x3c] sm:$0xf]
      %v412 = vunpack.c.l.b16 %v332
      %v413 = vunpack.c.l.b16 %v333
      %v414 = vunpack.c.l.b16 %v334
      %v415 = vunpack.c.l.b16 %v335
      %v416 = vunpack.c.l.b16 %v336
      %v417 = vunpack.c.l.b16 %v337
      %v418 = vunpack.c.l.b16 %v338
      %v419 = vunpack.c.l.b16 %v339
      %v420 = vunpack.c.l.b16 %v340
      %v421 = vunpack.c.l.b16 %v341
      %v422 = vunpack.c.l.b16 %v342
      %v423 = vunpack.c.l.b16 %v343
      %v424 = vunpack.c.l.b16 %v344
      %v425 = vunpack.c.l.b16 %v345
      %v426 = vunpack.c.l.b16 %v346
      %v427 = vunpack.c.l.b16 %v347
      %v428 = vunpack.c.l.b16 %v348
      %v429 = vunpack.c.l.b16 %v349
      %v430 = vunpack.c.l.b16 %v350
      %v431 = vunpack.c.l.b16 %v351
      %v432 = vunpack.c.l.b16 %v352
      %v433 = vunpack.c.l.b16 %v353
      %v434 = vunpack.c.l.b16 %v354
      %v435 = vunpack.c.l.b16 %v355
      %v436 = vunpack.c.l.b16 %v356
      %v437 = vunpack.c.l.b16 %v357
      %v438 = vunpack.c.l.b16 %v358
      %v439 = vunpack.c.l.b16 %v359
      %v440 = vunpack.c.l.b16 %v360
      %v441 = vunpack.c.l.b16 %v361
      %v442 = vunpack.c.l.b16 %v362
      %v443 = vunpack.c.l.b16 %v363
      %v444 = vpack.c.b16 %v413, %v412
      %v445 = vpack.c.b16 %v415, %v414
      %v446 = vpack.c.b16 %v417, %v416
      %v447 = vpack.c.b16 %v419, %v418
      %v448 = vpack.c.b16 %v421, %v420
      %v449 = vpack.c.b16 %v423, %v422
      %v450 = vpack.c.b16 %v425, %v424
      %v451 = vpack.c.b16 %v427, %v426
      %v452 = vpack.c.b16 %v429, %v428
      %v453 = vpack.c.b16 %v431, %v430
      %v454 = vpack.c.b16 %v433, %v432
      %v455 = vpack.c.b16 %v435, %v434
      %v456 = vpack.c.b16 %v437, %v436
      %v457 = vpack.c.b16 %v439, %v438
      %v458 = vpack.c.b16 %v441, %v440
      %v459 = vpack.c.b16 %v443, %v442
      %v492 = vunpack.c.l.b16 %v364
      %v493 = vunpack.c.l.b16 %v365
      %v494 = vunpack.c.l.b16 %v366
      %v495 = vunpack.c.l.b16 %v367
      %v496 = vunpack.c.l.b16 %v368
      %v497 = vunpack.c.l.b16 %v369
      %v498 = vunpack.c.l.b16 %v370
      %v499 = vunpack.c.l.b16 %v371
      %v500 = vunpack.c.l.b16 %v372
      %v501 = vunpack.c.l.b16 %v373
      %v502 = vunpack.c.l.b16 %v374
      %v503 = vunpack.c.l.b16 %v375
      %v504 = vunpack.c.l.b16 %v376
      %v505 = vunpack.c.l.b16 %v377
      %v506 = vunpack.c.l.b16 %v378
      %v507 = vunpack.c.l.b16 %v379
      %v508 = vpack.c.b16 %v493, %v492
      %v509 = vpack.c.b16 %v495, %v494
      %v510 = vpack.c.b16 %v497, %v496
      %v511 = vpack.c.b16 %v499, %v498
      %v512 = vpack.c.b16 %v501, %v500
      %v513 = vpack.c.b16 %v503, %v502
      %v514 = vpack.c.b16 %v505, %v504
      %v515 = vpack.c.b16 %v507, %v506
      %524 = vmatprep.subr.bf16.mxu0 0
      %525 = vmatpush1.bf16.msra.mxu0 %v508
      %526 = vmatprep.subr.bf16.mxu0 0
      %527 = vmatpush1.bf16.msra.mxu0 %v509
      %528 = vmatprep.subr.bf16.mxu0 0
      %529 = vmatpush1.bf16.msra.mxu0 %v510
      %530 = vmatprep.subr.bf16.mxu0 0
      %531 = vmatpush1.bf16.msra.mxu0 %v511
      %532 = vmatprep.subr.bf16.mxu0 0
      %533 = vmatpush1.bf16.msra.mxu0 %v512
      %534 = vmatprep.subr.bf16.mxu0 0
      %535 = vmatpush1.bf16.msra.mxu0 %v513
      %536 = vmatprep.subr.bf16.mxu0 0
      %537 = vmatpush1.bf16.msra.mxu0 %v514
      %538 = vmatprep.subr.bf16.mxu0 0
      %539 = vmatpush1.bf16.msra.mxu0 %v515
      %540 = vmatprep.subr.bf16.mxu0 0
      %541 = vmatpush1.bf16.msra.mxu0 0
      %542 = vmatprep.subr.bf16.mxu0 0
      %543 = vmatpush1.bf16.msra.mxu0 0
      %544 = vmatprep.subr.bf16.mxu0 0
      %545 = vmatpush1.bf16.msra.mxu0 0
      %546 = vmatprep.subr.bf16.mxu0 0
      %547 = vmatpush1.bf16.msra.mxu0 0
      %548 = vmatprep.subr.bf16.mxu0 0
      %549 = vmatpush1.bf16.msra.mxu0 0
      %550 = vmatprep.subr.bf16.mxu0 0
      %551 = vmatpush1.bf16.msra.mxu0 0
      %552 = vmatprep.subr.bf16.mxu0 0
      %553 = vmatpush1.bf16.msra.mxu0 0
      %554 = vmatprep.subr.bf16.mxu0 0
      %555 = vmatpush1.bf16.msra.mxu0 0
      %556 = vmatprep.mubr.bf16.mxu0 0
      %557 = vmatmul.mubr.bf16.gmra.mrb[0].mxu0 %v444
      %v558 = vpop.f32.mrb[0].mxu0
      %v559 = vadd.f32 0.0, %v558
      %v560 = vpop.f32.mrb[0].mxu0
      %v561 = vpop.f32.mrb[0].mxu0
      %v562 = vadd.f32 0.0, %v561
      %v563 = vpop.f32.mrb[0].mxu0
      %564 = vmatprep.mubr.bf16.mxu0 0
      %565 = vmatmul.mubr.bf16.gmra.mrb[0].mxu0 %v445
      %v566 = vpop.f32.mrb[0].mxu0
      %v567 = vadd.f32 0.0, %v566
      %v568 = vpop.f32.mrb[0].mxu0
      %v569 = vpop.f32.mrb[0].mxu0
      %v570 = vadd.f32 0.0, %v569
      %v571 = vpop.f32.mrb[0].mxu0
      %572 = vmatprep.mubr.bf16.mxu0 0
      %573 = vmatmul.mubr.bf16.gmra.mrb[0].mxu0 %v446
      %v574 = vpop.f32.mrb[0].mxu0
      %v575 = vadd.f32 0.0, %v574
      %v576 = vpop.f32.mrb[0].mxu0
      %v577 = vpop.f32.mrb[0].mxu0
      %v578 = vadd.f32 0.0, %v577
      %v579 = vpop.f32.mrb[0].mxu0
      %580 = vmatprep.mubr.bf16.mxu0 0
      %581 = vmatmul.mubr.bf16.gmra.mrb[0].mxu0 %v447
      %v582 = vpop.f32.mrb[0].mxu0
      %v583 = vadd.f32 0.0, %v582
      %v584 = vpop.f32.mrb[0].mxu0
      %v585 = vpop.f32.mrb[0].mxu0
      %v586 = vadd.f32 0.0, %v585
      %v587 = vpop.f32.mrb[0].mxu0
      %588 = vmatprep.mubr.bf16.mxu0 0
      %589 = vmatmul.mubr.bf16.gmra.mrb[0].mxu0 %v448
      %v590 = vpop.f32.mrb[0].mxu0
      %v591 = vadd.f32 0.0, %v590
      %v592 = vpop.f32.mrb[0].mxu0
      %v593 = vpop.f32.mrb[0].mxu0
      %v594 = vadd.f32 0.0, %v593
      %v595 = vpop.f32.mrb[0].mxu0
      %596 = vmatprep.mubr.bf16.mxu0 0
      %597 = vmatmul.mubr.bf16.gmra.mrb[0].mxu0 %v449
      %v598 = vpop.f32.mrb[0].mxu0
      %v599 = vadd.f32 0.0, %v598
      %v600 = vpop.f32.mrb[0].mxu0
      %v601 = vpop.f32.mrb[0].mxu0
      %v602 = vadd.f32 0.0, %v601
      %v603 = vpop.f32.mrb[0].mxu0
      %604 = vmatprep.mubr.bf16.mxu0 0
      %605 = vmatmul.mubr.bf16.gmra.mrb[0].mxu0 %v450
      %v606 = vpop.f32.mrb[0].mxu0
      %v607 = vadd.f32 0.0, %v606
      %v608 = vpop.f32.mrb[0].mxu0
      %v609 = vpop.f32.mrb[0].mxu0
      %v610 = vadd.f32 0.0, %v609
      %v611 = vpop.f32.mrb[0].mxu0
      %612 = vmatprep.mubr.bf16.mxu0 0
      %613 = vmatmul.mubr.bf16.gmra.mrb[0].mxu0 %v451
      %v614 = vpop.f32.mrb[0].mxu0
      %v615 = vadd.f32 0.0, %v614
      %v616 = vpop.f32.mrb[0].mxu0
      %v617 = vpop.f32.mrb[0].mxu0
      %v618 = vadd.f32 0.0, %v617
      %v619 = vpop.f32.mrb[0].mxu0
      %620 = vmatprep.mubr.bf16.mxu0 0
      %621 = vmatmul.mubr.bf16.gmra.mrb[0].mxu0 %v452
      %v622 = vpop.f32.mrb[0].mxu0
      %v623 = vadd.f32 0.0, %v622
      %v624 = vpop.f32.mrb[0].mxu0
      %v625 = vpop.f32.mrb[0].mxu0
      %v626 = vadd.f32 0.0, %v625
      %v627 = vpop.f32.mrb[0].mxu0
      %628 = vmatprep.mubr.bf16.mxu0 0
      %629 = vmatmul.mubr.bf16.gmra.mrb[0].mxu0 %v453
      %v630 = vpop.f32.mrb[0].mxu0
      %v631 = vadd.f32 0.0, %v630
      %v632 = vpop.f32.mrb[0].mxu0
      %v633 = vpop.f32.mrb[0].mxu0
      %v634 = vadd.f32 0.0, %v633
      %v635 = vpop.f32.mrb[0].mxu0
      %636 = vmatprep.mubr.bf16.mxu0 0
      %637 = vmatmul.mubr.bf16.gmra.mrb[0].mxu0 %v454
      %v638 = vpop.f32.mrb[0].mxu0
      %v639 = vadd.f32 0.0, %v638
      %v640 = vpop.f32.mrb[0].mxu0
      %v641 = vpop.f32.mrb[0].mxu0
      %v642 = vadd.f32 0.0, %v641
      %v643 = vpop.f32.mrb[0].mxu0
      %644 = vmatprep.mubr.bf16.mxu0 0
      %645 = vmatmul.mubr.bf16.gmra.mrb[0].mxu0 %v455
      %v646 = vpop.f32.mrb[0].mxu0
      %v647 = vadd.f32 0.0, %v646
      %v648 = vpop.f32.mrb[0].mxu0
      %v649 = vpop.f32.mrb[0].mxu0
      %v650 = vadd.f32 0.0, %v649
      %v651 = vpop.f32.mrb[0].mxu0
      %652 = vmatprep.mubr.bf16.mxu0 0
      %653 = vmatmul.mubr.bf16.gmra.mrb[0].mxu0 %v456
      %v654 = vpop.f32.mrb[0].mxu0
      %v655 = vadd.f32 0.0, %v654
      %v656 = vpop.f32.mrb[0].mxu0
      %v657 = vpop.f32.mrb[0].mxu0
      %v658 = vadd.f32 0.0, %v657
      %v659 = vpop.f32.mrb[0].mxu0
      %660 = vmatprep.mubr.bf16.mxu0 0
      %661 = vmatmul.mubr.bf16.gmra.mrb[0].mxu0 %v457
      %v662 = vpop.f32.mrb[0].mxu0
      %v663 = vadd.f32 0.0, %v662
      %v664 = vpop.f32.mrb[0].mxu0
      %v665 = vpop.f32.mrb[0].mxu0
      %v666 = vadd.f32 0.0, %v665
      %v667 = vpop.f32.mrb[0].mxu0
      %668 = vmatprep.mubr.bf16.mxu0 0
      %669 = vmatmul.mubr.bf16.gmra.mrb[0].mxu0 %v458
      %v670 = vpop.f32.mrb[0].mxu0
      %v671 = vadd.f32 0.0, %v670
      %v672 = vpop.f32.mrb[0].mxu0
      %v673 = vpop.f32.mrb[0].mxu0
      %v674 = vadd.f32 0.0, %v673
      %v675 = vpop.f32.mrb[0].mxu0
      %676 = vmatprep.mubr.bf16.mxu0 0
      %677 = vmatmul.mubr.bf16.gmra.mrb[0].mxu0 %v459
      %v678 = vpop.f32.mrb[0].mxu0
      %v679 = vadd.f32 0.0, %v678
      %v680 = vpop.f32.mrb[0].mxu0
      %v681 = vpop.f32.mrb[0].mxu0
      %v682 = vadd.f32 0.0, %v681
      %v683 = vpop.f32.mrb[0].mxu0
      %684 = vdwg.mxu0
      %v685 = vld [vmem:[%s2] sm:$0x1]
      %v687 = vlaneseq
      %v688 = vshrl.u32 %v687, 7
      %v689 = vsub.s32 0, %v688
      %v690 = vrot.slane %v685, %v689
      %v692 = vmul.f32 %v559, %v690
      %v693 = vmul.f32 %v562, %v690
      %v694 = vmul.f32 %v567, %v690
      %v695 = vmul.f32 %v570, %v690
      %v696 = vmul.f32 %v575, %v690
      %v697 = vmul.f32 %v578, %v690
      %v698 = vmul.f32 %v583, %v690
      %v699 = vmul.f32 %v586, %v690
      %v700 = vmul.f32 %v591, %v690
      %v701 = vmul.f32 %v594, %v690
      %v702 = vmul.f32 %v599, %v690
      %v703 = vmul.f32 %v602, %v690
      %v704 = vmul.f32 %v607, %v690
      %v705 = vmul.f32 %v610, %v690
      %v706 = vmul.f32 %v615, %v690
      %v707 = vmul.f32 %v618, %v690
      %v708 = vmul.f32 %v623, %v690
      %v709 = vmul.f32 %v626, %v690
      %v710 = vmul.f32 %v631, %v690
      %v711 = vmul.f32 %v634, %v690
      %v712 = vmul.f32 %v639, %v690
      %v713 = vmul.f32 %v642, %v690
      %v714 = vmul.f32 %v647, %v690
      %v715 = vmul.f32 %v650, %v690
      %v716 = vmul.f32 %v655, %v690
      %v717 = vmul.f32 %v658, %v690
      %v718 = vmul.f32 %v663, %v690
      %v719 = vmul.f32 %v666, %v690
      %v720 = vmul.f32 %v671, %v690
      %v721 = vmul.f32 %v674, %v690
      %v722 = vmul.f32 %v679, %v690
      %v723 = vmul.f32 %v682, %v690
      %v724 = vld [vmem:[%s3] sm:$0x1]
      %v726 = vlaneseq
      %v727 = vshrl.u32 %v726, 7
      %v728 = vsub.s32 0, %v727
      %v729 = vrot.slane %v724, %v728
      %v731 = vadd.f32 %v692, %v729
      %v732 = vadd.f32 %v693, %v729
      %v733 = vadd.f32 %v694, %v729
      %v734 = vadd.f32 %v695, %v729
      %v735 = vadd.f32 %v696, %v729
      %v736 = vadd.f32 %v697, %v729
      %v737 = vadd.f32 %v698, %v729
      %v738 = vadd.f32 %v699, %v729
      %v739 = vadd.f32 %v700, %v729
      %v740 = vadd.f32 %v701, %v729
      %v741 = vadd.f32 %v702, %v729
      %v742 = vadd.f32 %v703, %v729
      %v743 = vadd.f32 %v704, %v729
      %v744 = vadd.f32 %v705, %v729
      %v745 = vadd.f32 %v706, %v729
      %v746 = vadd.f32 %v707, %v729
      %v747 = vadd.f32 %v708, %v729
      %v748 = vadd.f32 %v709, %v729
      %v749 = vadd.f32 %v710, %v729
      %v750 = vadd.f32 %v711, %v729
      %v751 = vadd.f32 %v712, %v729
      %v752 = vadd.f32 %v713, %v729
      %v753 = vadd.f32 %v714, %v729
      %v754 = vadd.f32 %v715, %v729
      %v755 = vadd.f32 %v716, %v729
      %v756 = vadd.f32 %v717, %v729
      %v757 = vadd.f32 %v718, %v729
      %v758 = vadd.f32 %v719, %v729
      %v759 = vadd.f32 %v720, %v729
      %v760 = vadd.f32 %v721, %v729
      %v761 = vadd.f32 %v722, %v729
      %v762 = vadd.f32 %v723, %v729
      %v763 = vld [vmem:[%s323] sm:$0xf]
      %v764 = vld [vmem:[%s323 + $0x4] sm:$0xf]
      %v765 = vld [vmem:[%s323 + $0x8] sm:$0xf]
      %v766 = vld [vmem:[%s323 + $0xc] sm:$0xf]
      %v767 = vld [vmem:[%s323 + $0x10] sm:$0xf]
      %v768 = vld [vmem:[%s323 + $0x14] sm:$0xf]
      %v769 = vld [vmem:[%s323 + $0x18] sm:$0xf]
      %v770 = vld [vmem:[%s323 + $0x1c] sm:$0xf]
      %v771 = vld [vmem:[%s323 + $0x20] sm:$0xf]
      %v772 = vld [vmem:[%s323 + $0x24] sm:$0xf]
      %v773 = vld [vmem:[%s323 + $0x28] sm:$0xf]
      %v774 = vld [vmem:[%s323 + $0x2c] sm:$0xf]
      %v775 = vld [vmem:[%s323 + $0x30] sm:$0xf]
      %v776 = vld [vmem:[%s323 + $0x34] sm:$0xf]
      %v777 = vld [vmem:[%s323 + $0x38] sm:$0xf]
      %v778 = vld [vmem:[%s323 + $0x3c] sm:$0xf]
      %v779 = vld [vmem:[%s323 + $0x40] sm:$0xf]
      %v780 = vld [vmem:[%s323 + $0x44] sm:$0xf]
      %v781 = vld [vmem:[%s323 + $0x48] sm:$0xf]
      %v782 = vld [vmem:[%s323 + $0x4c] sm:$0xf]
      %v783 = vld [vmem:[%s323 + $0x50] sm:$0xf]
      %v784 = vld [vmem:[%s323 + $0x54] sm:$0xf]
      %v785 = vld [vmem:[%s323 + $0x58] sm:$0xf]
      %v786 = vld [vmem:[%s323 + $0x5c] sm:$0xf]
      %v787 = vld [vmem:[%s323 + $0x60] sm:$0xf]
      %v788 = vld [vmem:[%s323 + $0x64] sm:$0xf]
      %v789 = vld [vmem:[%s323 + $0x68] sm:$0xf]
      %v790 = vld [vmem:[%s323 + $0x6c] sm:$0xf]
      %v791 = vld [vmem:[%s323 + $0x70] sm:$0xf]
      %v792 = vld [vmem:[%s323 + $0x74] sm:$0xf]
      %v793 = vld [vmem:[%s323 + $0x78] sm:$0xf]
      %v794 = vld [vmem:[%s323 + $0x7c] sm:$0xf]
      %v795 = vld [vmem:[%s5] sm:$0xf]
      %v796 = vld [vmem:[%s5 + $0x4] sm:$0xf]
      %v797 = vld [vmem:[%s5 + $0x8] sm:$0xf]
      %v798 = vld [vmem:[%s5 + $0xc] sm:$0xf]
      %v799 = vld [vmem:[%s5 + $0x10] sm:$0xf]
      %v800 = vld [vmem:[%s5 + $0x14] sm:$0xf]
      %v801 = vld [vmem:[%s5 + $0x18] sm:$0xf]
      %v802 = vld [vmem:[%s5 + $0x1c] sm:$0xf]
      %v803 = vld [vmem:[%s5 + $0x20] sm:$0xf]
      %v804 = vld [vmem:[%s5 + $0x24] sm:$0xf]
      %v805 = vld [vmem:[%s5 + $0x28] sm:$0xf]
      %v806 = vld [vmem:[%s5 + $0x2c] sm:$0xf]
      %v807 = vld [vmem:[%s5 + $0x30] sm:$0xf]
      %v808 = vld [vmem:[%s5 + $0x34] sm:$0xf]
      %v809 = vld [vmem:[%s5 + $0x38] sm:$0xf]
      %v810 = vld [vmem:[%s5 + $0x3c] sm:$0xf]
      %v843 = vunpack.c.l.b16 %v763
      %v844 = vunpack.c.l.b16 %v764
      %v845 = vunpack.c.l.b16 %v765
      %v846 = vunpack.c.l.b16 %v766
      %v847 = vunpack.c.l.b16 %v767
      %v848 = vunpack.c.l.b16 %v768
      %v849 = vunpack.c.l.b16 %v769
      %v850 = vunpack.c.l.b16 %v770
      %v851 = vunpack.c.l.b16 %v771
      %v852 = vunpack.c.l.b16 %v772
      %v853 = vunpack.c.l.b16 %v773
      %v854 = vunpack.c.l.b16 %v774
      %v855 = vunpack.c.l.b16 %v775
      %v856 = vunpack.c.l.b16 %v776
      %v857 = vunpack.c.l.b16 %v777
      %v858 = vunpack.c.l.b16 %v778
      %v859 = vunpack.c.l.b16 %v779
      %v860 = vunpack.c.l.b16 %v780
      %v861 = vunpack.c.l.b16 %v781
      %v862 = vunpack.c.l.b16 %v782
      %v863 = vunpack.c.l.b16 %v783
      %v864 = vunpack.c.l.b16 %v784
      %v865 = vunpack.c.l.b16 %v785
      %v866 = vunpack.c.l.b16 %v786
      %v867 = vunpack.c.l.b16 %v787
      %v868 = vunpack.c.l.b16 %v788
      %v869 = vunpack.c.l.b16 %v789
      %v870 = vunpack.c.l.b16 %v790
      %v871 = vunpack.c.l.b16 %v791
      %v872 = vunpack.c.l.b16 %v792
      %v873 = vunpack.c.l.b16 %v793
      %v874 = vunpack.c.l.b16 %v794
      %v875 = vpack.c.b16 %v844, %v843
      %v876 = vpack.c.b16 %v846, %v845
      %v877 = vpack.c.b16 %v848, %v847
      %v878 = vpack.c.b16 %v850, %v849
      %v879 = vpack.c.b16 %v852, %v851
      %v880 = vpack.c.b16 %v854, %v853
      %v881 = vpack.c.b16 %v856, %v855
      %v882 = vpack.c.b16 %v858, %v857
      %v883 = vpack.c.b16 %v860, %v859
      %v884 = vpack.c.b16 %v862, %v861
      %v885 = vpack.c.b16 %v864, %v863
      %v886 = vpack.c.b16 %v866, %v865
      %v887 = vpack.c.b16 %v868, %v867
      %v888 = vpack.c.b16 %v870, %v869
      %v889 = vpack.c.b16 %v872, %v871
      %v890 = vpack.c.b16 %v874, %v873
      %v923 = vunpack.c.l.b16 %v795
      %v924 = vunpack.c.l.b16 %v796
      %v925 = vunpack.c.l.b16 %v797
      %v926 = vunpack.c.l.b16 %v798
      %v927 = vunpack.c.l.b16 %v799
      %v928 = vunpack.c.l.b16 %v800
      %v929 = vunpack.c.l.b16 %v801
      %v930 = vunpack.c.l.b16 %v802
      %v931 = vunpack.c.l.b16 %v803
      %v932 = vunpack.c.l.b16 %v804
      %v933 = vunpack.c.l.b16 %v805
      %v934 = vunpack.c.l.b16 %v806
      %v935 = vunpack.c.l.b16 %v807
      %v936 = vunpack.c.l.b16 %v808
      %v937 = vunpack.c.l.b16 %v809
      %v938 = vunpack.c.l.b16 %v810
      %v939 = vpack.c.b16 %v924, %v923
      %v940 = vpack.c.b16 %v926, %v925
      %v941 = vpack.c.b16 %v928, %v927
      %v942 = vpack.c.b16 %v930, %v929
      %v943 = vpack.c.b16 %v932, %v931
      %v944 = vpack.c.b16 %v934, %v933
      %v945 = vpack.c.b16 %v936, %v935
      %v946 = vpack.c.b16 %v938, %v937
      %955 = vmatprep.subr.bf16.mxu0 0
      %956 = vmatpush1.bf16.msra.mxu0 %v939
      %957 = vmatprep.subr.bf16.mxu0 0
      %958 = vmatpush1.bf16.msra.mxu0 %v940
      %959 = vmatprep.subr.bf16.mxu0 0
      %960 = vmatpush1.bf16.msra.mxu0 %v941
      %961 = vmatprep.subr.bf16.mxu0 0
      %962 = vmatpush1.bf16.msra.mxu0 %v942
      %963 = vmatprep.subr.bf16.mxu0 0
      %964 = vmatpush1.bf16.msra.mxu0 %v943
      %965 = vmatprep.subr.bf16.mxu0 0
      %966 = vmatpush1.bf16.msra.mxu0 %v944
      %967 = vmatprep.subr.bf16.mxu0 0
      %968 = vmatpush1.bf16.msra.mxu0 %v945
      %969 = vmatprep.subr.bf16.mxu0 0
      %970 = vmatpush1.bf16.msra.mxu0 %v946
      %971 = vmatprep.subr.bf16.mxu0 0
      %972 = vmatpush1.bf16.msra.mxu0 0
      %973 = vmatprep.subr.bf16.mxu0 0
      %974 = vmatpush1.bf16.msra.mxu0 0
      %975 = vmatprep.subr.bf16.mxu0 0
      %976 = vmatpush1.bf16.msra.mxu0 0
      %977 = vmatprep.subr.bf16.mxu0 0
      %978 = vmatpush1.bf16.msra.mxu0 0
      %979 = vmatprep.subr.bf16.mxu0 0
      %980 = vmatpush1.bf16.msra.mxu0 0
      %981 = vmatprep.subr.bf16.mxu0 0
      %982 = vmatpush1.bf16.msra.mxu0 0
      %983 = vmatprep.subr.bf16.mxu0 0
      %984 = vmatpush1.bf16.msra.mxu0 0
      %985 = vmatprep.subr.bf16.mxu0 0
      %986 = vmatpush1.bf16.msra.mxu0 0
      %987 = vmatprep.mubr.bf16.mxu0 0
      %988 = vmatmul.mubr.bf16.gmra.mrb[0].mxu0 %v875
      %v989 = vpop.f32.mrb[0].mxu0
      %v990 = vadd.f32 0.0, %v989
      %v991 = vpop.f32.mrb[0].mxu0
      %v992 = vpop.f32.mrb[0].mxu0
      %v993 = vadd.f32 0.0, %v992
      %v994 = vpop.f32.mrb[0].mxu0
      %995 = vmatprep.mubr.bf16.mxu0 0
      %996 = vmatmul.mubr.bf16.gmra.mrb[0].mxu0 %v876
      %v997 = vpop.f32.mrb[0].mxu0
      %v998 = vadd.f32 0.0, %v997
      %v999 = vpop.f32.mrb[0].mxu0
      %v1000 = vpop.f32.mrb[0].mxu0
      %v1001 = vadd.f32 0.0, %v1000
      %v1002 = vpop.f32.mrb[0].mxu0
      %1003 = vmatprep.mubr.bf16.mxu0 0
      %1004 = vmatmul.mubr.bf16.gmra.mrb[0].mxu0 %v877
      %v1005 = vpop.f32.mrb[0].mxu0
      %v1006 = vadd.f32 0.0, %v1005
      %v1007 = vpop.f32.mrb[0].mxu0
      %v1008 = vpop.f32.mrb[0].mxu0
      %v1009 = vadd.f32 0.0, %v1008
      %v1010 = vpop.f32.mrb[0].mxu0
      %1011 = vmatprep.mubr.bf16.mxu0 0
      %1012 = vmatmul.mubr.bf16.gmra.mrb[0].mxu0 %v878
      %v1013 = vpop.f32.mrb[0].mxu0
      %v1014 = vadd.f32 0.0, %v1013
      %v1015 = vpop.f32.mrb[0].mxu0
      %v1016 = vpop.f32.mrb[0].mxu0
      %v1017 = vadd.f32 0.0, %v1016
      %v1018 = vpop.f32.mrb[0].mxu0
      %1019 = vmatprep.mubr.bf16.mxu0 0
      %1020 = vmatmul.mubr.bf16.gmra.mrb[0].mxu0 %v879
      %v1021 = vpop.f32.mrb[0].mxu0
      %v1022 = vadd.f32 0.0, %v1021
      %v1023 = vpop.f32.mrb[0].mxu0
      %v1024 = vpop.f32.mrb[0].mxu0
      %v1025 = vadd.f32 0.0, %v1024
      %v1026 = vpop.f32.mrb[0].mxu0
      %1027 = vmatprep.mubr.bf16.mxu0 0
      %1028 = vmatmul.mubr.bf16.gmra.mrb[0].mxu0 %v880
      %v1029 = vpop.f32.mrb[0].mxu0
      %v1030 = vadd.f32 0.0, %v1029
      %v1031 = vpop.f32.mrb[0].mxu0
      %v1032 = vpop.f32.mrb[0].mxu0
      %v1033 = vadd.f32 0.0, %v1032
      %v1034 = vpop.f32.mrb[0].mxu0
      %1035 = vmatprep.mubr.bf16.mxu0 0
      %1036 = vmatmul.mubr.bf16.gmra.mrb[0].mxu0 %v881
      %v1037 = vpop.f32.mrb[0].mxu0
      %v1038 = vadd.f32 0.0, %v1037
      %v1039 = vpop.f32.mrb[0].mxu0
      %v1040 = vpop.f32.mrb[0].mxu0
      %v1041 = vadd.f32 0.0, %v1040
      %v1042 = vpop.f32.mrb[0].mxu0
      %1043 = vmatprep.mubr.bf16.mxu0 0
      %1044 = vmatmul.mubr.bf16.gmra.mrb[0].mxu0 %v882
      %v1045 = vpop.f32.mrb[0].mxu0
      %v1046 = vadd.f32 0.0, %v1045
      %v1047 = vpop.f32.mrb[0].mxu0
      %v1048 = vpop.f32.mrb[0].mxu0
      %v1049 = vadd.f32 0.0, %v1048
      %v1050 = vpop.f32.mrb[0].mxu0
      %1051 = vmatprep.mubr.bf16.mxu0 0
      %1052 = vmatmul.mubr.bf16.gmra.mrb[0].mxu0 %v883
      %v1053 = vpop.f32.mrb[0].mxu0
      %v1054 = vadd.f32 0.0, %v1053
      %v1055 = vpop.f32.mrb[0].mxu0
      %v1056 = vpop.f32.mrb[0].mxu0
      %v1057 = vadd.f32 0.0, %v1056
      %v1058 = vpop.f32.mrb[0].mxu0
      %1059 = vmatprep.mubr.bf16.mxu0 0
      %1060 = vmatmul.mubr.bf16.gmra.mrb[0].mxu0 %v884
      %v1061 = vpop.f32.mrb[0].mxu0
      %v1062 = vadd.f32 0.0, %v1061
      %v1063 = vpop.f32.mrb[0].mxu0
      %v1064 = vpop.f32.mrb[0].mxu0
      %v1065 = vadd.f32 0.0, %v1064
      %v1066 = vpop.f32.mrb[0].mxu0
      %1067 = vmatprep.mubr.bf16.mxu0 0
      %1068 = vmatmul.mubr.bf16.gmra.mrb[0].mxu0 %v885
      %v1069 = vpop.f32.mrb[0].mxu0
      %v1070 = vadd.f32 0.0, %v1069
      %v1071 = vpop.f32.mrb[0].mxu0
      %v1072 = vpop.f32.mrb[0].mxu0
      %v1073 = vadd.f32 0.0, %v1072
      %v1074 = vpop.f32.mrb[0].mxu0
      %1075 = vmatprep.mubr.bf16.mxu0 0
      %1076 = vmatmul.mubr.bf16.gmra.mrb[0].mxu0 %v886
      %v1077 = vpop.f32.mrb[0].mxu0
      %v1078 = vadd.f32 0.0, %v1077
      %v1079 = vpop.f32.mrb[0].mxu0
      %v1080 = vpop.f32.mrb[0].mxu0
      %v1081 = vadd.f32 0.0, %v1080
      %v1082 = vpop.f32.mrb[0].mxu0
      %1083 = vmatprep.mubr.bf16.mxu0 0
      %1084 = vmatmul.mubr.bf16.gmra.mrb[0].mxu0 %v887
      %v1085 = vpop.f32.mrb[0].mxu0
      %v1086 = vadd.f32 0.0, %v1085
      %v1087 = vpop.f32.mrb[0].mxu0
      %v1088 = vpop.f32.mrb[0].mxu0
      %v1089 = vadd.f32 0.0, %v1088
      %v1090 = vpop.f32.mrb[0].mxu0
      %1091 = vmatprep.mubr.bf16.mxu0 0
      %1092 = vmatmul.mubr.bf16.gmra.mrb[0].mxu0 %v888
      %v1093 = vpop.f32.mrb[0].mxu0
      %v1094 = vadd.f32 0.0, %v1093
      %v1095 = vpop.f32.mrb[0].mxu0
      %v1096 = vpop.f32.mrb[0].mxu0
      %v1097 = vadd.f32 0.0, %v1096
      %v1098 = vpop.f32.mrb[0].mxu0
      %1099 = vmatprep.mubr.bf16.mxu0 0
      %1100 = vmatmul.mubr.bf16.gmra.mrb[0].mxu0 %v889
      %v1101 = vpop.f32.mrb[0].mxu0
      %v1102 = vadd.f32 0.0, %v1101
      %v1103 = vpop.f32.mrb[0].mxu0
      %v1104 = vpop.f32.mrb[0].mxu0
      %v1105 = vadd.f32 0.0, %v1104
      %v1106 = vpop.f32.mrb[0].mxu0
      %1107 = vmatprep.mubr.bf16.mxu0 0
      %1108 = vmatmul.mubr.bf16.gmra.mrb[0].mxu0 %v890
      %v1109 = vpop.f32.mrb[0].mxu0
      %v1110 = vadd.f32 0.0, %v1109
      %v1111 = vpop.f32.mrb[0].mxu0
      %v1112 = vpop.f32.mrb[0].mxu0
      %v1113 = vadd.f32 0.0, %v1112
      %v1114 = vpop.f32.mrb[0].mxu0
      %1115 = vdwg.mxu0
      %v1116 = vld [vmem:[%s6] sm:$0x1]
      %v1118 = vlaneseq
      %v1119 = vshrl.u32 %v1118, 7
      %v1120 = vsub.s32 0, %v1119
      %v1121 = vrot.slane %v1116, %v1120
      %v1123 = vmul.f32 %v990, %v1121
      %v1124 = vmul.f32 %v993, %v1121
      %v1125 = vmul.f32 %v998, %v1121
      %v1126 = vmul.f32 %v1001, %v1121
      %v1127 = vmul.f32 %v1006, %v1121
      %v1128 = vmul.f32 %v1009, %v1121
      %v1129 = vmul.f32 %v1014, %v1121
      %v1130 = vmul.f32 %v1017, %v1121
      %v1131 = vmul.f32 %v1022, %v1121
      %v1132 = vmul.f32 %v1025, %v1121
      %v1133 = vmul.f32 %v1030, %v1121
      %v1134 = vmul.f32 %v1033, %v1121
      %v1135 = vmul.f32 %v1038, %v1121
      %v1136 = vmul.f32 %v1041, %v1121
      %v1137 = vmul.f32 %v1046, %v1121
      %v1138 = vmul.f32 %v1049, %v1121
      %v1139 = vmul.f32 %v1054, %v1121
      %v1140 = vmul.f32 %v1057, %v1121
      %v1141 = vmul.f32 %v1062, %v1121
      %v1142 = vmul.f32 %v1065, %v1121
      %v1143 = vmul.f32 %v1070, %v1121
      %v1144 = vmul.f32 %v1073, %v1121
      %v1145 = vmul.f32 %v1078, %v1121
      %v1146 = vmul.f32 %v1081, %v1121
      %v1147 = vmul.f32 %v1086, %v1121
      %v1148 = vmul.f32 %v1089, %v1121
      %v1149 = vmul.f32 %v1094, %v1121
      %v1150 = vmul.f32 %v1097, %v1121
      %v1151 = vmul.f32 %v1102, %v1121
      %v1152 = vmul.f32 %v1105, %v1121
      %v1153 = vmul.f32 %v1110, %v1121
      %v1154 = vmul.f32 %v1113, %v1121
      %v1155 = vld [vmem:[%s7] sm:$0x1]
      %v1157 = vlaneseq
      %v1158 = vshrl.u32 %v1157, 7
      %v1159 = vsub.s32 0, %v1158
      %v1160 = vrot.slane %v1155, %v1159
      %v1162 = vadd.f32 %v1123, %v1160
      %v1163 = vadd.f32 %v1124, %v1160
      %v1164 = vadd.f32 %v1125, %v1160
      %v1165 = vadd.f32 %v1126, %v1160
      %v1166 = vadd.f32 %v1127, %v1160
      %v1167 = vadd.f32 %v1128, %v1160
      %v1168 = vadd.f32 %v1129, %v1160
      %v1169 = vadd.f32 %v1130, %v1160
      %v1170 = vadd.f32 %v1131, %v1160
      %v1171 = vadd.f32 %v1132, %v1160
      %v1172 = vadd.f32 %v1133, %v1160
      %v1173 = vadd.f32 %v1134, %v1160
      %v1174 = vadd.f32 %v1135, %v1160
      %v1175 = vadd.f32 %v1136, %v1160
      %v1176 = vadd.f32 %v1137, %v1160
      %v1177 = vadd.f32 %v1138, %v1160
      %v1178 = vadd.f32 %v1139, %v1160
      %v1179 = vadd.f32 %v1140, %v1160
      %v1180 = vadd.f32 %v1141, %v1160
      %v1181 = vadd.f32 %v1142, %v1160
      %v1182 = vadd.f32 %v1143, %v1160
      %v1183 = vadd.f32 %v1144, %v1160
      %v1184 = vadd.f32 %v1145, %v1160
      %v1185 = vadd.f32 %v1146, %v1160
      %v1186 = vadd.f32 %v1147, %v1160
      %v1187 = vadd.f32 %v1148, %v1160
      %v1188 = vadd.f32 %v1149, %v1160
      %v1189 = vadd.f32 %v1150, %v1160
      %v1190 = vadd.f32 %v1151, %v1160
      %v1191 = vadd.f32 %v1152, %v1160
      %v1192 = vadd.f32 %v1153, %v1160
      %v1193 = vadd.f32 %v1154, %v1160
      %v1194 = vadd.f32 %v731, %v1162
      %v1195 = vadd.f32 %v732, %v1163
      %v1196 = vadd.f32 %v733, %v1164
      %v1197 = vadd.f32 %v734, %v1165
      %v1198 = vadd.f32 %v735, %v1166
      %v1199 = vadd.f32 %v736, %v1167
      %v1200 = vadd.f32 %v737, %v1168
      %v1201 = vadd.f32 %v738, %v1169
      %v1202 = vadd.f32 %v739, %v1170
      %v1203 = vadd.f32 %v740, %v1171
      %v1204 = vadd.f32 %v741, %v1172
      %v1205 = vadd.f32 %v742, %v1173
      %v1206 = vadd.f32 %v743, %v1174
      %v1207 = vadd.f32 %v744, %v1175
      %v1208 = vadd.f32 %v745, %v1176
      %v1209 = vadd.f32 %v746, %v1177
      %v1210 = vadd.f32 %v747, %v1178
      %v1211 = vadd.f32 %v748, %v1179
      %v1212 = vadd.f32 %v749, %v1180
      %v1213 = vadd.f32 %v750, %v1181
      %v1214 = vadd.f32 %v751, %v1182
      %v1215 = vadd.f32 %v752, %v1183
      %v1216 = vadd.f32 %v753, %v1184
      %v1217 = vadd.f32 %v754, %v1185
      %v1218 = vadd.f32 %v755, %v1186
      %v1219 = vadd.f32 %v756, %v1187
      %v1220 = vadd.f32 %v757, %v1188
      %v1221 = vadd.f32 %v758, %v1189
      %v1222 = vadd.f32 %v759, %v1190
      %v1223 = vadd.f32 %v760, %v1191
      %v1224 = vadd.f32 %v761, %v1192
      %v1225 = vadd.f32 %v762, %v1193
      %v1226 = vmax.f32 %v1194, 0.0
      %v1227 = vmax.f32 %v1195, 0.0
      %v1228 = vmax.f32 %v1196, 0.0
      %v1229 = vmax.f32 %v1197, 0.0
      %v1230 = vmax.f32 %v1198, 0.0
      %v1231 = vmax.f32 %v1199, 0.0
      %v1232 = vmax.f32 %v1200, 0.0
      %v1233 = vmax.f32 %v1201, 0.0
      %v1234 = vmax.f32 %v1202, 0.0
      %v1235 = vmax.f32 %v1203, 0.0
      %v1236 = vmax.f32 %v1204, 0.0
      %v1237 = vmax.f32 %v1205, 0.0
      %v1238 = vmax.f32 %v1206, 0.0
      %v1239 = vmax.f32 %v1207, 0.0
      %v1240 = vmax.f32 %v1208, 0.0
      %v1241 = vmax.f32 %v1209, 0.0
      %v1242 = vmax.f32 %v1210, 0.0
      %v1243 = vmax.f32 %v1211, 0.0
      %v1244 = vmax.f32 %v1212, 0.0
      %v1245 = vmax.f32 %v1213, 0.0
      %v1246 = vmax.f32 %v1214, 0.0
      %v1247 = vmax.f32 %v1215, 0.0
      %v1248 = vmax.f32 %v1216, 0.0
      %v1249 = vmax.f32 %v1217, 0.0
      %v1250 = vmax.f32 %v1218, 0.0
      %v1251 = vmax.f32 %v1219, 0.0
      %v1252 = vmax.f32 %v1220, 0.0
      %v1253 = vmax.f32 %v1221, 0.0
      %v1254 = vmax.f32 %v1222, 0.0
      %v1255 = vmax.f32 %v1223, 0.0
      %v1256 = vmax.f32 %v1224, 0.0
      %v1257 = vmax.f32 %v1225, 0.0
      %1258 = vst [vmem:[%s329] sm:$0xff] %v1226
      %1259 = vst [vmem:[%s329 + $0x8] sm:$0xff] %v1227
      %1260 = vst [vmem:[%s329 + $0x10] sm:$0xff] %v1228
      %1261 = vst [vmem:[%s329 + $0x18] sm:$0xff] %v1229
      %1262 = vst [vmem:[%s329 + $0x20] sm:$0xff] %v1230
      %1263 = vst [vmem:[%s329 + $0x28] sm:$0xff] %v1231
      %1264 = vst [vmem:[%s329 + $0x30] sm:$0xff] %v1232
      %1265 = vst [vmem:[%s329 + $0x38] sm:$0xff] %v1233
      %1266 = vst [vmem:[%s329 + $0x40] sm:$0xff] %v1234
      %1267 = vst [vmem:[%s329 + $0x48] sm:$0xff] %v1235
      %1268 = vst [vmem:[%s329 + $0x50] sm:$0xff] %v1236
      %1269 = vst [vmem:[%s329 + $0x58] sm:$0xff] %v1237
      %1270 = vst [vmem:[%s329 + $0x60] sm:$0xff] %v1238
      %1271 = vst [vmem:[%s329 + $0x68] sm:$0xff] %v1239
      %1272 = vst [vmem:[%s329 + $0x70] sm:$0xff] %v1240
      %1273 = vst [vmem:[%s329 + $0x78] sm:$0xff] %v1241
      %1274 = vst [vmem:[%s329 + $0x80] sm:$0xff] %v1242
      %1275 = vst [vmem:[%s329 + $0x88] sm:$0xff] %v1243
      %1276 = vst [vmem:[%s329 + $0x90] sm:$0xff] %v1244
      %1277 = vst [vmem:[%s329 + $0x98] sm:$0xff] %v1245
      %1278 = vst [vmem:[%s329 + $0xa0] sm:$0xff] %v1246
      %1279 = vst [vmem:[%s329 + $0xa8] sm:$0xff] %v1247
      %1280 = vst [vmem:[%s329 + $0xb0] sm:$0xff] %v1248
      %1281 = vst [vmem:[%s329 + $0xb8] sm:$0xff] %v1249
      %1282 = vst [vmem:[%s329 + $0xc0] sm:$0xff] %v1250
      %1283 = vst [vmem:[%s329 + $0xc8] sm:$0xff] %v1251
      %1284 = vst [vmem:[%s329 + $0xd0] sm:$0xff] %v1252
      %1285 = vst [vmem:[%s329 + $0xd8] sm:$0xff] %v1253
      %1286 = vst [vmem:[%s329 + $0xe0] sm:$0xff] %v1254
      %1287 = vst [vmem:[%s329 + $0xe8] sm:$0xff] %v1255
      %1288 = vst [vmem:[%s329 + $0xf0] sm:$0xff] %v1256
      %1289 = vst [vmem:[%s329 + $0xf8] sm:$0xff] %v1257
      %s1290 = smul.u32 32, %s19
      %p1291 = scmp.lt.s32.totalorder %s1290, 63
      %s1292 = scalar_select %p1291, %s1290, 63
      %s1293 = smul.addr %s1292, 8
      %s1294 = scalar_lea.vmem %s8, %s1293
      // Predicated region
      $region53: #{bottleneck_forward.5} parent=51 // pred_check
        %p1295 = pneg %p215
      $region54: #{bottleneck_forward.5} parent=51 // pred_check_branch
        %1297 = sbr.rel (%p1295) target = $region56
      $region55: #{bottleneck_forward.5} parent=51 // pred_region
        %s1298 = smul.u32 32, %s19
      $region56: #{bottleneck_forward.5} parent=51 // pred_fallthru
        _
    $region52: #{bottleneck_forward.5} parent=5 // pred_fallthru
      _
    %p1299 = scmp.le.s32.totalorder 2, %s14
    // Predicated region
    $region57: #{bottleneck_forward.5} parent=5 // pred_check
      %p1300 = pneg %p1299
    $region58: #{bottleneck_forward.5} parent=5 // pred_check_branch
      %1302 = sbr.rel (%p1300) target = $region60
    $region59: #{bottleneck_forward.5} parent=5 // pred_region
      %s1303 = ssub.s32 %s14, 2
      // Predicated region
      $region61: #{bottleneck_forward.5} parent=59 // pred_check
        %p1304 = pneg %p221
      $region62: #{bottleneck_forward.5} parent=59 // pred_check_branch
        %1306 = sbr.rel (%p1304) target = $region64
      $region63: #{bottleneck_forward.5} parent=59 // pred_region
        %s1307 = smul.u32 32, %s20
        %p1308 = scmp.lt.s32.totalorder %s1307, 63
        %s1309 = scalar_select %p1308, %s1307, 63
        %s1310 = smul.addr %s1309, 8
        %s1311 = scalar_lea.vmem %s8, %s1310
      $region64: #{bottleneck_forward.5} parent=59 // pred_fallthru
        _
    $region60: #{bottleneck_forward.5} parent=5 // pred_fallthru
      _
  $region6: #{bottleneck_forward.5} parent=0 // loop_footer
    %s18 = sadd.s32 1, %s14
  $region7: #{bottleneck_forward.5} parent=0 // loop_footer_branch
    %13 = sbr.rel target = $region3
  $region8: #{bottleneck_forward.5} parent=0 // loop_exit
    _

// kernel: bottleneck_forward.4
$region0: #{bottleneck_forward.4}
  #allocation0 [shape = 'u32[]', space=smem, size = 0x4, offset = 0x4, fixed_abs, tag = 'smem constant byte address 0x4 - core index']
  #allocation1 [shape = 'u32[144,128]{1,0:T(1,128)}', space=vmem, size = 0x12000, scoped, tag = 'internal scratch']
  #allocation2 [shape = 'bf16[18,18,128]{2,1,0:T(8,128)(2,1)}', space=vmem, size = 0x1b000, scoped, tag = 'scratch operand']
  %s0 = inlined_call_operand.vmem [shape: bf16[2,16,16,128], index: 0, kind: input, shape index: {}]
  %s1 = inlined_call_operand.vmem [shape: bf16[3,384,128], index: 1, kind: input, shape index: {}]
  %s2 = inlined_call_operand.vmem [shape: f32[1,128], index: 2, kind: input, shape index: {}]
  %s3 = inlined_call_operand.vmem [shape: f32[1,128], index: 3, kind: input, shape index: {}]
  %s4 = inlined_call_operand.vmem [shape: bf16[2,256,128], index: 4, kind: output, shape index: {}]
  %s5 = sld [smem:[#allocation0]]
  $region53: #{bottleneck_forward.4} parent=0
    _
  %s7 = ssub.s32 1, %s5
  %s8 = scalar_select 0, %s7, %s5
  loop: start=0, step=1, limit=4
  $region2: #{bottleneck_forward.4} parent=0 // loop_pre_header
    _
  $region3: #{bottleneck_forward.4} parent=0 // loop_header
    %s10 = sphi 0, %s14
    %p11 = scmp.ge.s32.totalorder %s10, 4
    %s17 = sphi 0, %s29
    %s18 = sphi 0, %s25
    %s19 = sphi 0, %s17
    %s20 = sphi 0, %s18
    %s21 = sphi 0, %s19
    %s22 = sphi 0, %s20
    %s32 = sphi 0, %s34
    %s35 = sphi 0, %s32
    %s36 = sphi 0, %s35
    %s52 = sphi 0, %s36
    %s56 = sphi 0, %s56
    %s58 = sphi 0, %s56
    %s59 = sphi 0, %s58
    %s73 = sphi 0, %s59
    %s77 = sphi 0, %s77
    %s79 = sphi 0, %s77
    %s80 = sphi 0, %s79
    %s94 = sphi 0, %s80
    %s98 = sphi 0, %s98
    %s100 = sphi 0, %s98
    %s101 = sphi 0, %s100
    %s115 = sphi 0, %s101
    %s123 = sphi 0, %s125
    %s126 = sphi 0, %s123
    %s127 = sphi 0, %s126
    %s143 = sphi 0, %s127
  $region4: #{bottleneck_forward.4} parent=0 // loop_header_branch
    %13 = sbr.rel (%p11) target = $region8
  $region5: #{bottleneck_forward.4} parent=0 // loop_body
    %s15 = ssub.s32 %s10, 1
    %s16 = ssub.s32 %s10, 2
    %s23 = sadd.s32 1, %s18
    %p24 = scmp.ge.s32.totalorder %s23, 1
    %s25 = scalar_select %p24, 0, %s23
    %s26 = sadd.s32 1, %s17
    %s27 = scalar_select %p24, %s26, %s17
    %p28 = scmp.ge.s32.totalorder %s27, 2
    %s29 = scalar_select %p28, 0, %s27
    %s30 = ssub.s32 %s17, %s29
    %p31 = scmp.eq.s32.totalorder %s30, 0
    %s33 = sadd.s32 %s32, 1
    %s34 = scalar_select %p31, %s32, %s33
    %p37 = pneg %p31
    %p38 = scmp.eq.s32.totalorder %s10, 1
    %p39 = por %p37, %p38
    %p40 = scmp.ne.s32.totalorder %s32, %s35
    %p41 = scmp.eq.s32.totalorder %s10, 0
    %p42 = por %p40, %p41
    %p43 = scmp.ne.s32.totalorder %s32, %s35
    %p44 = scmp.eq.s32.totalorder %s15, 1
    %p45 = por %p43, %p44
    %p46 = scmp.ne.s32.totalorder %s35, %s36
    %p47 = scmp.eq.s32.totalorder %s15, 0
    %p48 = por %p46, %p47
    %p49 = scmp.ne.s32.totalorder %s35, %s36
    %p50 = scmp.eq.s32.totalorder %s16, 1
    %p51 = por %p49, %p50
    %p53 = scmp.ne.s32.totalorder %s36, %s52
    %p54 = scmp.eq.s32.totalorder %s16, 0
    %p55 = por %p53, %p54
    %s57 = sadd.s32 %s56, 1
    %p60 = scmp.eq.s32.totalorder %s10, 1
    %p61 = scmp.ne.s32.totalorder %s56, %s58
    %p62 = scmp.eq.s32.totalorder %s10, 0
    %p63 = por %p61, %p62
    %p64 = scmp.ne.s32.totalorder %s56, %s58
    %p65 = scmp.eq.s32.totalorder %s15, 1
    %p66 = por %p64, %p65
    %p67 = scmp.ne.s32.totalorder %s58, %s59
    %p68 = scmp.eq.s32.totalorder %s15, 0
    %p69 = por %p67, %p68
    %p70 = scmp.ne.s32.totalorder %s58, %s59
    %p71 = scmp.eq.s32.totalorder %s16, 1
    %p72 = por %p70, %p71
    %p74 = scmp.ne.s32.totalorder %s59, %s73
    %p75 = scmp.eq.s32.totalorder %s16, 0
    %p76 = por %p74, %p75
    %s78 = sadd.s32 %s77, 1
    %p81 = scmp.eq.s32.totalorder %s10, 1
    %p82 = scmp.ne.s32.totalorder %s77, %s79
    %p83 = scmp.eq.s32.totalorder %s10, 0
    %p84 = por %p82, %p83
    %p85 = scmp.ne.s32.totalorder %s77, %s79
    %p86 = scmp.eq.s32.totalorder %s15, 1
    %p87 = por %p85, %p86
    %p88 = scmp.ne.s32.totalorder %s79, %s80
    %p89 = scmp.eq.s32.totalorder %s15, 0
    %p90 = por %p88, %p89
    %p91 = scmp.ne.s32.totalorder %s79, %s80
    %p92 = scmp.eq.s32.totalorder %s16, 1
    %p93 = por %p91, %p92
    %p95 = scmp.ne.s32.totalorder %s80, %s94
    %p96 = scmp.eq.s32.totalorder %s16, 0
    %p97 = por %p95, %p96
    %s99 = sadd.s32 %s98, 1
    %p102 = scmp.eq.s32.totalorder %s10, 1
    %p103 = scmp.ne.s32.totalorder %s98, %s100
    %p104 = scmp.eq.s32.totalorder %s10, 0
    %p105 = por %p103, %p104
    %p106 = scmp.ne.s32.totalorder %s98, %s100
    %p107 = scmp.eq.s32.totalorder %s15, 1
    %p108 = por %p106, %p107
    %p109 = scmp.ne.s32.totalorder %s100, %s101
    %p110 = scmp.eq.s32.totalorder %s15, 0
    %p111 = por %p109, %p110
    %p112 = scmp.ne.s32.totalorder %s100, %s101
    %p113 = scmp.eq.s32.totalorder %s16, 1
    %p114 = por %p112, %p113
    %p116 = scmp.ne.s32.totalorder %s101, %s115
    %p117 = scmp.eq.s32.totalorder %s16, 0
    %p118 = por %p116, %p117
    %s119 = ssub.s32 %s17, %s29
    %s120 = ssub.s32 %s18, %s25
    %s121 = sor.u32 %s119, %s120
    %p122 = scmp.eq.s32.totalorder %s121, 0
    %s124 = sadd.s32 %s123, 1
    %s125 = scalar_select %p122, %s123, %s124
    %p128 = pneg %p122
    %p129 = scmp.eq.s32.totalorder %s10, 1
    %p130 = por %p128, %p129
    %p131 = scmp.ne.s32.totalorder %s123, %s126
    %p132 = scmp.eq.s32.totalorder %s10, 0
    %p133 = por %p131, %p132
    %p134 = scmp.ne.s32.totalorder %s123, %s126
    %p135 = scmp.eq.s32.totalorder %s15, 1
    %p136 = por %p134, %p135
    %p137 = scmp.ne.s32.totalorder %s126, %s127
    %p138 = scmp.eq.s32.totalorder %s15, 0
    %p139 = por %p137, %p138
    %p140 = scmp.ne.s32.totalorder %s126, %s127
    %p141 = scmp.eq.s32.totalorder %s16, 1
    %p142 = por %p140, %p141
    %p144 = scmp.ne.s32.totalorder %s127, %s143
    %p145 = scmp.eq.s32.totalorder %s16, 0
    %p146 = por %p144, %p145
    %p147 = scmp.le.s32.totalorder 1, %s10
    %p148 = scmp.lt.s32.totalorder %s10, 3
    %p149 = pnand %p147, %p148
    %p150 = pneg %p149
    // Predicated region
    $region9: #{bottleneck_forward.4} parent=5 // pred_check
      _
    $region10: #{bottleneck_forward.4} parent=5 // pred_check_branch
      %152 = sbr.rel (%p149) target = $region12
    $region11: #{bottleneck_forward.4} parent=5 // pred_region
      %s153 = ssub.s32 %s10, 1
      // Predicated region
      $region13: #{bottleneck_forward.4} parent=11 // pred_check
        %p154 = pneg %p69
      $region14: #{bottleneck_forward.4} parent=11 // pred_check_branch
        %156 = sbr.rel (%p154) target = $region16
      $region15: #{bottleneck_forward.4} parent=11 // pred_region
        _
      $region16: #{bottleneck_forward.4} parent=11 // pred_fallthru
        _
      // Predicated region
      $region17: #{bottleneck_forward.4} parent=11 // pred_check
        %p157 = pneg %p90
      $region18: #{bottleneck_forward.4} parent=11 // pred_check_branch
        %159 = sbr.rel (%p157) target = $region20
      $region19: #{bottleneck_forward.4} parent=11 // pred_region
        _
      $region20: #{bottleneck_forward.4} parent=11 // pred_fallthru
        _
      // Predicated region
      $region21: #{bottleneck_forward.4} parent=11 // pred_check
        %p160 = pneg %p111
      $region22: #{bottleneck_forward.4} parent=11 // pred_check_branch
        %162 = sbr.rel (%p160) target = $region24
      $region23: #{bottleneck_forward.4} parent=11 // pred_region
        _
      $region24: #{bottleneck_forward.4} parent=11 // pred_fallthru
        _
    $region12: #{bottleneck_forward.4} parent=5 // pred_fallthru
      _
    %p163 = scmp.lt.s32.totalorder %s10, 2
    // Predicated region
    $region25: #{bottleneck_forward.4} parent=5 // pred_check
      %p164 = pneg %p163
    $region26: #{bottleneck_forward.4} parent=5 // pred_check_branch
      %166 = sbr.rel (%p164) target = $region28
    $region27: #{bottleneck_forward.4} parent=5 // pred_region
      // Predicated region
      $region29: #{bottleneck_forward.4} parent=27 // pred_check
        %p167 = pneg %p42
      $region30: #{bottleneck_forward.4} parent=27 // pred_check_branch
        %169 = sbr.rel (%p167) target = $region32
      $region31: #{bottleneck_forward.4} parent=27 // pred_region
        %p170 = scmp.lt.s32.totalorder %s17, 1
        %s171 = scalar_select %p170, %s17, 1
        %s172 = smul.addr %s171, 32
        %s173 = smul.addr %s172, 4
        %s174 = scalar_lea.vmem %s0, %s173
      $region32: #{bottleneck_forward.4} parent=27 // pred_fallthru
        _
    $region28: #{bottleneck_forward.4} parent=5 // pred_fallthru
      _
    %p175 = scmp.le.s32.totalorder 1, %s10
    %p176 = scmp.lt.s32.totalorder %s10, 3
    %p177 = pnand %p175, %p176
    %p178 = pneg %p177
    // Predicated region
    $region33: #{bottleneck_forward.4} parent=5 // pred_check
      _
    $region34: #{bottleneck_forward.4} parent=5 // pred_check_branch
      %180 = sbr.rel (%p177) target = $region36
    $region35: #{bottleneck_forward.4} parent=5 // pred_region
      %s181 = ssub.s32 %s10, 1
      %p182 = scmp.lt.s32.totalorder %s19, 1
      %s183 = scalar_select %p182, %s19, 1
      %s184 = smul.addr %s183, 32
      %s185 = smul.addr %s184, 4
      %s186 = scalar_lea.vmem %s0, %s185
      %p187 = pneg %p48
      %p188 = pneg %p45
      %p189 = pneg %p69
      %p190 = pneg %p66
      %p191 = pneg %p90
      %p192 = pneg %p87
      %p193 = pneg %p111
      %p194 = pneg %p108
      %p195 = pneg %p139
      %p196 = pneg %p136
      %s197 = smul.u32 32, %s20
      %p198 = scmp.lt.s32.totalorder %s19, 1
      %s199 = scalar_select %p198, %s19, 1
      %p200 = scmp.lt.s32.totalorder %s197, 31
      %s201 = scalar_select %p200, %s197, 31
      %s202 = smul.addr %s199, 32
      %s203 = sadd.s32 %s201, %s202
      %s204 = smul.addr %s203, 4
      %s205 = scalar_lea.vmem %s4, %s204
      %p206 = scmp.lt.s32.totalorder %s19, 1
      %s207 = scalar_select %p206, %s19, 1
      %s208 = smul.addr %s207, 32
      %s209 = smul.addr %s208, 4
      %s210 = scalar_lea.vmem %s0, %s209
      %s211 = smul.u32 32, %s20
      %p212 = scmp.lt.s32.totalorder %s19, 1
      %s213 = scalar_select %p212, %s19, 1
      %p214 = scmp.lt.s32.totalorder %s211, 31
      %s215 = scalar_select %p214, %s211, 31
      %s216 = smul.addr %s213, 32
      %s217 = sadd.s32 %s215, %s216
      %s218 = smul.addr %s217, 4
      %s219 = scalar_lea.vmem %s4, %s218
      %s220 = smul.u32 32, %s20
      %p222 = scmp.eq.s32.totalorder %s20, 0
      // Predicated region
      $region37: #{bottleneck_forward.4} parent=35 // pred_check
        %p223 = pneg %p222
      $region38: #{bottleneck_forward.4} parent=35 // pred_check_branch
        %225 = sbr.rel (%p223) target = $region40
      $region39: #{bottleneck_forward.4} parent=35 // pred_region
        %226 = vst [vmem:[#allocation2] sm:$0xf] 0
        %227 = vst [vmem:[#allocation2 + $0x4] sm:$0xf] 0
        %228 = vst [vmem:[#allocation2 + $0x8] sm:$0x1] 0
        %229 = vst [vmem:[#allocation2 + $0xc] sm:$0xf] 0
        %230 = vst [vmem:[#allocation2 + $0x10] sm:$0xf] 0
        %231 = vst [vmem:[#allocation2 + $0x14] sm:$0x1] 0
        %232 = vst [vmem:[#allocation2 + $0x18] sm:$0xf] 0
        %233 = vst [vmem:[#allocation2 + $0x1c] sm:$0xf] 0
        %234 = vst [vmem:[#allocation2 + $0x20] sm:$0x1] 0
        %235 = vst [vmem:[#allocation2 + $0x24] sm:$0xf] 0
        %236 = vst [vmem:[#allocation2 + $0x28] sm:$0xf] 0
        %237 = vst [vmem:[#allocation2 + $0x2c] sm:$0x1] 0
        %238 = vst [vmem:[#allocation2 + $0x30] sm:$0xf] 0
        %239 = vst [vmem:[#allocation2 + $0x34] sm:$0xf] 0
        %240 = vst [vmem:[#allocation2 + $0x38] sm:$0x1] 0
        %241 = vst [vmem:[#allocation2 + $0x3c] sm:$0xf] 0
        %242 = vst [vmem:[#allocation2 + $0x40] sm:$0xf] 0
        %243 = vst [vmem:[#allocation2 + $0x44] sm:$0x1] 0
        %244 = vst [vmem:[#allocation2 + $0x48] sm:$0xf] 0
        %245 = vst [vmem:[#allocation2 + $0x4c] sm:$0xf] 0
        %246 = vst [vmem:[#allocation2 + $0x50] sm:$0x1] 0
        %247 = vst [vmem:[#allocation2 + $0x54] sm:$0xf] 0
        %248 = vst [vmem:[#allocation2 + $0x58] sm:$0xf] 0
        %249 = vst [vmem:[#allocation2 + $0x5c] sm:$0x1] 0
        %250 = vst [vmem:[#allocation2 + $0x60] sm:$0xf] 0
        %251 = vst [vmem:[#allocation2 + $0x64] sm:$0xf] 0
        %252 = vst [vmem:[#allocation2 + $0x68] sm:$0x1] 0
        %253 = vst [vmem:[#allocation2 + $0x6c] sm:$0xf] 0
        %254 = vst [vmem:[#allocation2 + $0x70] sm:$0xf] 0
        %255 = vst [vmem:[#allocation2 + $0x74] sm:$0x1] 0
        %256 = vst [vmem:[#allocation2 + $0x78] sm:$0xf] 0
        %257 = vst [vmem:[#allocation2 + $0x7c] sm:$0xf] 0
        %258 = vst [vmem:[#allocation2 + $0x80] sm:$0x1] 0
        %259 = vst [vmem:[#allocation2 + $0x84] sm:$0xf] 0
        %260 = vst [vmem:[#allocation2 + $0x88] sm:$0xf] 0
        %261 = vst [vmem:[#allocation2 + $0x8c] sm:$0x1] 0
        %262 = vst [vmem:[#allocation2 + $0x90] sm:$0xf] 0
        %263 = vst [vmem:[#allocation2 + $0x94] sm:$0xf] 0
        %264 = vst [vmem:[#allocation2 + $0x98] sm:$0x1] 0
        %265 = vst [vmem:[#allocation2 + $0x9c] sm:$0xf] 0
        %266 = vst [vmem:[#allocation2 + $0xa0] sm:$0xf] 0
        %267 = vst [vmem:[#allocation2 + $0xa4] sm:$0x1] 0
        %268 = vst [vmem:[#allocation2 + $0xa8] sm:$0xf] 0
        %269 = vst [vmem:[#allocation2 + $0xac] sm:$0xf] 0
        %270 = vst [vmem:[#allocation2 + $0xb0] sm:$0x1] 0
        %271 = vst [vmem:[#allocation2 + $0xb4] sm:$0xf] 0
        %272 = vst [vmem:[#allocation2 + $0xb8] sm:$0xf] 0
        %273 = vst [vmem:[#allocation2 + $0xbc] sm:$0x1] 0
        %274 = vst [vmem:[#allocation2 + $0xc0] sm:$0xf] 0
        %275 = vst [vmem:[#allocation2 + $0xc4] sm:$0xf] 0
        %276 = vst [vmem:[#allocation2 + $0xc8] sm:$0x1] 0
        %277 = vst [vmem:[#allocation2 + $0xcc] sm:$0xf] 0
        %278 = vst [vmem:[#allocation2 + $0xd0] sm:$0xf] 0
        %279 = vst [vmem:[#allocation2 + $0xd4] sm:$0x1] 0
        %v280 = vld [vmem:[%s210] sm:$0xf]
        %v281 = vld [vmem:[%s210 + $0x4] sm:$0xf]
        %v282 = vld [vmem:[%s210 + $0x8] sm:$0xf]
        %v283 = vld [vmem:[%s210 + $0xc] sm:$0xf]
        %v284 = vld [vmem:[%s210 + $0x10] sm:$0xf]
        %v285 = vld [vmem:[%s210 + $0x14] sm:$0xf]
        %v286 = vld [vmem:[%s210 + $0x18] sm:$0xf]
        %v287 = vld [vmem:[%s210 + $0x1c] sm:$0xf]
        %v288 = vld [vmem:[%s210 + $0x20] sm:$0xf]
        %v289 = vld [vmem:[%s210 + $0x24] sm:$0xf]
        %v290 = vld [vmem:[%s210 + $0x28] sm:$0xf]
        %v291 = vld [vmem:[%s210 + $0x2c] sm:$0xf]
        %v292 = vld [vmem:[%s210 + $0x30] sm:$0xf]
        %v293 = vld [vmem:[%s210 + $0x34] sm:$0xf]
        %v294 = vld [vmem:[%s210 + $0x38] sm:$0xf]
        %v295 = vld [vmem:[%s210 + $0x3c] sm:$0xf]
        %v296 = vld [vmem:[%s210 + $0x40] sm:$0xf]
        %v297 = vld [vmem:[%s210 + $0x44] sm:$0xf]
        %v298 = vld [vmem:[%s210 + $0x48] sm:$0xf]
        %v299 = vld [vmem:[%s210 + $0x4c] sm:$0xf]
        %v300 = vld [vmem:[%s210 + $0x50] sm:$0xf]
        %v301 = vld [vmem:[%s210 + $0x54] sm:$0xf]
        %v302 = vld [vmem:[%s210 + $0x58] sm:$0xf]
        %v303 = vld [vmem:[%s210 + $0x5c] sm:$0xf]
        %v304 = vld [vmem:[%s210 + $0x60] sm:$0xf]
        %v305 = vld [vmem:[%s210 + $0x64] sm:$0xf]
        %v306 = vld [vmem:[%s210 + $0x68] sm:$0xf]
        %v307 = vld [vmem:[%s210 + $0x6c] sm:$0xf]
        %v308 = vld [vmem:[%s210 + $0x70] sm:$0xf]
        %v309 = vld [vmem:[%s210 + $0x74] sm:$0xf]
        %v310 = vld [vmem:[%s210 + $0x78] sm:$0xf]
        %v311 = vld [vmem:[%s210 + $0x7c] sm:$0xf]
        %vm312 = vsmask.f32 256
        %vm313 = vsmask.f32 4368
        %vm314 = vmor %vm312, %vm313
        %v316 = vshrl.u32 %v280, 16
        %v318 = vrot.slane %v316, 7
        %v319 = vshll.u32 %v280, 16
        %v321 = vor.u32 %v318, %v319
        %v322 = vrot.slane %v318, 4
        %v324 = vshrl.u32 %v281, 16
        %v326 = vrot.slane %v324, 7
        %v327 = vshll.u32 %v281, 16
        %v329 = vor.u32 %v326, %v327
        %v330 = vsel %vm314, %v322, %v329
        %v331 = vrot.slane %v326, 4
        %v333 = vshrl.u32 %v282, 16
        %v335 = vrot.slane %v333, 7
        %v336 = vshll.u32 %v282, 16
        %v338 = vor.u32 %v335, %v336
        %v339 = vrot.slane %v335, 4
        %v341 = vshrl.u32 %v283, 16
        %v343 = vrot.slane %v341, 7
        %v344 = vshll.u32 %v283, 16
        %v346 = vor.u32 %v343, %v344
        %v347 = vsel %vm314, %v339, %v346
        %v348 = vrot.slane %v343, 4
        %v350 = vshrl.u32 %v284, 16
        %v352 = vrot.slane %v350, 7
        %v353 = vshll.u32 %v284, 16
        %v355 = vor.u32 %v352, %v353
        %v356 = vrot.slane %v352, 4
        %v358 = vshrl.u32 %v285, 16
        %v360 = vrot.slane %v358, 7
        %v361 = vshll.u32 %v285, 16
        %v363 = vor.u32 %v360, %v361
        %v364 = vsel %vm314, %v356, %v363
        %v365 = vrot.slane %v360, 4
        %v367 = vshrl.u32 %v286, 16
        %v369 = vrot.slane %v367, 7
        %v370 = vshll.u32 %v286, 16
        %v372 = vor.u32 %v369, %v370
        %v373 = vrot.slane %v369, 4
        %v375 = vshrl.u32 %v287, 16
        %v377 = vrot.slane %v375, 7
        %v378 = vshll.u32 %v287, 16
        %v380 = vor.u32 %v377, %v378
        %v381 = vsel %vm314, %v373, %v380
        %v382 = vrot.slane %v377, 4
        %v384 = vshrl.u32 %v288, 16
        %v386 = vrot.slane %v384, 7
        %v387 = vshll.u32 %v288, 16
        %v389 = vor.u32 %v386, %v387
        %v390 = vrot.slane %v386, 4
        %v392 = vshrl.u32 %v289, 16
        %v394 = vrot.slane %v392, 7
        %v395 = vshll.u32 %v289, 16
        %v397 = vor.u32 %v394, %v395
        %v398 = vsel %vm314, %v390, %v397
        %v399 = vrot.slane %v394, 4
        %v401 = vshrl.u32 %v290, 16
        %v403 = vrot.slane %v401, 7
        %v404 = vshll.u32 %v290, 16
        %v406 = vor.u32 %v403, %v404
        %v407 = vrot.slane %v403, 4
        %v409 = vshrl.u32 %v291, 16
        %v411 = vrot.slane %v409, 7
        %v412 = vshll.u32 %v291, 16
        %v414 = vor.u32 %v411, %v412
        %v415 = vsel %vm314, %v407, %v414
        %v416 = vrot.slane %v411, 4
        %v418 = vshrl.u32 %v292, 16
        %v420 = vrot.slane %v418, 7
        %v421 = vshll.u32 %v292, 16
        %v423 = vor.u32 %v420, %v421
        %v424 = vrot.slane %v420, 4
        %v426 = vshrl.u32 %v293, 16
        %v428 = vrot.slane %v426, 7
        %v429 = vshll.u32 %v293, 16
        %v431 = vor.u32 %v428, %v429
        %v432 = vsel %vm314, %v424, %v431
        %v433 = vrot.slane %v428, 4
        %v435 = vshrl.u32 %v294, 16
        %v437 = vrot.slane %v435, 7
        %v438 = vshll.u32 %v294, 16
        %v440 = vor.u32 %v437, %v438
        %v441 = vrot.slane %v437, 4
        %v443 = vshrl.u32 %v295, 16
        %v445 = vrot.slane %v443, 7
        %v446 = vshll.u32 %v295, 16
        %v448 = vor.u32 %v445, %v446
        %v449 = vsel %vm314, %v441, %v448
        %v450 = vrot.slane %v445, 4
        %v452 = vshrl.u32 %v296, 16
        %v454 = vrot.slane %v452, 7
        %v455 = vshll.u32 %v296, 16
        %v457 = vor.u32 %v454, %v455
        %v458 = vrot.slane %v454, 4
        %v460 = vshrl.u32 %v297, 16
        %v462 = vrot.slane %v460, 7
        %v463 = vshll.u32 %v297, 16
        %v465 = vor.u32 %v462, %v463
        %v466 = vsel %vm314, %v458, %v465
        %v467 = vrot.slane %v462, 4
        %v469 = vshrl.u32 %v298, 16
        %v471 = vrot.slane %v469, 7
        %v472 = vshll.u32 %v298, 16
        %v474 = vor.u32 %v471, %v472
        %v475 = vrot.slane %v471, 4
        %v477 = vshrl.u32 %v299, 16
        %v479 = vrot.slane %v477, 7
        %v480 = vshll.u32 %v299, 16
        %v482 = vor.u32 %v479, %v480
        %v483 = vsel %vm314, %v475, %v482
        %v484 = vrot.slane %v479, 4
        %v486 = vshrl.u32 %v300, 16
        %v488 = vrot.slane %v486, 7
        %v489 = vshll.u32 %v300, 16
        %v491 = vor.u32 %v488, %v489
        %v492 = vrot.slane %v488, 4
        %v494 = vshrl.u32 %v301, 16
        %v496 = vrot.slane %v494, 7
        %v497 = vshll.u32 %v301, 16
        %v499 = vor.u32 %v496, %v497
        %v500 = vsel %vm314, %v492, %v499
        %v501 = vrot.slane %v496, 4
        %v503 = vshrl.u32 %v302, 16
        %v505 = vrot.slane %v503, 7
        %v506 = vshll.u32 %v302, 16
        %v508 = vor.u32 %v505, %v506
        %v509 = vrot.slane %v505, 4
        %v511 = vshrl.u32 %v303, 16
        %v513 = vrot.slane %v511, 7
        %v514 = vshll.u32 %v303, 16
        %v516 = vor.u32 %v513, %v514
        %v517 = vsel %vm314, %v509, %v516
        %v518 = vrot.slane %v513, 4
        %v520 = vshrl.u32 %v304, 16
        %v522 = vrot.slane %v520, 7
        %v523 = vshll.u32 %v304, 16
        %v525 = vor.u32 %v522, %v523
        %v526 = vrot.slane %v522, 4
        %v528 = vshrl.u32 %v305, 16
        %v530 = vrot.slane %v528, 7
        %v531 = vshll.u32 %v305, 16
        %v533 = vor.u32 %v530, %v531
        %v534 = vsel %vm314, %v526, %v533
        %v535 = vrot.slane %v530, 4
        %v537 = vshrl.u32 %v306, 16
        %v539 = vrot.slane %v537, 7
        %v540 = vshll.u32 %v306, 16
        %v542 = vor.u32 %v539, %v540
        %v543 = vrot.slane %v539, 4
        %v545 = vshrl.u32 %v307, 16
        %v547 = vrot.slane %v545, 7
        %v548 = vshll.u32 %v307, 16
        %v550 = vor.u32 %v547, %v548
        %v551 = vsel %vm314, %v543, %v550
        %v552 = vrot.slane %v547, 4
        %v554 = vshrl.u32 %v308, 16
        %v556 = vrot.slane %v554, 7
        %v557 = vshll.u32 %v308, 16
        %v559 = vor.u32 %v556, %v557
        %v560 = vrot.slane %v556, 4
        %v562 = vshrl.u32 %v309, 16
        %v564 = vrot.slane %v562, 7
        %v565 = vshll.u32 %v309, 16
        %v567 = vor.u32 %v564, %v565
        %v568 = vsel %vm314, %v560, %v567
        %v569 = vrot.slane %v564, 4
        %v571 = vshrl.u32 %v310, 16
        %v573 = vrot.slane %v571, 7
        %v574 = vshll.u32 %v310, 16
        %v576 = vor.u32 %v573, %v574
        %v577 = vrot.slane %v573, 4
        %v579 = vshrl.u32 %v311, 16
        %v581 = vrot.slane %v579, 7
        %v582 = vshll.u32 %v311, 16
        %v584 = vor.u32 %v581, %v582
        %v585 = vsel %vm314, %v577, %v584
        %v586 = vrot.slane %v581, 4
        %s635 = scalar_lea.vmem [#allocation2], 12
        %vm636 = vcmask 1043456
        %vm637 = vsmask.f32 7938
        %vm638 = vmand %vm636, %vm637
        %v639 = vld [vmem:[%s635] sm:$0xf]
        %v640 = vsel %vm638, %v321, %v639
        %641 = vst [vmem:[%s635] sm:$0xf] %v640
        %642 = vst [vmem:[%s635 + $0x4] sm:$0xf] %v330
        %vm643 = vcmask 1040384
        %vm644 = vmand %vm643, %vm312
        %v645 = vld [vmem:[%s635 + $0x8] sm:$0x1]
        %v646 = vsel %vm644, %v331, %v645
        %647 = vst [vmem:[%s635 + $0x8] sm:$0x1] %v646
        %v648 = vld [vmem:[%s635 + $0xc] sm:$0xf]
        %v649 = vsel %vm638, %v338, %v648
        %650 = vst [vmem:[%s635 + $0xc] sm:$0xf] %v649
        %651 = vst [vmem:[%s635 + $0x10] sm:$0xf] %v347
        %v652 = vld [vmem:[%s635 + $0x14] sm:$0x1]
        %v653 = vsel %vm644, %v348, %v652
        %654 = vst [vmem:[%s635 + $0x14] sm:$0x1] %v653
        %v655 = vld [vmem:[%s635 + $0x18] sm:$0xf]
        %v656 = vsel %vm638, %v355, %v655
        %657 = vst [vmem:[%s635 + $0x18] sm:$0xf] %v656
        %658 = vst [vmem:[%s635 + $0x1c] sm:$0xf] %v364
        %v659 = vld [vmem:[%s635 + $0x20] sm:$0x1]
        %v660 = vsel %vm644, %v365, %v659
        %661 = vst [vmem:[%s635 + $0x20] sm:$0x1] %v660
        %v662 = vld [vmem:[%s635 + $0x24] sm:$0xf]
        %v663 = vsel %vm638, %v372, %v662
        %664 = vst [vmem:[%s635 + $0x24] sm:$0xf] %v663
        %665 = vst [vmem:[%s635 + $0x28] sm:$0xf] %v381
        %v666 = vld [vmem:[%s635 + $0x2c] sm:$0x1]
        %v667 = vsel %vm644, %v382, %v666
        %668 = vst [vmem:[%s635 + $0x2c] sm:$0x1] %v667
        %v669 = vld [vmem:[%s635 + $0x30] sm:$0xf]
        %v670 = vsel %vm638, %v389, %v669
        %671 = vst [vmem:[%s635 + $0x30] sm:$0xf] %v670
        %672 = vst [vmem:[%s635 + $0x34] sm:$0xf] %v398
        %v673 = vld [vmem:[%s635 + $0x38] sm:$0x1]
        %v674 = vsel %vm644, %v399, %v673
        %675 = vst [vmem:[%s635 + $0x38] sm:$0x1] %v674
        %v676 = vld [vmem:[%s635 + $0x3c] sm:$0xf]
        %v677 = vsel %vm638, %v406, %v676
        %678 = vst [vmem:[%s635 + $0x3c] sm:$0xf] %v677
        %679 = vst [vmem:[%s635 + $0x40] sm:$0xf] %v415
        %v680 = vld [vmem:[%s635 + $0x44] sm:$0x1]
        %v681 = vsel %vm644, %v416, %v680
        %682 = vst [vmem:[%s635 + $0x44] sm:$0x1] %v681
        %v683 = vld [vmem:[%s635 + $0x48] sm:$0xf]
        %v684 = vsel %vm638, %v423, %v683
        %685 = vst [vmem:[%s635 + $0x48] sm:$0xf] %v684
        %686 = vst [vmem:[%s635 + $0x4c] sm:$0xf] %v432
        %v687 = vld [vmem:[%s635 + $0x50] sm:$0x1]
        %v688 = vsel %vm644, %v433, %v687
        %689 = vst [vmem:[%s635 + $0x50] sm:$0x1] %v688
        %v690 = vld [vmem:[%s635 + $0x54] sm:$0xf]
        %v691 = vsel %vm638, %v440, %v690
        %692 = vst [vmem:[%s635 + $0x54] sm:$0xf] %v691
        %693 = vst [vmem:[%s635 + $0x58] sm:$0xf] %v449
        %v694 = vld [vmem:[%s635 + $0x5c] sm:$0x1]
        %v695 = vsel %vm644, %v450, %v694
        %696 = vst [vmem:[%s635 + $0x5c] sm:$0x1] %v695
        %v697 = vld [vmem:[%s635 + $0x60] sm:$0xf]
        %v698 = vsel %vm638, %v457, %v697
        %699 = vst [vmem:[%s635 + $0x60] sm:$0xf] %v698
        %700 = vst [vmem:[%s635 + $0x64] sm:$0xf] %v466
        %v701 = vld [vmem:[%s635 + $0x68] sm:$0x1]
        %v702 = vsel %vm644, %v467, %v701
        %703 = vst [vmem:[%s635 + $0x68] sm:$0x1] %v702
        %v704 = vld [vmem:[%s635 + $0x6c] sm:$0xf]
        %v705 = vsel %vm638, %v474, %v704
        %706 = vst [vmem:[%s635 + $0x6c] sm:$0xf] %v705
        %707 = vst [vmem:[%s635 + $0x70] sm:$0xf] %v483
        %v708 = vld [vmem:[%s635 + $0x74] sm:$0x1]
        %v709 = vsel %vm644, %v484, %v708
        %710 = vst [vmem:[%s635 + $0x74] sm:$0x1] %v709
        %v711 = vld [vmem:[%s635 + $0x78] sm:$0xf]
        %v712 = vsel %vm638, %v491, %v711
        %713 = vst [vmem:[%s635 + $0x78] sm:$0xf] %v712
        %714 = vst [vmem:[%s635 + $0x7c] sm:$0xf] %v500
        %v715 = vld [vmem:[%s635 + $0x80] sm:$0x1]
        %v716 = vsel %vm644, %v501, %v715
        %717 = vst [vmem:[%s635 + $0x80] sm:$0x1] %v716
        %v718 = vld [vmem:[%s635 + $0x84] sm:$0xf]
        %v719 = vsel %vm638, %v508, %v718
        %720 = vst [vmem:[%s635 + $0x84] sm:$0xf] %v719
        %721 = vst [vmem:[%s635 + $0x88] sm:$0xf] %v517
        %v722 = vld [vmem:[%s635 + $0x8c] sm:$0x1]
        %v723 = vsel %vm644, %v518, %v722
        %724 = vst [vmem:[%s635 + $0x8c] sm:$0x1] %v723
        %v725 = vld [vmem:[%s635 + $0x90] sm:$0xf]
        %v726 = vsel %vm638, %v525, %v725
        %727 = vst [vmem:[%s635 + $0x90] sm:$0xf] %v726
        %728 = vst [vmem:[%s635 + $0x94] sm:$0xf] %v534
        %v729 = vld [vmem:[%s635 + $0x98] sm:$0x1]
        %v730 = vsel %vm644, %v535, %v729
        %731 = vst [vmem:[%s635 + $0x98] sm:$0x1] %v730
        %v732 = vld [vmem:[%s635 + $0x9c] sm:$0xf]
        %v733 = vsel %vm638, %v542, %v732
        %734 = vst [vmem:[%s635 + $0x9c] sm:$0xf] %v733
        %735 = vst [vmem:[%s635 + $0xa0] sm:$0xf] %v551
        %v736 = vld [vmem:[%s635 + $0xa4] sm:$0x1]
        %v737 = vsel %vm644, %v552, %v736
        %738 = vst [vmem:[%s635 + $0xa4] sm:$0x1] %v737
        %v739 = vld [vmem:[%s635 + $0xa8] sm:$0xf]
        %v740 = vsel %vm638, %v559, %v739
        %741 = vst [vmem:[%s635 + $0xa8] sm:$0xf] %v740
        %742 = vst [vmem:[%s635 + $0xac] sm:$0xf] %v568
        %v743 = vld [vmem:[%s635 + $0xb0] sm:$0x1]
        %v744 = vsel %vm644, %v569, %v743
        %745 = vst [vmem:[%s635 + $0xb0] sm:$0x1] %v744
        %v746 = vld [vmem:[%s635 + $0xb4] sm:$0xf]
        %v747 = vsel %vm638, %v576, %v746
        %748 = vst [vmem:[%s635 + $0xb4] sm:$0xf] %v747
        %749 = vst [vmem:[%s635 + $0xb8] sm:$0xf] %v585
        %v750 = vld [vmem:[%s635 + $0xbc] sm:$0x1]
        %v751 = vsel %vm644, %v586, %v750
        %752 = vst [vmem:[%s635 + $0xbc] sm:$0x1] %v751
      $region40: #{bottleneck_forward.4} parent=35 // pred_fallthru
        _
      %s753 = smul.u32 %s20, 16
      %s754 = smul.u32 %s753, 3
      %s755 = smul.addr %s754, 4
      %s756 = scalar_lea.vmem [#allocation2], %s755
      %v757 = vld [vmem:[%s756] sm:$0xf]
      %v758 = vld [vmem:[%s756 + $0x4] sm:$0xf]
      %v759 = vld [vmem:[%s756 + $0xc] sm:$0xf]
      %v760 = vld [vmem:[%s756 + $0x10] sm:$0xf]
      %v761 = vld [vmem:[%s756 + $0x18] sm:$0xf]
      %v762 = vld [vmem:[%s756 + $0x1c] sm:$0xf]
      %v763 = vld [vmem:[%s756 + $0x24] sm:$0xf]
      %v764 = vld [vmem:[%s756 + $0x28] sm:$0xf]
      %v765 = vld [vmem:[%s756 + $0x30] sm:$0xf]
      %v766 = vld [vmem:[%s756 + $0x34] sm:$0xf]
      %v767 = vld [vmem:[%s756 + $0x3c] sm:$0xf]
      %v768 = vld [vmem:[%s756 + $0x40] sm:$0xf]
      %v769 = vld [vmem:[%s756 + $0x48] sm:$0xf]
      %v770 = vld [vmem:[%s756 + $0x4c] sm:$0xf]
      %v771 = vld [vmem:[%s756 + $0x54] sm:$0xf]
      %v772 = vld [vmem:[%s756 + $0x58] sm:$0xf]
      %v773 = vld [vmem:[%s756 + $0x60] sm:$0xf]
      %v774 = vld [vmem:[%s756 + $0x64] sm:$0xf]
      %v775 = vld [vmem:[%s756 + $0x6c] sm:$0xf]
      %v776 = vld [vmem:[%s756 + $0x70] sm:$0xf]
      %v777 = vld [vmem:[%s756 + $0x78] sm:$0xf]
      %v778 = vld [vmem:[%s756 + $0x7c] sm:$0xf]
      %v779 = vld [vmem:[%s756 + $0x84] sm:$0xf]
      %v780 = vld [vmem:[%s756 + $0x88] sm:$0xf]
      %v781 = vld [vmem:[%s756 + $0x90] sm:$0xf]
      %v782 = vld [vmem:[%s756 + $0x94] sm:$0xf]
      %v783 = vld [vmem:[%s756 + $0x9c] sm:$0xf]
      %v784 = vld [vmem:[%s756 + $0xa0] sm:$0xf]
      %v785 = vld [vmem:[%s756 + $0xa8] sm:$0xf]
      %v786 = vld [vmem:[%s756 + $0xac] sm:$0xf]
      %v787 = vld [vmem:[%s756 + $0xb4] sm:$0xf]
      %v788 = vld [vmem:[%s756 + $0xb8] sm:$0xf]
      %v789 = vld [vmem:[%s756 + $0x8] sm:$0x1]
      %v790 = vld [vmem:[%s756 + $0x14] sm:$0x1]
      %v791 = vld [vmem:[%s756 + $0x20] sm:$0x1]
      %v792 = vld [vmem:[%s756 + $0x2c] sm:$0x1]
      %v793 = vld [vmem:[%s756 + $0x38] sm:$0x1]
      %v794 = vld [vmem:[%s756 + $0x44] sm:$0x1]
      %v795 = vld [vmem:[%s756 + $0x50] sm:$0x1]
      %v796 = vld [vmem:[%s756 + $0x5c] sm:$0x1]
      %v797 = vld [vmem:[%s756 + $0x68] sm:$0x1]
      %v798 = vld [vmem:[%s756 + $0x74] sm:$0x1]
      %v799 = vld [vmem:[%s756 + $0x80] sm:$0x1]
      %v800 = vld [vmem:[%s756 + $0x8c] sm:$0x1]
      %v801 = vld [vmem:[%s756 + $0x98] sm:$0x1]
      %v802 = vld [vmem:[%s756 + $0xa4] sm:$0x1]
      %v803 = vld [vmem:[%s756 + $0xb0] sm:$0x1]
      %v804 = vld [vmem:[%s756 + $0xbc] sm:$0x1]
      %v805 = vld [vmem:[%s756] sm:$0xe]
      %v806 = vld [vmem:[%s756 + $0xc] sm:$0xe]
      %v807 = vld [vmem:[%s756 + $0x18] sm:$0xe]
      %v808 = vld [vmem:[%s756 + $0x24] sm:$0xe]
      %v809 = vld [vmem:[%s756 + $0x30] sm:$0xe]
      %v810 = vld [vmem:[%s756 + $0x3c] sm:$0xe]
      %v811 = vld [vmem:[%s756 + $0x48] sm:$0xe]
      %v812 = vld [vmem:[%s756 + $0x54] sm:$0xe]
      %v813 = vld [vmem:[%s756 + $0x60] sm:$0xe]
      %v814 = vld [vmem:[%s756 + $0x6c] sm:$0xe]
      %v815 = vld [vmem:[%s756 + $0x78] sm:$0xe]
      %v816 = vld [vmem:[%s756 + $0x84] sm:$0xe]
      %v817 = vld [vmem:[%s756 + $0x90] sm:$0xe]
      %v818 = vld [vmem:[%s756 + $0x9c] sm:$0xe]
      %v819 = vld [vmem:[%s756 + $0xa8] sm:$0xe]
      %v820 = vld [vmem:[%s756 + $0xb4] sm:$0xe]
      %v853 = vunpack.c.l.b16 %v757
      %v854 = vunpack.c.l.b16 %v758
      %v855 = vunpack.c.l.b16 %v759
      %v856 = vunpack.c.l.b16 %v760
      %v857 = vunpack.c.l.b16 %v761
      %v858 = vunpack.c.l.b16 %v762
      %v859 = vunpack.c.l.b16 %v763
      %v860 = vunpack.c.l.b16 %v764
      %v861 = vunpack.c.l.b16 %v765
      %v862 = vunpack.c.l.b16 %v766
      %v863 = vunpack.c.l.b16 %v767
      %v864 = vunpack.c.l.b16 %v768
      %v865 = vunpack.c.l.b16 %v769
      %v866 = vunpack.c.l.b16 %v770
      %v867 = vunpack.c.l.b16 %v771
      %v868 = vunpack.c.l.b16 %v772
      %v869 = vunpack.c.l.b16 %v773
      %v870 = vunpack.c.l.b16 %v774
      %v871 = vunpack.c.l.b16 %v775
      %v872 = vunpack.c.l.b16 %v776
      %v873 = vunpack.c.l.b16 %v777
      %v874 = vunpack.c.l.b16 %v778
      %v875 = vunpack.c.l.b16 %v779
      %v876 = vunpack.c.l.b16 %v780
      %v877 = vunpack.c.l.b16 %v781
      %v878 = vunpack.c.l.b16 %v782
      %v879 = vunpack.c.l.b16 %v783
      %v880 = vunpack.c.l.b16 %v784
      %v881 = vunpack.c.l.b16 %v785
      %v882 = vunpack.c.l.b16 %v786
      %v883 = vunpack.c.l.b16 %v787
      %v884 = vunpack.c.l.b16 %v788
      %v885 = vpack.c.b16 %v854, %v853
      %v886 = vpack.c.b16 %v856, %v855
      %v887 = vpack.c.b16 %v858, %v857
      %v888 = vpack.c.b16 %v860, %v859
      %v889 = vpack.c.b16 %v862, %v861
      %v890 = vpack.c.b16 %v864, %v863
      %v891 = vpack.c.b16 %v866, %v865
      %v892 = vpack.c.b16 %v868, %v867
      %v893 = vpack.c.b16 %v870, %v869
      %v894 = vpack.c.b16 %v872, %v871
      %v895 = vpack.c.b16 %v874, %v873
      %v896 = vpack.c.b16 %v876, %v875
      %v897 = vpack.c.b16 %v878, %v877
      %v898 = vpack.c.b16 %v880, %v879
      %v899 = vpack.c.b16 %v882, %v881
      %v900 = vpack.c.b16 %v884, %v883
      %v933 = vunpack.c.l.b16 %v789
      %v934 = vunpack.c.l.b16 %v790
      %v935 = vunpack.c.l.b16 %v791
      %v936 = vunpack.c.l.b16 %v792
      %v937 = vunpack.c.l.b16 %v793
      %v938 = vunpack.c.l.b16 %v794
      %v939 = vunpack.c.l.b16 %v795
      %v940 = vunpack.c.l.b16 %v796
      %v941 = vunpack.c.l.b16 %v797
      %v942 = vunpack.c.l.b16 %v798
      %v943 = vunpack.c.l.b16 %v799
      %v944 = vunpack.c.l.b16 %v800
      %v945 = vunpack.c.l.b16 %v801
      %v946 = vunpack.c.l.b16 %v802
      %v947 = vunpack.c.l.b16 %v803
      %v948 = vunpack.c.l.b16 %v804
      %v949 = vpack.c.b16 %v933, %v933
      %v950 = vpack.c.b16 %v934, %v934
      %v951 = vpack.c.b16 %v935, %v935
      %v952 = vpack.c.b16 %v936, %v936
      %v953 = vpack.c.b16 %v937, %v937
      %v954 = vpack.c.b16 %v938, %v938
      %v955 = vpack.c.b16 %v939, %v939
      %v956 = vpack.c.b16 %v940, %v940
      %v957 = vpack.c.b16 %v941, %v941
      %v958 = vpack.c.b16 %v942, %v942
      %v959 = vpack.c.b16 %v943, %v943
      %v960 = vpack.c.b16 %v944, %v944
      %v961 = vpack.c.b16 %v945, %v945
      %v962 = vpack.c.b16 %v946, %v946
      %v963 = vpack.c.b16 %v947, %v947
      %v964 = vpack.c.b16 %v948, %v948
      %vm965 = vsmask.f32 7424
      %v967 = vshrl.u32 %v885, 16
      %v969 = vshll.u32 %v885, 16
      %v971 = vrot.slane %v969, 1
      %v972 = vor.u32 %v967, %v971
      %v974 = vshll.u32 %v949, 16
      %v976 = vrot.slane %v974, 1
      %v977 = vsel %vm965, %v972, %v976
      %v979 = vshrl.u32 %v886, 16
      %v981 = vshll.u32 %v886, 16
      %v983 = vrot.slane %v981, 1
      %v984 = vor.u32 %v979, %v983
      %v986 = vshll.u32 %v950, 16
      %v988 = vrot.slane %v986, 1
      %v989 = vsel %vm965, %v984, %v988
      %v991 = vshrl.u32 %v887, 16
      %v993 = vshll.u32 %v887, 16
      %v995 = vrot.slane %v993, 1
      %v996 = vor.u32 %v991, %v995
      %v998 = vshll.u32 %v951, 16
      %v1000 = vrot.slane %v998, 1
      %v1001 = vsel %vm965, %v996, %v1000
      %v1003 = vshrl.u32 %v888, 16
      %v1005 = vshll.u32 %v888, 16
      %v1007 = vrot.slane %v1005, 1
      %v1008 = vor.u32 %v1003, %v1007
      %v1010 = vshll.u32 %v952, 16
      %v1012 = vrot.slane %v1010, 1
      %v1013 = vsel %vm965, %v1008, %v1012
      %v1015 = vshrl.u32 %v889, 16
      %v1017 = vshll.u32 %v889, 16
      %v1019 = vrot.slane %v1017, 1
      %v1020 = vor.u32 %v1015, %v1019
      %v1022 = vshll.u32 %v953, 16
      %v1024 = vrot.slane %v1022, 1
      %v1025 = vsel %vm965, %v1020, %v1024
      %v1027 = vshrl.u32 %v890, 16
      %v1029 = vshll.u32 %v890, 16
      %v1031 = vrot.slane %v1029, 1
      %v1032 = vor.u32 %v1027, %v1031
      %v1034 = vshll.u32 %v954, 16
      %v1036 = vrot.slane %v1034, 1
      %v1037 = vsel %vm965, %v1032, %v1036
      %v1039 = vshrl.u32 %v891, 16
      %v1041 = vshll.u32 %v891, 16
      %v1043 = vrot.slane %v1041, 1
      %v1044 = vor.u32 %v1039, %v1043
      %v1046 = vshll.u32 %v955, 16
      %v1048 = vrot.slane %v1046, 1
      %v1049 = vsel %vm965, %v1044, %v1048
      %v1051 = vshrl.u32 %v892, 16
      %v1053 = vshll.u32 %v892, 16
      %v1055 = vrot.slane %v1053, 1
      %v1056 = vor.u32 %v1051, %v1055
      %v1058 = vshll.u32 %v956, 16
      %v1060 = vrot.slane %v1058, 1
      %v1061 = vsel %vm965, %v1056, %v1060
      %v1063 = vshrl.u32 %v893, 16
      %v1065 = vshll.u32 %v893, 16
      %v1067 = vrot.slane %v1065, 1
      %v1068 = vor.u32 %v1063, %v1067
      %v1070 = vshll.u32 %v957, 16
      %v1072 = vrot.slane %v1070, 1
      %v1073 = vsel %vm965, %v1068, %v1072
      %v1075 = vshrl.u32 %v894, 16
      %v1077 = vshll.u32 %v894, 16
      %v1079 = vrot.slane %v1077, 1
      %v1080 = vor.u32 %v1075, %v1079
      %v1082 = vshll.u32 %v958, 16
      %v1084 = vrot.slane %v1082, 1
      %v1085 = vsel %vm965, %v1080, %v1084
      %v1087 = vshrl.u32 %v895, 16
      %v1089 = vshll.u32 %v895, 16
      %v1091 = vrot.slane %v1089, 1
      %v1092 = vor.u32 %v1087, %v1091
      %v1094 = vshll.u32 %v959, 16
      %v1096 = vrot.slane %v1094, 1
      %v1097 = vsel %vm965, %v1092, %v1096
      %v1099 = vshrl.u32 %v896, 16
      %v1101 = vshll.u32 %v896, 16
      %v1103 = vrot.slane %v1101, 1
      %v1104 = vor.u32 %v1099, %v1103
      %v1106 = vshll.u32 %v960, 16
      %v1108 = vrot.slane %v1106, 1
      %v1109 = vsel %vm965, %v1104, %v1108
      %v1111 = vshrl.u32 %v897, 16
      %v1113 = vshll.u32 %v897, 16
      %v1115 = vrot.slane %v1113, 1
      %v1116 = vor.u32 %v1111, %v1115
      %v1118 = vshll.u32 %v961, 16
      %v1120 = vrot.slane %v1118, 1
      %v1121 = vsel %vm965, %v1116, %v1120
      %v1123 = vshrl.u32 %v898, 16
      %v1125 = vshll.u32 %v898, 16
      %v1127 = vrot.slane %v1125, 1
      %v1128 = vor.u32 %v1123, %v1127
      %v1130 = vshll.u32 %v962, 16
      %v1132 = vrot.slane %v1130, 1
      %v1133 = vsel %vm965, %v1128, %v1132
      %v1135 = vshrl.u32 %v899, 16
      %v1137 = vshll.u32 %v899, 16
      %v1139 = vrot.slane %v1137, 1
      %v1140 = vor.u32 %v1135, %v1139
      %v1142 = vshll.u32 %v963, 16
      %v1144 = vrot.slane %v1142, 1
      %v1145 = vsel %vm965, %v1140, %v1144
      %v1147 = vshrl.u32 %v900, 16
      %v1149 = vshll.u32 %v900, 16
      %v1151 = vrot.slane %v1149, 1
      %v1152 = vor.u32 %v1147, %v1151
      %v1154 = vshll.u32 %v964, 16
      %v1156 = vrot.slane %v1154, 1
      %v1157 = vsel %vm965, %v1152, %v1156
      %v1190 = vunpack.c.l.b16 %v805
      %v1191 = vunpack.c.l.b16 %v806
      %v1192 = vunpack.c.l.b16 %v807
      %v1193 = vunpack.c.l.b16 %v808
      %v1194 = vunpack.c.l.b16 %v809
      %v1195 = vunpack.c.l.b16 %v810
      %v1196 = vunpack.c.l.b16 %v811
      %v1197 = vunpack.c.l.b16 %v812
      %v1198 = vunpack.c.l.b16 %v813
      %v1199 = vunpack.c.l.b16 %v814
      %v1200 = vunpack.c.l.b16 %v815
      %v1201 = vunpack.c.l.b16 %v816
      %v1202 = vunpack.c.l.b16 %v817
      %v1203 = vunpack.c.l.b16 %v818
      %v1204 = vunpack.c.l.b16 %v819
      %v1205 = vunpack.c.l.b16 %v820
      %v1206 = vpack.c.b16 %v854, %v1190
      %v1207 = vpack.c.b16 %v856, %v1191
      %v1208 = vpack.c.b16 %v858, %v1192
      %v1209 = vpack.c.b16 %v860, %v1193
      %v1210 = vpack.c.b16 %v862, %v1194
      %v1211 = vpack.c.b16 %v864, %v1195
      %v1212 = vpack.c.b16 %v866, %v1196
      %v1213 = vpack.c.b16 %v868, %v1197
      %v1214 = vpack.c.b16 %v870, %v1198
      %v1215 = vpack.c.b16 %v872, %v1199
      %v1216 = vpack.c.b16 %v874, %v1200
      %v1217 = vpack.c.b16 %v876, %v1201
      %v1218 = vpack.c.b16 %v878, %v1202
      %v1219 = vpack.c.b16 %v880, %v1203
      %v1220 = vpack.c.b16 %v882, %v1204
      %v1221 = vpack.c.b16 %v884, %v1205
      %vm1222 = vcmask 1046528
      %v1223 = vrot.slane %v1206, 1
      %v1224 = vrot.slane %v949, 1
      %v1225 = vsel %vm1222, %v1223, %v1224
      %v1226 = vrot.slane %v1207, 1
      %v1227 = vrot.slane %v950, 1
      %v1228 = vsel %vm1222, %v1226, %v1227
      %v1229 = vrot.slane %v1208, 1
      %v1230 = vrot.slane %v951, 1
      %v1231 = vsel %vm1222, %v1229, %v1230
      %v1232 = vrot.slane %v1209, 1
      %v1233 = vrot.slane %v952, 1
      %v1234 = vsel %vm1222, %v1232, %v1233
      %v1235 = vrot.slane %v1210, 1
      %v1236 = vrot.slane %v953, 1
      %v1237 = vsel %vm1222, %v1235, %v1236
      %v1238 = vrot.slane %v1211, 1
      %v1239 = vrot.slane %v954, 1
      %v1240 = vsel %vm1222, %v1238, %v1239
      %v1241 = vrot.slane %v1212, 1
      %v1242 = vrot.slane %v955, 1
      %v1243 = vsel %vm1222, %v1241, %v1242
      %v1244 = vrot.slane %v1213, 1
      %v1245 = vrot.slane %v956, 1
      %v1246 = vsel %vm1222, %v1244, %v1245
      %v1247 = vrot.slane %v1214, 1
      %v1248 = vrot.slane %v957, 1
      %v1249 = vsel %vm1222, %v1247, %v1248
      %v1250 = vrot.slane %v1215, 1
      %v1251 = vrot.slane %v958, 1
      %v1252 = vsel %vm1222, %v1250, %v1251
      %v1253 = vrot.slane %v1216, 1
      %v1254 = vrot.slane %v959, 1
      %v1255 = vsel %vm1222, %v1253, %v1254
      %v1256 = vrot.slane %v1217, 1
      %v1257 = vrot.slane %v960, 1
      %v1258 = vsel %vm1222, %v1256, %v1257
      %v1259 = vrot.slane %v1218, 1
      %v1260 = vrot.slane %v961, 1
      %v1261 = vsel %vm1222, %v1259, %v1260
      %v1262 = vrot.slane %v1219, 1
      %v1263 = vrot.slane %v962, 1
      %v1264 = vsel %vm1222, %v1262, %v1263
      %v1265 = vrot.slane %v1220, 1
      %v1266 = vrot.slane %v963, 1
      %v1267 = vsel %vm1222, %v1265, %v1266
      %v1268 = vrot.slane %v1221, 1
      %v1269 = vrot.slane %v964, 1
      %v1270 = vsel %vm1222, %v1268, %v1269
      %v1287 = vld [vmem:[%s1] sm:$0xf]
      %v1288 = vld [vmem:[%s1 + $0x4] sm:$0xf]
      %v1289 = vld [vmem:[%s1 + $0x8] sm:$0xf]
      %v1290 = vld [vmem:[%s1 + $0xc] sm:$0xf]
      %v1291 = vld [vmem:[%s1 + $0x10] sm:$0xf]
      %v1292 = vld [vmem:[%s1 + $0x14] sm:$0xf]
      %v1293 = vld [vmem:[%s1 + $0x18] sm:$0xf]
      %v1294 = vld [vmem:[%s1 + $0x1c] sm:$0xf]
      %v1295 = vld [vmem:[%s1 + $0x20] sm:$0xf]
      %v1296 = vld [vmem:[%s1 + $0x24] sm:$0xf]
      %v1297 = vld [vmem:[%s1 + $0x28] sm:$0xf]
      %v1298 = vld [vmem:[%s1 + $0x2c] sm:$0xf]
      %v1299 = vld [vmem:[%s1 + $0x30] sm:$0xf]
      %v1300 = vld [vmem:[%s1 + $0x34] sm:$0xf]
      %v1301 = vld [vmem:[%s1 + $0x38] sm:$0xf]
      %v1302 = vld [vmem:[%s1 + $0x3c] sm:$0xf]
      %v1303 = vld [vmem:[%s1 + $0x40] sm:$0xf]
      %v1304 = vld [vmem:[%s1 + $0x44] sm:$0xf]
      %v1305 = vld [vmem:[%s1 + $0x48] sm:$0xf]
      %v1306 = vld [vmem:[%s1 + $0x4c] sm:$0xf]
      %v1307 = vld [vmem:[%s1 + $0x50] sm:$0xf]
      %v1308 = vld [vmem:[%s1 + $0x54] sm:$0xf]
      %v1309 = vld [vmem:[%s1 + $0x58] sm:$0xf]
      %v1310 = vld [vmem:[%s1 + $0x5c] sm:$0xf]
      %v1311 = vld [vmem:[%s1 + $0x60] sm:$0xf]
      %v1312 = vld [vmem:[%s1 + $0x64] sm:$0xf]
      %v1313 = vld [vmem:[%s1 + $0x68] sm:$0xf]
      %v1314 = vld [vmem:[%s1 + $0x6c] sm:$0xf]
      %v1315 = vld [vmem:[%s1 + $0x70] sm:$0xf]
      %v1316 = vld [vmem:[%s1 + $0x74] sm:$0xf]
      %v1317 = vld [vmem:[%s1 + $0x78] sm:$0xf]
      %v1318 = vld [vmem:[%s1 + $0x7c] sm:$0xf]
      %v1319 = vld [vmem:[%s1 + $0x80] sm:$0xf]
      %v1320 = vld [vmem:[%s1 + $0x84] sm:$0xf]
      %v1321 = vld [vmem:[%s1 + $0x88] sm:$0xf]
      %v1322 = vld [vmem:[%s1 + $0x8c] sm:$0xf]
      %v1323 = vld [vmem:[%s1 + $0x90] sm:$0xf]
      %v1324 = vld [vmem:[%s1 + $0x94] sm:$0xf]
      %v1325 = vld [vmem:[%s1 + $0x98] sm:$0xf]
      %v1326 = vld [vmem:[%s1 + $0x9c] sm:$0xf]
      %v1327 = vld [vmem:[%s1 + $0xa0] sm:$0xf]
      %v1328 = vld [vmem:[%s1 + $0xa4] sm:$0xf]
      %v1329 = vld [vmem:[%s1 + $0xa8] sm:$0xf]
      %v1330 = vld [vmem:[%s1 + $0xac] sm:$0xf]
      %v1331 = vld [vmem:[%s1 + $0xb0] sm:$0xf]
      %v1332 = vld [vmem:[%s1 + $0xb4] sm:$0xf]
      %v1333 = vld [vmem:[%s1 + $0xb8] sm:$0xf]
      %v1334 = vld [vmem:[%s1 + $0xbc] sm:$0xf]
      %s1335 = sadd.s32 %s753, 1
      %s1336 = smul.u32 %s1335, 3
      %s1337 = smul.addr %s1336, 4
      %s1338 = scalar_lea.vmem [#allocation2], %s1337
      %v1339 = vld [vmem:[%s1338] sm:$0xf]
      %v1340 = vld [vmem:[%s1338 + $0x4] sm:$0xf]
      %v1341 = vld [vmem:[%s1338 + $0xc] sm:$0xf]
      %v1342 = vld [vmem:[%s1338 + $0x10] sm:$0xf]
      %v1343 = vld [vmem:[%s1338 + $0x18] sm:$0xf]
      %v1344 = vld [vmem:[%s1338 + $0x1c] sm:$0xf]
      %v1345 = vld [vmem:[%s1338 + $0x24] sm:$0xf]
      %v1346 = vld [vmem:[%s1338 + $0x28] sm:$0xf]
      %v1347 = vld [vmem:[%s1338 + $0x30] sm:$0xf]
      %v1348 = vld [vmem:[%s1338 + $0x34] sm:$0xf]
      %v1349 = vld [vmem:[%s1338 + $0x3c] sm:$0xf]
      %v1350 = vld [vmem:[%s1338 + $0x40] sm:$0xf]
      %v1351 = vld [vmem:[%s1338 + $0x48] sm:$0xf]
      %v1352 = vld [vmem:[%s1338 + $0x4c] sm:$0xf]
      %v1353 = vld [vmem:[%s1338 + $0x54] sm:$0xf]
      %v1354 = vld [vmem:[%s1338 + $0x58] sm:$0xf]
      %v1355 = vld [vmem:[%s1338 + $0x60] sm:$0xf]
      %v1356 = vld [vmem:[%s1338 + $0x64] sm:$0xf]
      %v1357 = vld [vmem:[%s1338 + $0x6c] sm:$0xf]
      %v1358 = vld [vmem:[%s1338 + $0x70] sm:$0xf]
      %v1359 = vld [vmem:[%s1338 + $0x78] sm:$0xf]
      %v1360 = vld [vmem:[%s1338 + $0x7c] sm:$0xf]
      %v1361 = vld [vmem:[%s1338 + $0x84] sm:$0xf]
      %v1362 = vld [vmem:[%s1338 + $0x88] sm:$0xf]
      %v1363 = vld [vmem:[%s1338 + $0x90] sm:$0xf]
      %v1364 = vld [vmem:[%s1338 + $0x94] sm:$0xf]
      %v1365 = vld [vmem:[%s1338 + $0x9c] sm:$0xf]
      %v1366 = vld [vmem:[%s1338 + $0xa0] sm:$0xf]
      %v1367 = vld [vmem:[%s1338 + $0xa8] sm:$0xf]
      %v1368 = vld [vmem:[%s1338 + $0xac] sm:$0xf]
      %v1369 = vld [vmem:[%s1338 + $0xb4] sm:$0xf]
      %v1370 = vld [vmem:[%s1338 + $0xb8] sm:$0xf]
      %v1371 = vld [vmem:[%s1338 + $0x8] sm:$0x1]
      %v1372 = vld [vmem:[%s1338 + $0x14] sm:$0x1]
      %v1373 = vld [vmem:[%s1338 + $0x20] sm:$0x1]
      %v1374 = vld [vmem:[%s1338 + $0x2c] sm:$0x1]
      %v1375 = vld [vmem:[%s1338 + $0x38] sm:$0x1]
      %v1376 = vld [vmem:[%s1338 + $0x44] sm:$0x1]
      %v1377 = vld [vmem:[%s1338 + $0x50] sm:$0x1]
      %v1378 = vld [vmem:[%s1338 + $0x5c] sm:$0x1]
      %v1379 = vld [vmem:[%s1338 + $0x68] sm:$0x1]
      %v1380 = vld [vmem:[%s1338 + $0x74] sm:$0x1]
      %v1381 = vld [vmem:[%s1338 + $0x80] sm:$0x1]
      %v1382 = vld [vmem:[%s1338 + $0x8c] sm:$0x1]
      %v1383 = vld [vmem:[%s1338 + $0x98] sm:$0x1]
      %v1384 = vld [vmem:[%s1338 + $0xa4] sm:$0x1]
      %v1385 = vld [vmem:[%s1338 + $0xb0] sm:$0x1]
      %v1386 = vld [vmem:[%s1338 + $0xbc] sm:$0x1]
      %v1387 = vld [vmem:[%s1338] sm:$0xe]
      %v1388 = vld [vmem:[%s1338 + $0xc] sm:$0xe]
      %v1389 = vld [vmem:[%s1338 + $0x18] sm:$0xe]
      %v1390 = vld [vmem:[%s1338 + $0x24] sm:$0xe]
      %v1391 = vld [vmem:[%s1338 + $0x30] sm:$0xe]
      %v1392 = vld [vmem:[%s1338 + $0x3c] sm:$0xe]
      %v1393 = vld [vmem:[%s1338 + $0x48] sm:$0xe]
      %v1394 = vld [vmem:[%s1338 + $0x54] sm:$0xe]
      %v1395 = vld [vmem:[%s1338 + $0x60] sm:$0xe]
      %v1396 = vld [vmem:[%s1338 + $0x6c] sm:$0xe]
      %v1397 = vld [vmem:[%s1338 + $0x78] sm:$0xe]
      %v1398 = vld [vmem:[%s1338 + $0x84] sm:$0xe]
      %v1399 = vld [vmem:[%s1338 + $0x90] sm:$0xe]
      %v1400 = vld [vmem:[%s1338 + $0x9c] sm:$0xe]
      %v1401 = vld [vmem:[%s1338 + $0xa8] sm:$0xe]
      %v1402 = vld [vmem:[%s1338 + $0xb4] sm:$0xe]
      %v1435 = vunpack.c.l.b16 %v1339
      %v1436 = vunpack.c.l.b16 %v1340
      %v1437 = vunpack.c.l.b16 %v1341
      %v1438 = vunpack.c.l.b16 %v1342
      %v1439 = vunpack.c.l.b16 %v1343
      %v1440 = vunpack.c.l.b16 %v1344
      %v1441 = vunpack.c.l.b16 %v1345
      %v1442 = vunpack.c.l.b16 %v1346
      %v1443 = vunpack.c.l.b16 %v1347
      %v1444 = vunpack.c.l.b16 %v1348
      %v1445 = vunpack.c.l.b16 %v1349
      %v1446 = vunpack.c.l.b16 %v1350
      %v1447 = vunpack.c.l.b16 %v1351
      %v1448 = vunpack.c.l.b16 %v1352
      %v1449 = vunpack.c.l.b16 %v1353
      %v1450 = vunpack.c.l.b16 %v1354
      %v1451 = vunpack.c.l.b16 %v1355
      %v1452 = vunpack.c.l.b16 %v1356
      %v1453 = vunpack.c.l.b16 %v1357
      %v1454 = vunpack.c.l.b16 %v1358
      %v1455 = vunpack.c.l.b16 %v1359
      %v1456 = vunpack.c.l.b16 %v1360
      %v1457 = vunpack.c.l.b16 %v1361
      %v1458 = vunpack.c.l.b16 %v1362
      %v1459 = vunpack.c.l.b16 %v1363
      %v1460 = vunpack.c.l.b16 %v1364
      %v1461 = vunpack.c.l.b16 %v1365
      %v1462 = vunpack.c.l.b16 %v1366
      %v1463 = vunpack.c.l.b16 %v1367
      %v1464 = vunpack.c.l.b16 %v1368
      %v1465 = vunpack.c.l.b16 %v1369
      %v1466 = vunpack.c.l.b16 %v1370
      %v1467 = vpack.c.b16 %v1436, %v1435
      %v1468 = vpack.c.b16 %v1438, %v1437
      %v1469 = vpack.c.b16 %v1440, %v1439
      %v1470 = vpack.c.b16 %v1442, %v1441
      %v1471 = vpack.c.b16 %v1444, %v1443
      %v1472 = vpack.c.b16 %v1446, %v1445
      %v1473 = vpack.c.b16 %v1448, %v1447
      %v1474 = vpack.c.b16 %v1450, %v1449
      %v1475 = vpack.c.b16 %v1452, %v1451
      %v1476 = vpack.c.b16 %v1454, %v1453
      %v1477 = vpack.c.b16 %v1456, %v1455
      %v1478 = vpack.c.b16 %v1458, %v1457
      %v1479 = vpack.c.b16 %v1460, %v1459
      %v1480 = vpack.c.b16 %v1462, %v1461
      %v1481 = vpack.c.b16 %v1464, %v1463
      %v1482 = vpack.c.b16 %v1466, %v1465
      %v1515 = vunpack.c.l.b16 %v1371
      %v1516 = vunpack.c.l.b16 %v1372
      %v1517 = vunpack.c.l.b16 %v1373
      %v1518 = vunpack.c.l.b16 %v1374
      %v1519 = vunpack.c.l.b16 %v1375
      %v1520 = vunpack.c.l.b16 %v1376
      %v1521 = vunpack.c.l.b16 %v1377
      %v1522 = vunpack.c.l.b16 %v1378
      %v1523 = vunpack.c.l.b16 %v1379
      %v1524 = vunpack.c.l.b16 %v1380
      %v1525 = vunpack.c.l.b16 %v1381
      %v1526 = vunpack.c.l.b16 %v1382
      %v1527 = vunpack.c.l.b16 %v1383
      %v1528 = vunpack.c.l.b16 %v1384
      %v1529 = vunpack.c.l.b16 %v1385
      %v1530 = vunpack.c.l.b16 %v1386
      %v1531 = vpack.c.b16 %v1515, %v1515
      %v1532 = vpack.c.b16 %v1516, %v1516
      %v1533 = vpack.c.b16 %v1517, %v1517
      %v1534 = vpack.c.b16 %v1518, %v1518
      %v1535 = vpack.c.b16 %v1519, %v1519
      %v1536 = vpack.c.b16 %v1520, %v1520
      %v1537 = vpack.c.b16 %v1521, %v1521
      %v1538 = vpack.c.b16 %v1522, %v1522
      %v1539 = vpack.c.b16 %v1523, %v1523
      %v1540 = vpack.c.b16 %v1524, %v1524
      %v1541 = vpack.c.b16 %v1525, %v1525
      %v1542 = vpack.c.b16 %v1526, %v1526
      %v1543 = vpack.c.b16 %v1527, %v1527
      %v1544 = vpack.c.b16 %v1528, %v1528
      %v1545 = vpack.c.b16 %v1529, %v1529
      %v1546 = vpack.c.b16 %v1530, %v1530
      %v1548 = vshrl.u32 %v1467, 16
      %v1550 = vshll.u32 %v1467, 16
      %v1552 = vrot.slane %v1550, 1
      %v1553 = vor.u32 %v1548, %v1552
      %v1555 = vshll.u32 %v1531, 16
      %v1557 = vrot.slane %v1555, 1
      %v1558 = vsel %vm965, %v1553, %v1557
      %v1560 = vshrl.u32 %v1468, 16
      %v1562 = vshll.u32 %v1468, 16
      %v1564 = vrot.slane %v1562, 1
      %v1565 = vor.u32 %v1560, %v1564
      %v1567 = vshll.u32 %v1532, 16
      %v1569 = vrot.slane %v1567, 1
      %v1570 = vsel %vm965, %v1565, %v1569
      %v1572 = vshrl.u32 %v1469, 16
      %v1574 = vshll.u32 %v1469, 16
      %v1576 = vrot.slane %v1574, 1
      %v1577 = vor.u32 %v1572, %v1576
      %v1579 = vshll.u32 %v1533, 16
      %v1581 = vrot.slane %v1579, 1
      %v1582 = vsel %vm965, %v1577, %v1581
      %v1584 = vshrl.u32 %v1470, 16
      %v1586 = vshll.u32 %v1470, 16
      %v1588 = vrot.slane %v1586, 1
      %v1589 = vor.u32 %v1584, %v1588
      %v1591 = vshll.u32 %v1534, 16
      %v1593 = vrot.slane %v1591, 1
      %v1594 = vsel %vm965, %v1589, %v1593
      %v1596 = vshrl.u32 %v1471, 16
      %v1598 = vshll.u32 %v1471, 16
      %v1600 = vrot.slane %v1598, 1
      %v1601 = vor.u32 %v1596, %v1600
      %v1603 = vshll.u32 %v1535, 16
      %v1605 = vrot.slane %v1603, 1
      %v1606 = vsel %vm965, %v1601, %v1605
      %v1608 = vshrl.u32 %v1472, 16
      %v1610 = vshll.u32 %v1472, 16
      %v1612 = vrot.slane %v1610, 1
      %v1613 = vor.u32 %v1608, %v1612
      %v1615 = vshll.u32 %v1536, 16
      %v1617 = vrot.slane %v1615, 1
      %v1618 = vsel %vm965, %v1613, %v1617
      %v1620 = vshrl.u32 %v1473, 16
      %v1622 = vshll.u32 %v1473, 16
      %v1624 = vrot.slane %v1622, 1
      %v1625 = vor.u32 %v1620, %v1624
      %v1627 = vshll.u32 %v1537, 16
      %v1629 = vrot.slane %v1627, 1
      %v1630 = vsel %vm965, %v1625, %v1629
      %v1632 = vshrl.u32 %v1474, 16
      %v1634 = vshll.u32 %v1474, 16
      %v1636 = vrot.slane %v1634, 1
      %v1637 = vor.u32 %v1632, %v1636
      %v1639 = vshll.u32 %v1538, 16
      %v1641 = vrot.slane %v1639, 1
      %v1642 = vsel %vm965, %v1637, %v1641
      %v1644 = vshrl.u32 %v1475, 16
      %v1646 = vshll.u32 %v1475, 16
      %v1648 = vrot.slane %v1646, 1
      %v1649 = vor.u32 %v1644, %v1648
      %v1651 = vshll.u32 %v1539, 16
      %v1653 = vrot.slane %v1651, 1
      %v1654 = vsel %vm965, %v1649, %v1653
      %v1656 = vshrl.u32 %v1476, 16
      %v1658 = vshll.u32 %v1476, 16
      %v1660 = vrot.slane %v1658, 1
      %v1661 = vor.u32 %v1656, %v1660
      %v1663 = vshll.u32 %v1540, 16
      %v1665 = vrot.slane %v1663, 1
      %v1666 = vsel %vm965, %v1661, %v1665
      %v1668 = vshrl.u32 %v1477, 16
      %v1670 = vshll.u32 %v1477, 16
      %v1672 = vrot.slane %v1670, 1
      %v1673 = vor.u32 %v1668, %v1672
      %v1675 = vshll.u32 %v1541, 16
      %v1677 = vrot.slane %v1675, 1
      %v1678 = vsel %vm965, %v1673, %v1677
      %v1680 = vshrl.u32 %v1478, 16
      %v1682 = vshll.u32 %v1478, 16
      %v1684 = vrot.slane %v1682, 1
      %v1685 = vor.u32 %v1680, %v1684
      %v1687 = vshll.u32 %v1542, 16
      %v1689 = vrot.slane %v1687, 1
      %v1690 = vsel %vm965, %v1685, %v1689
      %v1692 = vshrl.u32 %v1479, 16
      %v1694 = vshll.u32 %v1479, 16
      %v1696 = vrot.slane %v1694, 1
      %v1697 = vor.u32 %v1692, %v1696
      %v1699 = vshll.u32 %v1543, 16
      %v1701 = vrot.slane %v1699, 1
      %v1702 = vsel %vm965, %v1697, %v1701
      %v1704 = vshrl.u32 %v1480, 16
      %v1706 = vshll.u32 %v1480, 16
      %v1708 = vrot.slane %v1706, 1
      %v1709 = vor.u32 %v1704, %v1708
      %v1711 = vshll.u32 %v1544, 16
      %v1713 = vrot.slane %v1711, 1
      %v1714 = vsel %vm965, %v1709, %v1713
      %v1716 = vshrl.u32 %v1481, 16
      %v1718 = vshll.u32 %v1481, 16
      %v1720 = vrot.slane %v1718, 1
      %v1721 = vor.u32 %v1716, %v1720
      %v1723 = vshll.u32 %v1545, 16
      %v1725 = vrot.slane %v1723, 1
      %v1726 = vsel %vm965, %v1721, %v1725
      %v1728 = vshrl.u32 %v1482, 16
      %v1730 = vshll.u32 %v1482, 16
      %v1732 = vrot.slane %v1730, 1
      %v1733 = vor.u32 %v1728, %v1732
      %v1735 = vshll.u32 %v1546, 16
      %v1737 = vrot.slane %v1735, 1
      %v1738 = vsel %vm965, %v1733, %v1737
      %v1771 = vunpack.c.l.b16 %v1387
      %v1772 = vunpack.c.l.b16 %v1388
      %v1773 = vunpack.c.l.b16 %v1389
      %v1774 = vunpack.c.l.b16 %v1390
      %v1775 = vunpack.c.l.b16 %v1391
      %v1776 = vunpack.c.l.b16 %v1392
      %v1777 = vunpack.c.l.b16 %v1393
      %v1778 = vunpack.c.l.b16 %v1394
      %v1779 = vunpack.c.l.b16 %v1395
      %v1780 = vunpack.c.l.b16 %v1396
      %v1781 = vunpack.c.l.b16 %v1397
      %v1782 = vunpack.c.l.b16 %v1398
      %v1783 = vunpack.c.l.b16 %v1399
      %v1784 = vunpack.c.l.b16 %v1400
      %v1785 = vunpack.c.l.b16 %v1401
      %v1786 = vunpack.c.l.b16 %v1402
      %v1787 = vpack.c.b16 %v1436, %v1771
      %v1788 = vpack.c.b16 %v1438, %v1772
      %v1789 = vpack.c.b16 %v1440, %v1773
      %v1790 = vpack.c.b16 %v1442, %v1774
      %v1791 = vpack.c.b16 %v1444, %v1775
      %v1792 = vpack.c.b16 %v1446, %v1776
      %v1793 = vpack.c.b16 %v1448, %v1777
      %v1794 = vpack.c.b16 %v1450, %v1778
      %v1795 = vpack.c.b16 %v1452, %v1779
      %v1796 = vpack.c.b16 %v1454, %v1780
      %v1797 = vpack.c.b16 %v1456, %v1781
      %v1798 = vpack.c.b16 %v1458, %v1782
      %v1799 = vpack.c.b16 %v1460, %v1783
      %v1800 = vpack.c.b16 %v1462, %v1784
      %v1801 = vpack.c.b16 %v1464, %v1785
      %v1802 = vpack.c.b16 %v1466, %v1786
      %v1803 = vrot.slane %v1787, 1
      %v1804 = vrot.slane %v1531, 1
      %v1805 = vsel %vm1222, %v1803, %v1804
      %v1806 = vrot.slane %v1788, 1
      %v1807 = vrot.slane %v1532, 1
      %v1808 = vsel %vm1222, %v1806, %v1807
      %v1809 = vrot.slane %v1789, 1
      %v1810 = vrot.slane %v1533, 1
      %v1811 = vsel %vm1222, %v1809, %v1810
      %v1812 = vrot.slane %v1790, 1
      %v1813 = vrot.slane %v1534, 1
      %v1814 = vsel %vm1222, %v1812, %v1813
      %v1815 = vrot.slane %v1791, 1
      %v1816 = vrot.slane %v1535, 1
      %v1817 = vsel %vm1222, %v1815, %v1816
      %v1818 = vrot.slane %v1792, 1
      %v1819 = vrot.slane %v1536, 1
      %v1820 = vsel %vm1222, %v1818, %v1819
      %v1821 = vrot.slane %v1793, 1
      %v1822 = vrot.slane %v1537, 1
      %v1823 = vsel %vm1222, %v1821, %v1822
      %v1824 = vrot.slane %v1794, 1
      %v1825 = vrot.slane %v1538, 1
      %v1826 = vsel %vm1222, %v1824, %v1825
      %v1827 = vrot.slane %v1795, 1
      %v1828 = vrot.slane %v1539, 1
      %v1829 = vsel %vm1222, %v1827, %v1828
      %v1830 = vrot.slane %v1796, 1
      %v1831 = vrot.slane %v1540, 1
      %v1832 = vsel %vm1222, %v1830, %v1831
      %v1833 = vrot.slane %v1797, 1
      %v1834 = vrot.slane %v1541, 1
      %v1835 = vsel %vm1222, %v1833, %v1834
      %v1836 = vrot.slane %v1798, 1
      %v1837 = vrot.slane %v1542, 1
      %v1838 = vsel %vm1222, %v1836, %v1837
      %v1839 = vrot.slane %v1799, 1
      %v1840 = vrot.slane %v1543, 1
      %v1841 = vsel %vm1222, %v1839, %v1840
      %v1842 = vrot.slane %v1800, 1
      %v1843 = vrot.slane %v1544, 1
      %v1844 = vsel %vm1222, %v1842, %v1843
      %v1845 = vrot.slane %v1801, 1
      %v1846 = vrot.slane %v1545, 1
      %v1847 = vsel %vm1222, %v1845, %v1846
      %v1848 = vrot.slane %v1802, 1
      %v1849 = vrot.slane %v1546, 1
      %v1850 = vsel %vm1222, %v1848, %v1849
      %s1867 = scalar_lea.vmem %s1, 192
      %v1868 = vld [vmem:[%s1867] sm:$0xf]
      %v1869 = vld [vmem:[%s1867 + $0x4] sm:$0xf]
      %v1870 = vld [vmem:[%s1867 + $0x8] sm:$0xf]
      %v1871 = vld [vmem:[%s1867 + $0xc] sm:$0xf]
      %v1872 = vld [vmem:[%s1867 + $0x10] sm:$0xf]
      %v1873 = vld [vmem:[%s1867 + $0x14] sm:$0xf]
      %v1874 = vld [vmem:[%s1867 + $0x18] sm:$0xf]
      %v1875 = vld [vmem:[%s1867 + $0x1c] sm:$0xf]
      %v1876 = vld [vmem:[%s1867 + $0x20] sm:$0xf]
      %v1877 = vld [vmem:[%s1867 + $0x24] sm:$0xf]
      %v1878 = vld [vmem:[%s1867 + $0x28] sm:$0xf]
      %v1879 = vld [vmem:[%s1867 + $0x2c] sm:$0xf]
      %v1880 = vld [vmem:[%s1867 + $0x30] sm:$0xf]
      %v1881 = vld [vmem:[%s1867 + $0x34] sm:$0xf]
      %v1882 = vld [vmem:[%s1867 + $0x38] sm:$0xf]
      %v1883 = vld [vmem:[%s1867 + $0x3c] sm:$0xf]
      %v1884 = vld [vmem:[%s1867 + $0x40] sm:$0xf]
      %v1885 = vld [vmem:[%s1867 + $0x44] sm:$0xf]
      %v1886 = vld [vmem:[%s1867 + $0x48] sm:$0xf]
      %v1887 = vld [vmem:[%s1867 + $0x4c] sm:$0xf]
      %v1888 = vld [vmem:[%s1867 + $0x50] sm:$0xf]
      %v1889 = vld [vmem:[%s1867 + $0x54] sm:$0xf]
      %v1890 = vld [vmem:[%s1867 + $0x58] sm:$0xf]
      %v1891 = vld [vmem:[%s1867 + $0x5c] sm:$0xf]
      %v1892 = vld [vmem:[%s1867 + $0x60] sm:$0xf]
      %v1893 = vld [vmem:[%s1867 + $0x64] sm:$0xf]
      %v1894 = vld [vmem:[%s1867 + $0x68] sm:$0xf]
      %v1895 = vld [vmem:[%s1867 + $0x6c] sm:$0xf]
      %v1896 = vld [vmem:[%s1867 + $0x70] sm:$0xf]
      %v1897 = vld [vmem:[%s1867 + $0x74] sm:$0xf]
      %v1898 = vld [vmem:[%s1867 + $0x78] sm:$0xf]
      %v1899 = vld [vmem:[%s1867 + $0x7c] sm:$0xf]
      %v1900 = vld [vmem:[%s1867 + $0x80] sm:$0xf]
      %v1901 = vld [vmem:[%s1867 + $0x84] sm:$0xf]
      %v1902 = vld [vmem:[%s1867 + $0x88] sm:$0xf]
      %v1903 = vld [vmem:[%s1867 + $0x8c] sm:$0xf]
      %v1904 = vld [vmem:[%s1867 + $0x90] sm:$0xf]
      %v1905 = vld [vmem:[%s1867 + $0x94] sm:$0xf]
      %v1906 = vld [vmem:[%s1867 + $0x98] sm:$0xf]
      %v1907 = vld [vmem:[%s1867 + $0x9c] sm:$0xf]
      %v1908 = vld [vmem:[%s1867 + $0xa0] sm:$0xf]
      %v1909 = vld [vmem:[%s1867 + $0xa4] sm:$0xf]
      %v1910 = vld [vmem:[%s1867 + $0xa8] sm:$0xf]
      %v1911 = vld [vmem:[%s1867 + $0xac] sm:$0xf]
      %v1912 = vld [vmem:[%s1867 + $0xb0] sm:$0xf]
      %v1913 = vld [vmem:[%s1867 + $0xb4] sm:$0xf]
      %v1914 = vld [vmem:[%s1867 + $0xb8] sm:$0xf]
      %v1915 = vld [vmem:[%s1867 + $0xbc] sm:$0xf]
      %v1964 = vunpack.c.l.b16 %v1868
      %v1965 = vunpack.c.l.b16 %v1869
      %v1966 = vunpack.c.l.b16 %v1870
      %v1967 = vunpack.c.l.b16 %v1871
      %v1968 = vunpack.c.l.b16 %v1872
      %v1969 = vunpack.c.l.b16 %v1873
      %v1970 = vunpack.c.l.b16 %v1874
      %v1971 = vunpack.c.l.b16 %v1875
      %v1972 = vunpack.c.l.b16 %v1876
      %v1973 = vunpack.c.l.b16 %v1877
      %v1974 = vunpack.c.l.b16 %v1878
      %v1975 = vunpack.c.l.b16 %v1879
      %v1976 = vunpack.c.l.b16 %v1880
      %v1977 = vunpack.c.l.b16 %v1881
      %v1978 = vunpack.c.l.b16 %v1882
      %v1979 = vunpack.c.l.b16 %v1883
      %v1980 = vunpack.c.l.b16 %v1884
      %v1981 = vunpack.c.l.b16 %v1885
      %v1982 = vunpack.c.l.b16 %v1886
      %v1983 = vunpack.c.l.b16 %v1887
      %v1984 = vunpack.c.l.b16 %v1888
      %v1985 = vunpack.c.l.b16 %v1889
      %v1986 = vunpack.c.l.b16 %v1890
      %v1987 = vunpack.c.l.b16 %v1891
      %v1988 = vunpack.c.l.b16 %v1892
      %v1989 = vunpack.c.l.b16 %v1893
      %v1990 = vunpack.c.l.b16 %v1894
      %v1991 = vunpack.c.l.b16 %v1895
      %v1992 = vunpack.c.l.b16 %v1896
      %v1993 = vunpack.c.l.b16 %v1897
      %v1994 = vunpack.c.l.b16 %v1898
      %v1995 = vunpack.c.l.b16 %v1899
      %v1996 = vunpack.c.l.b16 %v1900
      %v1997 = vunpack.c.l.b16 %v1901
      %v1998 = vunpack.c.l.b16 %v1902
      %v1999 = vunpack.c.l.b16 %v1903
      %v2000 = vunpack.c.l.b16 %v1904
      %v2001 = vunpack.c.l.b16 %v1905
      %v2002 = vunpack.c.l.b16 %v1906
      %v2003 = vunpack.c.l.b16 %v1907
      %v2004 = vunpack.c.l.b16 %v1908
      %v2005 = vunpack.c.l.b16 %v1909
      %v2006 = vunpack.c.l.b16 %v1910
      %v2007 = vunpack.c.l.b16 %v1911
      %v2008 = vunpack.c.l.b16 %v1912
      %v2009 = vunpack.c.l.b16 %v1913
      %v2010 = vunpack.c.l.b16 %v1914
      %v2011 = vunpack.c.l.b16 %v1915
      %v2012 = vpack.c.b16 %v1965, %v1964
      %v2013 = vpack.c.b16 %v1967, %v1966
      %v2014 = vpack.c.b16 %v1969, %v1968
      %v2015 = vpack.c.b16 %v1971, %v1970
      %v2016 = vpack.c.b16 %v1973, %v1972
      %v2017 = vpack.c.b16 %v1975, %v1974
      %v2018 = vpack.c.b16 %v1977, %v1976
      %v2019 = vpack.c.b16 %v1979, %v1978
      %v2020 = vpack.c.b16 %v1981, %v1980
      %v2021 = vpack.c.b16 %v1983, %v1982
      %v2022 = vpack.c.b16 %v1985, %v1984
      %v2023 = vpack.c.b16 %v1987, %v1986
      %v2024 = vpack.c.b16 %v1989, %v1988
      %v2025 = vpack.c.b16 %v1991, %v1990
      %v2026 = vpack.c.b16 %v1993, %v1992
      %v2027 = vpack.c.b16 %v1995, %v1994
      %v2028 = vpack.c.b16 %v1997, %v1996
      %v2029 = vpack.c.b16 %v1999, %v1998
      %v2030 = vpack.c.b16 %v2001, %v2000
      %v2031 = vpack.c.b16 %v2003, %v2002
      %v2032 = vpack.c.b16 %v2005, %v2004
      %v2033 = vpack.c.b16 %v2007, %v2006
      %v2034 = vpack.c.b16 %v2009, %v2008
      %v2035 = vpack.c.b16 %v2011, %v2010
      %2060 = vmatprep.subr.bf16.mxu0 0
      %2061 = vmatpush1.bf16.msra.mxu0 %v2012
      %2062 = vmatprep.subr.bf16.mxu0 0
      %2063 = vmatpush1.bf16.msra.mxu0 %v2013
      %2064 = vmatprep.subr.bf16.mxu0 0
      %2065 = vmatpush1.bf16.msra.mxu0 %v2014
      %2066 = vmatprep.subr.bf16.mxu0 0
      %2067 = vmatpush1.bf16.msra.mxu0 %v2015
      %2068 = vmatprep.subr.bf16.mxu0 0
      %2069 = vmatpush1.bf16.msra.mxu0 %v2016
      %2070 = vmatprep.subr.bf16.mxu0 0
      %2071 = vmatpush1.bf16.msra.mxu0 %v2017
      %2072 = vmatprep.subr.bf16.mxu0 0
      %2073 = vmatpush1.bf16.msra.mxu0 %v2018
      %2074 = vmatprep.subr.bf16.mxu0 0
      %2075 = vmatpush1.bf16.msra.mxu0 %v2019
      %2076 = vmatprep.subr.bf16.mxu0 0
      %2077 = vmatpush1.bf16.msra.mxu0 %v2020
      %2078 = vmatprep.subr.bf16.mxu0 0
      %2079 = vmatpush1.bf16.msra.mxu0 %v2021
      %2080 = vmatprep.subr.bf16.mxu0 0
      %2081 = vmatpush1.bf16.msra.mxu0 %v2022
      %2082 = vmatprep.subr.bf16.mxu0 0
      %2083 = vmatpush1.bf16.msra.mxu0 %v2023
      %2084 = vmatprep.subr.bf16.mxu0 0
      %2085 = vmatpush1.bf16.msra.mxu0 %v2024
      %2086 = vmatprep.subr.bf16.mxu0 0
      %2087 = vmatpush1.bf16.msra.mxu0 %v2025
      %2088 = vmatprep.subr.bf16.mxu0 0
      %2089 = vmatpush1.bf16.msra.mxu0 %v2026
      %2090 = vmatprep.subr.bf16.mxu0 0
      %2091 = vmatpush1.bf16.msra.mxu0 %v2027
      %2092 = vmatprep.mubr.bf16.mxu0 %v1558
      %2093 = vmatmul.mubr.bf16.gmra.mrb[0].mxu0 %v1467
      %v2094 = vpop.f32.mrb[0].mxu0
      %v2095 = vadd.f32 0.0, %v2094
      %v2096 = vpop.f32.mrb[0].mxu0
      %v2097 = vpop.f32.mrb[0].mxu0
      %v2098 = vadd.f32 0.0, %v2097
      %v2099 = vpop.f32.mrb[0].mxu0
      %2100 = vmatprep.mubr.bf16.mxu0 %v1570
      %2101 = vmatmul.mubr.bf16.gmra.mrb[0].mxu0 %v1468
      %v2102 = vpop.f32.mrb[0].mxu0
      %v2103 = vadd.f32 0.0, %v2102
      %v2104 = vpop.f32.mrb[0].mxu0
      %v2105 = vpop.f32.mrb[0].mxu0
      %v2106 = vadd.f32 0.0, %v2105
      %v2107 = vpop.f32.mrb[0].mxu0
      %2108 = vmatprep.mubr.bf16.mxu0 %v1582
      %2109 = vmatmul.mubr.bf16.gmra.mrb[0].mxu0 %v1469
      %v2110 = vpop.f32.mrb[0].mxu0
      %v2111 = vadd.f32 0.0, %v2110
      %v2112 = vpop.f32.mrb[0].mxu0
      %v2113 = vpop.f32.mrb[0].mxu0
      %v2114 = vadd.f32 0.0, %v2113
      %v2115 = vpop.f32.mrb[0].mxu0
      %2116 = vmatprep.mubr.bf16.mxu0 %v1594
      %2117 = vmatmul.mubr.bf16.gmra.mrb[0].mxu0 %v1470
      %v2118 = vpop.f32.mrb[0].mxu0
      %v2119 = vadd.f32 0.0, %v2118
      %v2120 = vpop.f32.mrb[0].mxu0
      %v2121 = vpop.f32.mrb[0].mxu0
      %v2122 = vadd.f32 0.0, %v2121
      %v2123 = vpop.f32.mrb[0].mxu0
      %2124 = vmatprep.mubr.bf16.mxu0 %v1606
      %2125 = vmatmul.mubr.bf16.gmra.mrb[0].mxu0 %v1471
      %v2126 = vpop.f32.mrb[0].mxu0
      %v2127 = vadd.f32 0.0, %v2126
      %v2128 = vpop.f32.mrb[0].mxu0
      %v2129 = vpop.f32.mrb[0].mxu0
      %v2130 = vadd.f32 0.0, %v2129
      %v2131 = vpop.f32.mrb[0].mxu0
      %2132 = vmatprep.mubr.bf16.mxu0 %v1618
      %2133 = vmatmul.mubr.bf16.gmra.mrb[0].mxu0 %v1472
      %v2134 = vpop.f32.mrb[0].mxu0
      %v2135 = vadd.f32 0.0, %v2134
      %v2136 = vpop.f32.mrb[0].mxu0
      %v2137 = vpop.f32.mrb[0].mxu0
      %v2138 = vadd.f32 0.0, %v2137
      %v2139 = vpop.f32.mrb[0].mxu0
      %2140 = vmatprep.mubr.bf16.mxu0 %v1630
      %2141 = vmatmul.mubr.bf16.gmra.mrb[0].mxu0 %v1473
      %v2142 = vpop.f32.mrb[0].mxu0
      %v2143 = vadd.f32 0.0, %v2142
      %v2144 = vpop.f32.mrb[0].mxu0
      %v2145 = vpop.f32.mrb[0].mxu0
      %v2146 = vadd.f32 0.0, %v2145
      %v2147 = vpop.f32.mrb[0].mxu0
      %2148 = vmatprep.mubr.bf16.mxu0 %v1642
      %2149 = vmatmul.mubr.bf16.gmra.mrb[0].mxu0 %v1474
      %v2150 = vpop.f32.mrb[0].mxu0
      %v2151 = vadd.f32 0.0, %v2150
      %v2152 = vpop.f32.mrb[0].mxu0
      %v2153 = vpop.f32.mrb[0].mxu0
      %v2154 = vadd.f32 0.0, %v2153
      %v2155 = vpop.f32.mrb[0].mxu0
      %2156 = vmatprep.mubr.bf16.mxu0 %v1654
      %2157 = vmatmul.mubr.bf16.gmra.mrb[0].mxu0 %v1475
      %v2158 = vpop.f32.mrb[0].mxu0
      %v2159 = vadd.f32 0.0, %v2158
      %v2160 = vpop.f32.mrb[0].mxu0
      %v2161 = vpop.f32.mrb[0].mxu0
      %v2162 = vadd.f32 0.0, %v2161
      %v2163 = vpop.f32.mrb[0].mxu0
      %2164 = vmatprep.mubr.bf16.mxu0 %v1666
      %2165 = vmatmul.mubr.bf16.gmra.mrb[0].mxu0 %v1476
      %v2166 = vpop.f32.mrb[0].mxu0
      %v2167 = vadd.f32 0.0, %v2166
      %v2168 = vpop.f32.mrb[0].mxu0
      %v2169 = vpop.f32.mrb[0].mxu0
      %v2170 = vadd.f32 0.0, %v2169
      %v2171 = vpop.f32.mrb[0].mxu0
      %2172 = vmatprep.mubr.bf16.mxu0 %v1678
      %2173 = vmatmul.mubr.bf16.gmra.mrb[0].mxu0 %v1477
      %v2174 = vpop.f32.mrb[0].mxu0
      %v2175 = vadd.f32 0.0, %v2174
      %v2176 = vpop.f32.mrb[0].mxu0
      %v2177 = vpop.f32.mrb[0].mxu0
      %v2178 = vadd.f32 0.0, %v2177
      %v2179 = vpop.f32.mrb[0].mxu0
      %2180 = vmatprep.mubr.bf16.mxu0 %v1690
      %2181 = vmatmul.mubr.bf16.gmra.mrb[0].mxu0 %v1478
      %v2182 = vpop.f32.mrb[0].mxu0
      %v2183 = vadd.f32 0.0, %v2182
      %v2184 = vpop.f32.mrb[0].mxu0
      %v2185 = vpop.f32.mrb[0].mxu0
      %v2186 = vadd.f32 0.0, %v2185
      %v2187 = vpop.f32.mrb[0].mxu0
      %2188 = vmatprep.mubr.bf16.mxu0 %v1702
      %2189 = vmatmul.mubr.bf16.gmra.mrb[0].mxu0 %v1479
      %v2190 = vpop.f32.mrb[0].mxu0
      %v2191 = vadd.f32 0.0, %v2190
      %v2192 = vpop.f32.mrb[0].mxu0
      %v2193 = vpop.f32.mrb[0].mxu0
      %v2194 = vadd.f32 0.0, %v2193
      %v2195 = vpop.f32.mrb[0].mxu0
      %2196 = vmatprep.mubr.bf16.mxu0 %v1714
      %2197 = vmatmul.mubr.bf16.gmra.mrb[0].mxu0 %v1480
      %v2198 = vpop.f32.mrb[0].mxu0
      %v2199 = vadd.f32 0.0, %v2198
      %v2200 = vpop.f32.mrb[0].mxu0
      %v2201 = vpop.f32.mrb[0].mxu0
      %v2202 = vadd.f32 0.0, %v2201
      %v2203 = vpop.f32.mrb[0].mxu0
      %2204 = vmatprep.mubr.bf16.mxu0 %v1726
      %2205 = vmatmul.mubr.bf16.gmra.mrb[0].mxu0 %v1481
      %v2206 = vpop.f32.mrb[0].mxu0
      %v2207 = vadd.f32 0.0, %v2206
      %v2208 = vpop.f32.mrb[0].mxu0
      %v2209 = vpop.f32.mrb[0].mxu0
      %v2210 = vadd.f32 0.0, %v2209
      %v2211 = vpop.f32.mrb[0].mxu0
      %2212 = vmatprep.mubr.bf16.mxu0 %v1738
      %2213 = vmatmul.mubr.bf16.gmra.mrb[0].mxu0 %v1482
      %v2214 = vpop.f32.mrb[0].mxu0
      %v2215 = vadd.f32 0.0, %v2214
      %v2216 = vpop.f32.mrb[0].mxu0
      %v2217 = vpop.f32.mrb[0].mxu0
      %v2218 = vadd.f32 0.0, %v2217
      %v2219 = vpop.f32.mrb[0].mxu0
      %2220 = vdwg.mxu0
      %2221 = vmatprep.subr.bf16.mxu0 0
      %2222 = vmatpush1.bf16.msra.mxu0 %v2028
      %2223 = vmatprep.subr.bf16.mxu0 0
      %2224 = vmatpush1.bf16.msra.mxu0 %v2029
      %2225 = vmatprep.subr.bf16.mxu0 0
      %2226 = vmatpush1.bf16.msra.mxu0 %v2030
      %2227 = vmatprep.subr.bf16.mxu0 0
      %2228 = vmatpush1.bf16.msra.mxu0 %v2031
      %2229 = vmatprep.subr.bf16.mxu0 0
      %2230 = vmatpush1.bf16.msra.mxu0 %v2032
      %2231 = vmatprep.subr.bf16.mxu0 0
      %2232 = vmatpush1.bf16.msra.mxu0 %v2033
      %2233 = vmatprep.subr.bf16.mxu0 0
      %2234 = vmatpush1.bf16.msra.mxu0 %v2034
      %2235 = vmatprep.subr.bf16.mxu0 0
      %2236 = vmatpush1.bf16.msra.mxu0 %v2035
      %2237 = vmatprep.subr.bf16.mxu0 0
      %2238 = vmatpush1.bf16.msra.mxu0 0
      %2239 = vmatprep.subr.bf16.mxu0 0
      %2240 = vmatpush1.bf16.msra.mxu0 0
      %2241 = vmatprep.subr.bf16.mxu0 0
      %2242 = vmatpush1.bf16.msra.mxu0 0
      %2243 = vmatprep.subr.bf16.mxu0 0
      %2244 = vmatpush1.bf16.msra.mxu0 0
      %2245 = vmatprep.subr.bf16.mxu0 0
      %2246 = vmatpush1.bf16.msra.mxu0 0
      %2247 = vmatprep.subr.bf16.mxu0 0
      %2248 = vmatpush1.bf16.msra.mxu0 0
      %2249 = vmatprep.subr.bf16.mxu0 0
      %2250 = vmatpush1.bf16.msra.mxu0 0
      %2251 = vmatprep.subr.bf16.mxu0 0
      %2252 = vmatpush1.bf16.msra.mxu0 0
      %2253 = vmatprep.mubr.bf16.mxu0 0
      %2254 = vmatmul.mubr.bf16.gmra.mrb[0].mxu0 %v1805
      %v2255 = vpop.f32.mrb[0].mxu0
      %v2256 = vadd.f32 %v2095, %v2255
      %v2257 = vpop.f32.mrb[0].mxu0
      %v2258 = vpop.f32.mrb[0].mxu0
      %v2259 = vadd.f32 %v2098, %v2258
      %v2260 = vpop.f32.mrb[0].mxu0
      %2261 = vmatprep.mubr.bf16.mxu0 0
      %2262 = vmatmul.mubr.bf16.gmra.mrb[0].mxu0 %v1808
      %v2263 = vpop.f32.mrb[0].mxu0
      %v2264 = vadd.f32 %v2103, %v2263
      %v2265 = vpop.f32.mrb[0].mxu0
      %v2266 = vpop.f32.mrb[0].mxu0
      %v2267 = vadd.f32 %v2106, %v2266
      %v2268 = vpop.f32.mrb[0].mxu0
      %2269 = vmatprep.mubr.bf16.mxu0 0
      %2270 = vmatmul.mubr.bf16.gmra.mrb[0].mxu0 %v1811
      %v2271 = vpop.f32.mrb[0].mxu0
      %v2272 = vadd.f32 %v2111, %v2271
      %v2273 = vpop.f32.mrb[0].mxu0
      %v2274 = vpop.f32.mrb[0].mxu0
      %v2275 = vadd.f32 %v2114, %v2274
      %v2276 = vpop.f32.mrb[0].mxu0
      %2277 = vmatprep.mubr.bf16.mxu0 0
      %2278 = vmatmul.mubr.bf16.gmra.mrb[0].mxu0 %v1814
      %v2279 = vpop.f32.mrb[0].mxu0
      %v2280 = vadd.f32 %v2119, %v2279
      %v2281 = vpop.f32.mrb[0].mxu0
      %v2282 = vpop.f32.mrb[0].mxu0
      %v2283 = vadd.f32 %v2122, %v2282
      %v2284 = vpop.f32.mrb[0].mxu0
      %2285 = vmatprep.mubr.bf16.mxu0 0
      %2286 = vmatmul.mubr.bf16.gmra.mrb[0].mxu0 %v1817
      %v2287 = vpop.f32.mrb[0].mxu0
      %v2288 = vadd.f32 %v2127, %v2287
      %v2289 = vpop.f32.mrb[0].mxu0
      %v2290 = vpop.f32.mrb[0].mxu0
      %v2291 = vadd.f32 %v2130, %v2290
      %v2292 = vpop.f32.mrb[0].mxu0
      %2293 = vmatprep.mubr.bf16.mxu0 0
      %2294 = vmatmul.mubr.bf16.gmra.mrb[0].mxu0 %v1820
      %v2295 = vpop.f32.mrb[0].mxu0
      %v2296 = vadd.f32 %v2135, %v2295
      %v2297 = vpop.f32.mrb[0].mxu0
      %v2298 = vpop.f32.mrb[0].mxu0
      %v2299 = vadd.f32 %v2138, %v2298
      %v2300 = vpop.f32.mrb[0].mxu0
      %2301 = vmatprep.mubr.bf16.mxu0 0
      %2302 = vmatmul.mubr.bf16.gmra.mrb[0].mxu0 %v1823
      %v2303 = vpop.f32.mrb[0].mxu0
      %v2304 = vadd.f32 %v2143, %v2303
      %v2305 = vpop.f32.mrb[0].mxu0
      %v2306 = vpop.f32.mrb[0].mxu0
      %v2307 = vadd.f32 %v2146, %v2306
      %v2308 = vpop.f32.mrb[0].mxu0
      %2309 = vmatprep.mubr.bf16.mxu0 0
      %2310 = vmatmul.mubr.bf16.gmra.mrb[0].mxu0 %v1826
      %v2311 = vpop.f32.mrb[0].mxu0
      %v2312 = vadd.f32 %v2151, %v2311
      %v2313 = vpop.f32.mrb[0].mxu0
      %v2314 = vpop.f32.mrb[0].mxu0
      %v2315 = vadd.f32 %v2154, %v2314
      %v2316 = vpop.f32.mrb[0].mxu0
      %2317 = vmatprep.mubr.bf16.mxu0 0
      %2318 = vmatmul.mubr.bf16.gmra.mrb[0].mxu0 %v1829
      %v2319 = vpop.f32.mrb[0].mxu0
      %v2320 = vadd.f32 %v2159, %v2319
      %v2321 = vpop.f32.mrb[0].mxu0
      %v2322 = vpop.f32.mrb[0].mxu0
      %v2323 = vadd.f32 %v2162, %v2322
      %v2324 = vpop.f32.mrb[0].mxu0
      %2325 = vmatprep.mubr.bf16.mxu0 0
      %2326 = vmatmul.mubr.bf16.gmra.mrb[0].mxu0 %v1832
      %v2327 = vpop.f32.mrb[0].mxu0
      %v2328 = vadd.f32 %v2167, %v2327
      %v2329 = vpop.f32.mrb[0].mxu0
      %v2330 = vpop.f32.mrb[0].mxu0
      %v2331 = vadd.f32 %v2170, %v2330
      %v2332 = vpop.f32.mrb[0].mxu0
      %2333 = vmatprep.mubr.bf16.mxu0 0
      %2334 = vmatmul.mubr.bf16.gmra.mrb[0].mxu0 %v1835
      %v2335 = vpop.f32.mrb[0].mxu0
      %v2336 = vadd.f32 %v2175, %v2335
      %v2337 = vpop.f32.mrb[0].mxu0
      %v2338 = vpop.f32.mrb[0].mxu0
      %v2339 = vadd.f32 %v2178, %v2338
      %v2340 = vpop.f32.mrb[0].mxu0
      %2341 = vmatprep.mubr.bf16.mxu0 0
      %2342 = vmatmul.mubr.bf16.gmra.mrb[0].mxu0 %v1838
      %v2343 = vpop.f32.mrb[0].mxu0
      %v2344 = vadd.f32 %v2183, %v2343
      %v2345 = vpop.f32.mrb[0].mxu0
      %v2346 = vpop.f32.mrb[0].mxu0
      %v2347 = vadd.f32 %v2186, %v2346
      %v2348 = vpop.f32.mrb[0].mxu0
      %2349 = vmatprep.mubr.bf16.mxu0 0
      %2350 = vmatmul.mubr.bf16.gmra.mrb[0].mxu0 %v1841
      %v2351 = vpop.f32.mrb[0].mxu0
      %v2352 = vadd.f32 %v2191, %v2351
      %v2353 = vpop.f32.mrb[0].mxu0
      %v2354 = vpop.f32.mrb[0].mxu0
      %v2355 = vadd.f32 %v2194, %v2354
      %v2356 = vpop.f32.mrb[0].mxu0
      %2357 = vmatprep.mubr.bf16.mxu0 0
      %2358 = vmatmul.mubr.bf16.gmra.mrb[0].mxu0 %v1844
      %v2359 = vpop.f32.mrb[0].mxu0
      %v2360 = vadd.f32 %v2199, %v2359
      %v2361 = vpop.f32.mrb[0].mxu0
      %v2362 = vpop.f32.mrb[0].mxu0
      %v2363 = vadd.f32 %v2202, %v2362
      %v2364 = vpop.f32.mrb[0].mxu0
      %2365 = vmatprep.mubr.bf16.mxu0 0
      %2366 = vmatmul.mubr.bf16.gmra.mrb[0].mxu0 %v1847
      %v2367 = vpop.f32.mrb[0].mxu0
      %v2368 = vadd.f32 %v2207, %v2367
      %v2369 = vpop.f32.mrb[0].mxu0
      %v2370 = vpop.f32.mrb[0].mxu0
      %v2371 = vadd.f32 %v2210, %v2370
      %v2372 = vpop.f32.mrb[0].mxu0
      %2373 = vmatprep.mubr.bf16.mxu0 0
      %2374 = vmatmul.mubr.bf16.gmra.mrb[0].mxu0 %v1850
      %v2375 = vpop.f32.mrb[0].mxu0
      %v2376 = vadd.f32 %v2215, %v2375
      %v2377 = vpop.f32.mrb[0].mxu0
      %v2378 = vpop.f32.mrb[0].mxu0
      %v2379 = vadd.f32 %v2218, %v2378
      %v2380 = vpop.f32.mrb[0].mxu0
      %2381 = vdwg.mxu0
      %v2430 = vunpack.c.l.b16 %v1287
      %v2431 = vunpack.c.l.b16 %v1288
      %v2432 = vunpack.c.l.b16 %v1289
      %v2433 = vunpack.c.l.b16 %v1290
      %v2434 = vunpack.c.l.b16 %v1291
      %v2435 = vunpack.c.l.b16 %v1292
      %v2436 = vunpack.c.l.b16 %v1293
      %v2437 = vunpack.c.l.b16 %v1294
      %v2438 = vunpack.c.l.b16 %v1295
      %v2439 = vunpack.c.l.b16 %v1296
      %v2440 = vunpack.c.l.b16 %v1297
      %v2441 = vunpack.c.l.b16 %v1298
      %v2442 = vunpack.c.l.b16 %v1299
      %v2443 = vunpack.c.l.b16 %v1300
      %v2444 = vunpack.c.l.b16 %v1301
      %v2445 = vunpack.c.l.b16 %v1302
      %v2446 = vunpack.c.l.b16 %v1303
      %v2447 = vunpack.c.l.b16 %v1304
      %v2448 = vunpack.c.l.b16 %v1305
      %v2449 = vunpack.c.l.b16 %v1306
      %v2450 = vunpack.c.l.b16 %v1307
      %v2451 = vunpack.c.l.b16 %v1308
      %v2452 = vunpack.c.l.b16 %v1309
      %v2453 = vunpack.c.l.b16 %v1310
      %v2454 = vunpack.c.l.b16 %v1311
      %v2455 = vunpack.c.l.b16 %v1312
      %v2456 = vunpack.c.l.b16 %v1313
      %v2457 = vunpack.c.l.b16 %v1314
      %v2458 = vunpack.c.l.b16 %v1315
      %v2459 = vunpack.c.l.b16 %v1316
      %v2460 = vunpack.c.l.b16 %v1317
      %v2461 = vunpack.c.l.b16 %v1318
      %v2462 = vunpack.c.l.b16 %v1319
      %v2463 = vunpack.c.l.b16 %v1320
      %v2464 = vunpack.c.l.b16 %v1321
      %v2465 = vunpack.c.l.b16 %v1322
      %v2466 = vunpack.c.l.b16 %v1323
      %v2467 = vunpack.c.l.b16 %v1324
      %v2468 = vunpack.c.l.b16 %v1325
      %v2469 = vunpack.c.l.b16 %v1326
      %v2470 = vunpack.c.l.b16 %v1327
      %v2471 = vunpack.c.l.b16 %v1328
      %v2472 = vunpack.c.l.b16 %v1329
      %v2473 = vunpack.c.l.b16 %v1330
      %v2474 = vunpack.c.l.b16 %v1331
      %v2475 = vunpack.c.l.b16 %v1332
      %v2476 = vunpack.c.l.b16 %v1333
      %v2477 = vunpack.c.l.b16 %v1334
      %v2478 = vpack.c.b16 %v2431, %v2430
      %v2479 = vpack.c.b16 %v2433, %v2432
      %v2480 = vpack.c.b16 %v2435, %v2434
      %v2481 = vpack.c.b16 %v2437, %v2436
      %v2482 = vpack.c.b16 %v2439, %v2438
      %v2483 = vpack.c.b16 %v2441, %v2440
      %v2484 = vpack.c.b16 %v2443, %v2442
      %v2485 = vpack.c.b16 %v2445, %v2444
      %v2486 = vpack.c.b16 %v2447, %v2446
      %v2487 = vpack.c.b16 %v2449, %v2448
      %v2488 = vpack.c.b16 %v2451, %v2450
      %v2489 = vpack.c.b16 %v2453, %v2452
      %v2490 = vpack.c.b16 %v2455, %v2454
      %v2491 = vpack.c.b16 %v2457, %v2456
      %v2492 = vpack.c.b16 %v2459, %v2458
      %v2493 = vpack.c.b16 %v2461, %v2460
      %v2494 = vpack.c.b16 %v2463, %v2462
      %v2495 = vpack.c.b16 %v2465, %v2464
      %v2496 = vpack.c.b16 %v2467, %v2466
      %v2497 = vpack.c.b16 %v2469, %v2468
      %v2498 = vpack.c.b16 %v2471, %v2470
      %v2499 = vpack.c.b16 %v2473, %v2472
      %v2500 = vpack.c.b16 %v2475, %v2474
      %v2501 = vpack.c.b16 %v2477, %v2476
      %2526 = vmatprep.subr.bf16.mxu0 0
      %2527 = vmatpush1.bf16.msra.mxu0 %v2478
      %2528 = vmatprep.subr.bf16.mxu0 0
      %2529 = vmatpush1.bf16.msra.mxu0 %v2479
      %2530 = vmatprep.subr.bf16.mxu0 0
      %2531 = vmatpush1.bf16.msra.mxu0 %v2480
      %2532 = vmatprep.subr.bf16.mxu0 0
      %2533 = vmatpush1.bf16.msra.mxu0 %v2481
      %2534 = vmatprep.subr.bf16.mxu0 0
      %2535 = vmatpush1.bf16.msra.mxu0 %v2482
      %2536 = vmatprep.subr.bf16.mxu0 0
      %2537 = vmatpush1.bf16.msra.mxu0 %v2483
      %2538 = vmatprep.subr.bf16.mxu0 0
      %2539 = vmatpush1.bf16.msra.mxu0 %v2484
      %2540 = vmatprep.subr.bf16.mxu0 0
      %2541 = vmatpush1.bf16.msra.mxu0 %v2485
      %2542 = vmatprep.subr.bf16.mxu0 0
      %2543 = vmatpush1.bf16.msra.mxu0 %v2486
      %2544 = vmatprep.subr.bf16.mxu0 0
      %2545 = vmatpush1.bf16.msra.mxu0 %v2487
      %2546 = vmatprep.subr.bf16.mxu0 0
      %2547 = vmatpush1.bf16.msra.mxu0 %v2488
      %2548 = vmatprep.subr.bf16.mxu0 0
      %2549 = vmatpush1.bf16.msra.mxu0 %v2489
      %2550 = vmatprep.subr.bf16.mxu0 0
      %2551 = vmatpush1.bf16.msra.mxu0 %v2490
      %2552 = vmatprep.subr.bf16.mxu0 0
      %2553 = vmatpush1.bf16.msra.mxu0 %v2491
      %2554 = vmatprep.subr.bf16.mxu0 0
      %2555 = vmatpush1.bf16.msra.mxu0 %v2492
      %2556 = vmatprep.subr.bf16.mxu0 0
      %2557 = vmatpush1.bf16.msra.mxu0 %v2493
      %2558 = vmatprep.mubr.bf16.mxu0 %v977
      %2559 = vmatmul.mubr.bf16.gmra.mrb[0].mxu0 %v885
      %v2560 = vpop.f32.mrb[0].mxu0
      %v2561 = vadd.f32 %v2256, %v2560
      %v2562 = vpop.f32.mrb[0].mxu0
      %v2563 = vpop.f32.mrb[0].mxu0
      %v2564 = vadd.f32 %v2259, %v2563
      %v2565 = vpop.f32.mrb[0].mxu0
      %2566 = vmatprep.mubr.bf16.mxu0 %v989
      %2567 = vmatmul.mubr.bf16.gmra.mrb[0].mxu0 %v886
      %v2568 = vpop.f32.mrb[0].mxu0
      %v2569 = vadd.f32 %v2264, %v2568
      %v2570 = vpop.f32.mrb[0].mxu0
      %v2571 = vpop.f32.mrb[0].mxu0
      %v2572 = vadd.f32 %v2267, %v2571
      %v2573 = vpop.f32.mrb[0].mxu0
      %2574 = vmatprep.mubr.bf16.mxu0 %v1001
      %2575 = vmatmul.mubr.bf16.gmra.mrb[0].mxu0 %v887
      %v2576 = vpop.f32.mrb[0].mxu0
      %v2577 = vadd.f32 %v2272, %v2576
      %v2578 = vpop.f32.mrb[0].mxu0
      %v2579 = vpop.f32.mrb[0].mxu0
      %v2580 = vadd.f32 %v2275, %v2579
      %v2581 = vpop.f32.mrb[0].mxu0
      %2582 = vmatprep.mubr.bf16.mxu0 %v1013
      %2583 = vmatmul.mubr.bf16.gmra.mrb[0].mxu0 %v888
      %v2584 = vpop.f32.mrb[0].mxu0
      %v2585 = vadd.f32 %v2280, %v2584
      %v2586 = vpop.f32.mrb[0].mxu0
      %v2587 = vpop.f32.mrb[0].mxu0
      %v2588 = vadd.f32 %v2283, %v2587
      %v2589 = vpop.f32.mrb[0].mxu0
      %2590 = vmatprep.mubr.bf16.mxu0 %v1025
      %2591 = vmatmul.mubr.bf16.gmra.mrb[0].mxu0 %v889
      %v2592 = vpop.f32.mrb[0].mxu0
      %v2593 = vadd.f32 %v2288, %v2592
      %v2594 = vpop.f32.mrb[0].mxu0
      %v2595 = vpop.f32.mrb[0].mxu0
      %v2596 = vadd.f32 %v2291, %v2595
      %v2597 = vpop.f32.mrb[0].mxu0
      %2598 = vmatprep.mubr.bf16.mxu0 %v1037
      %2599 = vmatmul.mubr.bf16.gmra.mrb[0].mxu0 %v890
      %v2600 = vpop.f32.mrb[0].mxu0
      %v2601 = vadd.f32 %v2296, %v2600
      %v2602 = vpop.f32.mrb[0].mxu0
      %v2603 = vpop.f32.mrb[0].mxu0
      %v2604 = vadd.f32 %v2299, %v2603
      %v2605 = vpop.f32.mrb[0].mxu0
      %2606 = vmatprep.mubr.bf16.mxu0 %v1049
      %2607 = vmatmul.mubr.bf16.gmra.mrb[0].mxu0 %v891
      %v2608 = vpop.f32.mrb[0].mxu0
      %v2609 = vadd.f32 %v2304, %v2608
      %v2610 = vpop.f32.mrb[0].mxu0
      %v2611 = vpop.f32.mrb[0].mxu0
      %v2612 = vadd.f32 %v2307, %v2611
      %v2613 = vpop.f32.mrb[0].mxu0
      %2614 = vmatprep.mubr.bf16.mxu0 %v1061
      %2615 = vmatmul.mubr.bf16.gmra.mrb[0].mxu0 %v892
      %v2616 = vpop.f32.mrb[0].mxu0
      %v2617 = vadd.f32 %v2312, %v2616
      %v2618 = vpop.f32.mrb[0].mxu0
      %v2619 = vpop.f32.mrb[0].mxu0
      %v2620 = vadd.f32 %v2315, %v2619
      %v2621 = vpop.f32.mrb[0].mxu0
      %2622 = vmatprep.mubr.bf16.mxu0 %v1073
      %2623 = vmatmul.mubr.bf16.gmra.mrb[0].mxu0 %v893
      %v2624 = vpop.f32.mrb[0].mxu0
      %v2625 = vadd.f32 %v2320, %v2624
      %v2626 = vpop.f32.mrb[0].mxu0
      %v2627 = vpop.f32.mrb[0].mxu0
      %v2628 = vadd.f32 %v2323, %v2627
      %v2629 = vpop.f32.mrb[0].mxu0
      %2630 = vmatprep.mubr.bf16.mxu0 %v1085
      %2631 = vmatmul.mubr.bf16.gmra.mrb[0].mxu0 %v894
      %v2632 = vpop.f32.mrb[0].mxu0
      %v2633 = vadd.f32 %v2328, %v2632
      %v2634 = vpop.f32.mrb[0].mxu0
      %v2635 = vpop.f32.mrb[0].mxu0
      %v2636 = vadd.f32 %v2331, %v2635
      %v2637 = vpop.f32.mrb[0].mxu0
      %2638 = vmatprep.mubr.bf16.mxu0 %v1097
      %2639 = vmatmul.mubr.bf16.gmra.mrb[0].mxu0 %v895
      %v2640 = vpop.f32.mrb[0].mxu0
      %v2641 = vadd.f32 %v2336, %v2640
      %v2642 = vpop.f32.mrb[0].mxu0
      %v2643 = vpop.f32.mrb[0].mxu0
      %v2644 = vadd.f32 %v2339, %v2643
      %v2645 = vpop.f32.mrb[0].mxu0
      %2646 = vmatprep.mubr.bf16.mxu0 %v1109
      %2647 = vmatmul.mubr.bf16.gmra.mrb[0].mxu0 %v896
      %v2648 = vpop.f32.mrb[0].mxu0
      %v2649 = vadd.f32 %v2344, %v2648
      %v2650 = vpop.f32.mrb[0].mxu0
      %v2651 = vpop.f32.mrb[0].mxu0
      %v2652 = vadd.f32 %v2347, %v2651
      %v2653 = vpop.f32.mrb[0].mxu0
      %2654 = vmatprep.mubr.bf16.mxu0 %v1121
      %2655 = vmatmul.mubr.bf16.gmra.mrb[0].mxu0 %v897
      %v2656 = vpop.f32.mrb[0].mxu0
      %v2657 = vadd.f32 %v2352, %v2656
      %v2658 = vpop.f32.mrb[0].mxu0
      %v2659 = vpop.f32.mrb[0].mxu0
      %v2660 = vadd.f32 %v2355, %v2659
      %v2661 = vpop.f32.mrb[0].mxu0
      %2662 = vmatprep.mubr.bf16.mxu0 %v1133
      %2663 = vmatmul.mubr.bf16.gmra.mrb[0].mxu0 %v898
      %v2664 = vpop.f32.mrb[0].mxu0
      %v2665 = vadd.f32 %v2360, %v2664
      %v2666 = vpop.f32.mrb[0].mxu0
      %v2667 = vpop.f32.mrb[0].mxu0
      %v2668 = vadd.f32 %v2363, %v2667
      %v2669 = vpop.f32.mrb[0].mxu0
      %2670 = vmatprep.mubr.bf16.mxu0 %v1145
      %2671 = vmatmul.mubr.bf16.gmra.mrb[0].mxu0 %v899
      %v2672 = vpop.f32.mrb[0].mxu0
      %v2673 = vadd.f32 %v2368, %v2672
      %v2674 = vpop.f32.mrb[0].mxu0
      %v2675 = vpop.f32.mrb[0].mxu0
      %v2676 = vadd.f32 %v2371, %v2675
      %v2677 = vpop.f32.mrb[0].mxu0
      %2678 = vmatprep.mubr.bf16.mxu0 %v1157
      %2679 = vmatmul.mubr.bf16.gmra.mrb[0].mxu0 %v900
      %v2680 = vpop.f32.mrb[0].mxu0
      %v2681 = vadd.f32 %v2376, %v2680
      %v2682 = vpop.f32.mrb[0].mxu0
      %v2683 = vpop.f32.mrb[0].mxu0
      %v2684 = vadd.f32 %v2379, %v2683
      %v2685 = vpop.f32.mrb[0].mxu0
      %2686 = vdwg.mxu0
      %2687 = vmatprep.subr.bf16.mxu0 0
      %2688 = vmatpush1.bf16.msra.mxu0 %v2494
      %2689 = vmatprep.subr.bf16.mxu0 0
      %2690 = vmatpush1.bf16.msra.mxu0 %v2495
      %2691 = vmatprep.subr.bf16.mxu0 0
      %2692 = vmatpush1.bf16.msra.mxu0 %v2496
      %2693 = vmatprep.subr.bf16.mxu0 0
      %2694 = vmatpush1.bf16.msra.mxu0 %v2497
      %2695 = vmatprep.subr.bf16.mxu0 0
      %2696 = vmatpush1.bf16.msra.mxu0 %v2498
      %2697 = vmatprep.subr.bf16.mxu0 0
      %2698 = vmatpush1.bf16.msra.mxu0 %v2499
      %2699 = vmatprep.subr.bf16.mxu0 0
      %2700 = vmatpush1.bf16.msra.mxu0 %v2500
      %2701 = vmatprep.subr.bf16.mxu0 0
      %2702 = vmatpush1.bf16.msra.mxu0 %v2501
      %2703 = vmatprep.subr.bf16.mxu0 0
      %2704 = vmatpush1.bf16.msra.mxu0 0
      %2705 = vmatprep.subr.bf16.mxu0 0
      %2706 = vmatpush1.bf16.msra.mxu0 0
      %2707 = vmatprep.subr.bf16.mxu0 0
      %2708 = vmatpush1.bf16.msra.mxu0 0
      %2709 = vmatprep.subr.bf16.mxu0 0
      %2710 = vmatpush1.bf16.msra.mxu0 0
      %2711 = vmatprep.subr.bf16.mxu0 0
      %2712 = vmatpush1.bf16.msra.mxu0 0
      %2713 = vmatprep.subr.bf16.mxu0 0
      %2714 = vmatpush1.bf16.msra.mxu0 0
      %2715 = vmatprep.subr.bf16.mxu0 0
      %2716 = vmatpush1.bf16.msra.mxu0 0
      %2717 = vmatprep.subr.bf16.mxu0 0
      %2718 = vmatpush1.bf16.msra.mxu0 0
      %2719 = vmatprep.mubr.bf16.mxu0 0
      %2720 = vmatmul.mubr.bf16.gmra.mrb[0].mxu0 %v1225
      %v2721 = vpop.f32.mrb[0].mxu0
      %v2722 = vadd.f32 %v2561, %v2721
      %v2723 = vpop.f32.mrb[0].mxu0
      %v2724 = vpop.f32.mrb[0].mxu0
      %v2725 = vadd.f32 %v2564, %v2724
      %v2726 = vpop.f32.mrb[0].mxu0
      %2727 = vmatprep.mubr.bf16.mxu0 0
      %2728 = vmatmul.mubr.bf16.gmra.mrb[0].mxu0 %v1228
      %v2729 = vpop.f32.mrb[0].mxu0
      %v2730 = vadd.f32 %v2569, %v2729
      %v2731 = vpop.f32.mrb[0].mxu0
      %v2732 = vpop.f32.mrb[0].mxu0
      %v2733 = vadd.f32 %v2572, %v2732
      %v2734 = vpop.f32.mrb[0].mxu0
      %2735 = vmatprep.mubr.bf16.mxu0 0
      %2736 = vmatmul.mubr.bf16.gmra.mrb[0].mxu0 %v1231
      %v2737 = vpop.f32.mrb[0].mxu0
      %v2738 = vadd.f32 %v2577, %v2737
      %v2739 = vpop.f32.mrb[0].mxu0
      %v2740 = vpop.f32.mrb[0].mxu0
      %v2741 = vadd.f32 %v2580, %v2740
      %v2742 = vpop.f32.mrb[0].mxu0
      %2743 = vmatprep.mubr.bf16.mxu0 0
      %2744 = vmatmul.mubr.bf16.gmra.mrb[0].mxu0 %v1234
      %v2745 = vpop.f32.mrb[0].mxu0
      %v2746 = vadd.f32 %v2585, %v2745
      %v2747 = vpop.f32.mrb[0].mxu0
      %v2748 = vpop.f32.mrb[0].mxu0
      %v2749 = vadd.f32 %v2588, %v2748
      %v2750 = vpop.f32.mrb[0].mxu0
      %2751 = vmatprep.mubr.bf16.mxu0 0
      %2752 = vmatmul.mubr.bf16.gmra.mrb[0].mxu0 %v1237
      %v2753 = vpop.f32.mrb[0].mxu0
      %v2754 = vadd.f32 %v2593, %v2753
      %v2755 = vpop.f32.mrb[0].mxu0
      %v2756 = vpop.f32.mrb[0].mxu0
      %v2757 = vadd.f32 %v2596, %v2756
      %v2758 = vpop.f32.mrb[0].mxu0
      %2759 = vmatprep.mubr.bf16.mxu0 0
      %2760 = vmatmul.mubr.bf16.gmra.mrb[0].mxu0 %v1240
      %v2761 = vpop.f32.mrb[0].mxu0
      %v2762 = vadd.f32 %v2601, %v2761
      %v2763 = vpop.f32.mrb[0].mxu0
      %v2764 = vpop.f32.mrb[0].mxu0
      %v2765 = vadd.f32 %v2604, %v2764
      %v2766 = vpop.f32.mrb[0].mxu0
      %2767 = vmatprep.mubr.bf16.mxu0 0
      %2768 = vmatmul.mubr.bf16.gmra.mrb[0].mxu0 %v1243
      %v2769 = vpop.f32.mrb[0].mxu0
      %v2770 = vadd.f32 %v2609, %v2769
      %v2771 = vpop.f32.mrb[0].mxu0
      %v2772 = vpop.f32.mrb[0].mxu0
      %v2773 = vadd.f32 %v2612, %v2772
      %v2774 = vpop.f32.mrb[0].mxu0
      %2775 = vmatprep.mubr.bf16.mxu0 0
      %2776 = vmatmul.mubr.bf16.gmra.mrb[0].mxu0 %v1246
      %v2777 = vpop.f32.mrb[0].mxu0
      %v2778 = vadd.f32 %v2617, %v2777
      %v2779 = vpop.f32.mrb[0].mxu0
      %v2780 = vpop.f32.mrb[0].mxu0
      %v2781 = vadd.f32 %v2620, %v2780
      %v2782 = vpop.f32.mrb[0].mxu0
      %2783 = vmatprep.mubr.bf16.mxu0 0
      %2784 = vmatmul.mubr.bf16.gmra.mrb[0].mxu0 %v1249
      %v2785 = vpop.f32.mrb[0].mxu0
      %v2786 = vadd.f32 %v2625, %v2785
      %v2787 = vpop.f32.mrb[0].mxu0
      %v2788 = vpop.f32.mrb[0].mxu0
      %v2789 = vadd.f32 %v2628, %v2788
      %v2790 = vpop.f32.mrb[0].mxu0
      %2791 = vmatprep.mubr.bf16.mxu0 0
      %2792 = vmatmul.mubr.bf16.gmra.mrb[0].mxu0 %v1252
      %v2793 = vpop.f32.mrb[0].mxu0
      %v2794 = vadd.f32 %v2633, %v2793
      %v2795 = vpop.f32.mrb[0].mxu0
      %v2796 = vpop.f32.mrb[0].mxu0
      %v2797 = vadd.f32 %v2636, %v2796
      %v2798 = vpop.f32.mrb[0].mxu0
      %2799 = vmatprep.mubr.bf16.mxu0 0
      %2800 = vmatmul.mubr.bf16.gmra.mrb[0].mxu0 %v1255
      %v2801 = vpop.f32.mrb[0].mxu0
      %v2802 = vadd.f32 %v2641, %v2801
      %v2803 = vpop.f32.mrb[0].mxu0
      %v2804 = vpop.f32.mrb[0].mxu0
      %v2805 = vadd.f32 %v2644, %v2804
      %v2806 = vpop.f32.mrb[0].mxu0
      %2807 = vmatprep.mubr.bf16.mxu0 0
      %2808 = vmatmul.mubr.bf16.gmra.mrb[0].mxu0 %v1258
      %v2809 = vpop.f32.mrb[0].mxu0
      %v2810 = vadd.f32 %v2649, %v2809
      %v2811 = vpop.f32.mrb[0].mxu0
      %v2812 = vpop.f32.mrb[0].mxu0
      %v2813 = vadd.f32 %v2652, %v2812
      %v2814 = vpop.f32.mrb[0].mxu0
      %2815 = vmatprep.mubr.bf16.mxu0 0
      %2816 = vmatmul.mubr.bf16.gmra.mrb[0].mxu0 %v1261
      %v2817 = vpop.f32.mrb[0].mxu0
      %v2818 = vadd.f32 %v2657, %v2817
      %v2819 = vpop.f32.mrb[0].mxu0
      %v2820 = vpop.f32.mrb[0].mxu0
      %v2821 = vadd.f32 %v2660, %v2820
      %v2822 = vpop.f32.mrb[0].mxu0
      %2823 = vmatprep.mubr.bf16.mxu0 0
      %2824 = vmatmul.mubr.bf16.gmra.mrb[0].mxu0 %v1264
      %v2825 = vpop.f32.mrb[0].mxu0
      %v2826 = vadd.f32 %v2665, %v2825
      %v2827 = vpop.f32.mrb[0].mxu0
      %v2828 = vpop.f32.mrb[0].mxu0
      %v2829 = vadd.f32 %v2668, %v2828
      %v2830 = vpop.f32.mrb[0].mxu0
      %2831 = vmatprep.mubr.bf16.mxu0 0
      %2832 = vmatmul.mubr.bf16.gmra.mrb[0].mxu0 %v1267
      %v2833 = vpop.f32.mrb[0].mxu0
      %v2834 = vadd.f32 %v2673, %v2833
      %v2835 = vpop.f32.mrb[0].mxu0
      %v2836 = vpop.f32.mrb[0].mxu0
      %v2837 = vadd.f32 %v2676, %v2836
      %v2838 = vpop.f32.mrb[0].mxu0
      %2839 = vmatprep.mubr.bf16.mxu0 0
      %2840 = vmatmul.mubr.bf16.gmra.mrb[0].mxu0 %v1270
      %v2841 = vpop.f32.mrb[0].mxu0
      %v2842 = vadd.f32 %v2681, %v2841
      %v2843 = vpop.f32.mrb[0].mxu0
      %v2844 = vpop.f32.mrb[0].mxu0
      %v2845 = vadd.f32 %v2684, %v2844
      %v2846 = vpop.f32.mrb[0].mxu0
      %2847 = vdwg.mxu0
      %s2848 = sadd.s32 %s753, 2
      %s2849 = smul.u32 %s2848, 3
      %s2850 = smul.addr %s2849, 4
      %s2851 = scalar_lea.vmem [#allocation2], %s2850
      %v2852 = vld [vmem:[%s2851] sm:$0xf]
      %v2853 = vld [vmem:[%s2851 + $0x4] sm:$0xf]
      %v2854 = vld [vmem:[%s2851 + $0xc] sm:$0xf]
      %v2855 = vld [vmem:[%s2851 + $0x10] sm:$0xf]
      %v2856 = vld [vmem:[%s2851 + $0x18] sm:$0xf]
      %v2857 = vld [vmem:[%s2851 + $0x1c] sm:$0xf]
      %v2858 = vld [vmem:[%s2851 + $0x24] sm:$0xf]
      %v2859 = vld [vmem:[%s2851 + $0x28] sm:$0xf]
      %v2860 = vld [vmem:[%s2851 + $0x30] sm:$0xf]
      %v2861 = vld [vmem:[%s2851 + $0x34] sm:$0xf]
      %v2862 = vld [vmem:[%s2851 + $0x3c] sm:$0xf]
      %v2863 = vld [vmem:[%s2851 + $0x40] sm:$0xf]
      %v2864 = vld [vmem:[%s2851 + $0x48] sm:$0xf]
      %v2865 = vld [vmem:[%s2851 + $0x4c] sm:$0xf]
      %v2866 = vld [vmem:[%s2851 + $0x54] sm:$0xf]
      %v2867 = vld [vmem:[%s2851 + $0x58] sm:$0xf]
      %v2868 = vld [vmem:[%s2851 + $0x60] sm:$0xf]
      %v2869 = vld [vmem:[%s2851 + $0x64] sm:$0xf]
      %v2870 = vld [vmem:[%s2851 + $0x6c] sm:$0xf]
      %v2871 = vld [vmem:[%s2851 + $0x70] sm:$0xf]
      %v2872 = vld [vmem:[%s2851 + $0x78] sm:$0xf]
      %v2873 = vld [vmem:[%s2851 + $0x7c] sm:$0xf]
      %v2874 = vld [vmem:[%s2851 + $0x84] sm:$0xf]
      %v2875 = vld [vmem:[%s2851 + $0x88] sm:$0xf]
      %v2876 = vld [vmem:[%s2851 + $0x90] sm:$0xf]
      %v2877 = vld [vmem:[%s2851 + $0x94] sm:$0xf]
      %v2878 = vld [vmem:[%s2851 + $0x9c] sm:$0xf]
      %v2879 = vld [vmem:[%s2851 + $0xa0] sm:$0xf]
      %v2880 = vld [vmem:[%s2851 + $0xa8] sm:$0xf]
      %v2881 = vld [vmem:[%s2851 + $0xac] sm:$0xf]
      %v2882 = vld [vmem:[%s2851 + $0xb4] sm:$0xf]
      %v2883 = vld [vmem:[%s2851 + $0xb8] sm:$0xf]
      %v2884 = vld [vmem:[%s2851 + $0x8] sm:$0x1]
      %v2885 = vld [vmem:[%s2851 + $0x14] sm:$0x1]
      %v2886 = vld [vmem:[%s2851 + $0x20] sm:$0x1]
      %v2887 = vld [vmem:[%s2851 + $0x2c] sm:$0x1]
      %v2888 = vld [vmem:[%s2851 + $0x38] sm:$0x1]
      %v2889 = vld [vmem:[%s2851 + $0x44] sm:$0x1]
      %v2890 = vld [vmem:[%s2851 + $0x50] sm:$0x1]
      %v2891 = vld [vmem:[%s2851 + $0x5c] sm:$0x1]
      %v2892 = vld [vmem:[%s2851 + $0x68] sm:$0x1]
      %v2893 = vld [vmem:[%s2851 + $0x74] sm:$0x1]
      %v2894 = vld [vmem:[%s2851 + $0x80] sm:$0x1]
      %v2895 = vld [vmem:[%s2851 + $0x8c] sm:$0x1]
      %v2896 = vld [vmem:[%s2851 + $0x98] sm:$0x1]
      %v2897 = vld [vmem:[%s2851 + $0xa4] sm:$0x1]
      %v2898 = vld [vmem:[%s2851 + $0xb0] sm:$0x1]
      %v2899 = vld [vmem:[%s2851 + $0xbc] sm:$0x1]
      %v2900 = vld [vmem:[%s2851] sm:$0xe]
      %v2901 = vld [vmem:[%s2851 + $0xc] sm:$0xe]
      %v2902 = vld [vmem:[%s2851 + $0x18] sm:$0xe]
      %v2903 = vld [vmem:[%s2851 + $0x24] sm:$0xe]
      %v2904 = vld [vmem:[%s2851 + $0x30] sm:$0xe]
      %v2905 = vld [vmem:[%s2851 + $0x3c] sm:$0xe]
      %v2906 = vld [vmem:[%s2851 + $0x48] sm:$0xe]
      %v2907 = vld [vmem:[%s2851 + $0x54] sm:$0xe]
      %v2908 = vld [vmem:[%s2851 + $0x60] sm:$0xe]
      %v2909 = vld [vmem:[%s2851 + $0x6c] sm:$0xe]
      %v2910 = vld [vmem:[%s2851 + $0x78] sm:$0xe]
      %v2911 = vld [vmem:[%s2851 + $0x84] sm:$0xe]
      %v2912 = vld [vmem:[%s2851 + $0x90] sm:$0xe]
      %v2913 = vld [vmem:[%s2851 + $0x9c] sm:$0xe]
      %v2914 = vld [vmem:[%s2851 + $0xa8] sm:$0xe]
      %v2915 = vld [vmem:[%s2851 + $0xb4] sm:$0xe]
      %v2948 = vunpack.c.l.b16 %v2852
      %v2949 = vunpack.c.l.b16 %v2853
      %v2950 = vunpack.c.l.b16 %v2854
      %v2951 = vunpack.c.l.b16 %v2855
      %v2952 = vunpack.c.l.b16 %v2856
      %v2953 = vunpack.c.l.b16 %v2857
      %v2954 = vunpack.c.l.b16 %v2858
      %v2955 = vunpack.c.l.b16 %v2859
      %v2956 = vunpack.c.l.b16 %v2860
      %v2957 = vunpack.c.l.b16 %v2861
      %v2958 = vunpack.c.l.b16 %v2862
      %v2959 = vunpack.c.l.b16 %v2863
      %v2960 = vunpack.c.l.b16 %v2864
      %v2961 = vunpack.c.l.b16 %v2865
      %v2962 = vunpack.c.l.b16 %v2866
      %v2963 = vunpack.c.l.b16 %v2867
      %v2964 = vunpack.c.l.b16 %v2868
      %v2965 = vunpack.c.l.b16 %v2869
      %v2966 = vunpack.c.l.b16 %v2870
      %v2967 = vunpack.c.l.b16 %v2871
      %v2968 = vunpack.c.l.b16 %v2872
      %v2969 = vunpack.c.l.b16 %v2873
      %v2970 = vunpack.c.l.b16 %v2874
      %v2971 = vunpack.c.l.b16 %v2875
      %v2972 = vunpack.c.l.b16 %v2876
      %v2973 = vunpack.c.l.b16 %v2877
      %v2974 = vunpack.c.l.b16 %v2878
      %v2975 = vunpack.c.l.b16 %v2879
      %v2976 = vunpack.c.l.b16 %v2880
      %v2977 = vunpack.c.l.b16 %v2881
      %v2978 = vunpack.c.l.b16 %v2882
      %v2979 = vunpack.c.l.b16 %v2883
      %v2980 = vpack.c.b16 %v2949, %v2948
      %v2981 = vpack.c.b16 %v2951, %v2950
      %v2982 = vpack.c.b16 %v2953, %v2952
      %v2983 = vpack.c.b16 %v2955, %v2954
      %v2984 = vpack.c.b16 %v2957, %v2956
      %v2985 = vpack.c.b16 %v2959, %v2958
      %v2986 = vpack.c.b16 %v2961, %v2960
      %v2987 = vpack.c.b16 %v2963, %v2962
      %v2988 = vpack.c.b16 %v2965, %v2964
      %v2989 = vpack.c.b16 %v2967, %v2966
      %v2990 = vpack.c.b16 %v2969, %v2968
      %v2991 = vpack.c.b16 %v2971, %v2970
      %v2992 = vpack.c.b16 %v2973, %v2972
      %v2993 = vpack.c.b16 %v2975, %v2974
      %v2994 = vpack.c.b16 %v2977, %v2976
      %v2995 = vpack.c.b16 %v2979, %v2978
      %v3028 = vunpack.c.l.b16 %v2884
      %v3029 = vunpack.c.l.b16 %v2885
      %v3030 = vunpack.c.l.b16 %v2886
      %v3031 = vunpack.c.l.b16 %v2887
      %v3032 = vunpack.c.l.b16 %v2888
      %v3033 = vunpack.c.l.b16 %v2889
      %v3034 = vunpack.c.l.b16 %v2890
      %v3035 = vunpack.c.l.b16 %v2891
      %v3036 = vunpack.c.l.b16 %v2892
      %v3037 = vunpack.c.l.b16 %v2893
      %v3038 = vunpack.c.l.b16 %v2894
      %v3039 = vunpack.c.l.b16 %v2895
      %v3040 = vunpack.c.l.b16 %v2896
      %v3041 = vunpack.c.l.b16 %v2897
      %v3042 = vunpack.c.l.b16 %v2898
      %v3043 = vunpack.c.l.b16 %v2899
      %v3044 = vpack.c.b16 %v3028, %v3028
      %v3045 = vpack.c.b16 %v3029, %v3029
      %v3046 = vpack.c.b16 %v3030, %v3030
      %v3047 = vpack.c.b16 %v3031, %v3031
      %v3048 = vpack.c.b16 %v3032, %v3032
      %v3049 = vpack.c.b16 %v3033, %v3033
      %v3050 = vpack.c.b16 %v3034, %v3034
      %v3051 = vpack.c.b16 %v3035, %v3035
      %v3052 = vpack.c.b16 %v3036, %v3036
      %v3053 = vpack.c.b16 %v3037, %v3037
      %v3054 = vpack.c.b16 %v3038, %v3038
      %v3055 = vpack.c.b16 %v3039, %v3039
      %v3056 = vpack.c.b16 %v3040, %v3040
      %v3057 = vpack.c.b16 %v3041, %v3041
      %v3058 = vpack.c.b16 %v3042, %v3042
      %v3059 = vpack.c.b16 %v3043, %v3043
      %v3061 = vshrl.u32 %v2980, 16
      %v3063 = vshll.u32 %v2980, 16
      %v3065 = vrot.slane %v3063, 1
      %v3066 = vor.u32 %v3061, %v3065
      %v3068 = vshll.u32 %v3044, 16
      %v3070 = vrot.slane %v3068, 1
      %v3071 = vsel %vm965, %v3066, %v3070
      %v3073 = vshrl.u32 %v2981, 16
      %v3075 = vshll.u32 %v2981, 16
      %v3077 = vrot.slane %v3075, 1
      %v3078 = vor.u32 %v3073, %v3077
      %v3080 = vshll.u32 %v3045, 16
      %v3082 = vrot.slane %v3080, 1
      %v3083 = vsel %vm965, %v3078, %v3082
      %v3085 = vshrl.u32 %v2982, 16
      %v3087 = vshll.u32 %v2982, 16
      %v3089 = vrot.slane %v3087, 1
      %v3090 = vor.u32 %v3085, %v3089
      %v3092 = vshll.u32 %v3046, 16
      %v3094 = vrot.slane %v3092, 1
      %v3095 = vsel %vm965, %v3090, %v3094
      %v3097 = vshrl.u32 %v2983, 16
      %v3099 = vshll.u32 %v2983, 16
      %v3101 = vrot.slane %v3099, 1
      %v3102 = vor.u32 %v3097, %v3101
      %v3104 = vshll.u32 %v3047, 16
      %v3106 = vrot.slane %v3104, 1
      %v3107 = vsel %vm965, %v3102, %v3106
      %v3109 = vshrl.u32 %v2984, 16
      %v3111 = vshll.u32 %v2984, 16
      %v3113 = vrot.slane %v3111, 1
      %v3114 = vor.u32 %v3109, %v3113
      %v3116 = vshll.u32 %v3048, 16
      %v3118 = vrot.slane %v3116, 1
      %v3119 = vsel %vm965, %v3114, %v3118
      %v3121 = vshrl.u32 %v2985, 16
      %v3123 = vshll.u32 %v2985, 16
      %v3125 = vrot.slane %v3123, 1
      %v3126 = vor.u32 %v3121, %v3125
      %v3128 = vshll.u32 %v3049, 16
      %v3130 = vrot.slane %v3128, 1
      %v3131 = vsel %vm965, %v3126, %v3130
      %v3133 = vshrl.u32 %v2986, 16
      %v3135 = vshll.u32 %v2986, 16
      %v3137 = vrot.slane %v3135, 1
      %v3138 = vor.u32 %v3133, %v3137
      %v3140 = vshll.u32 %v3050, 16
      %v3142 = vrot.slane %v3140, 1
      %v3143 = vsel %vm965, %v3138, %v3142
      %v3145 = vshrl.u32 %v2987, 16
      %v3147 = vshll.u32 %v2987, 16
      %v3149 = vrot.slane %v3147, 1
      %v3150 = vor.u32 %v3145, %v3149
      %v3152 = vshll.u32 %v3051, 16
      %v3154 = vrot.slane %v3152, 1
      %v3155 = vsel %vm965, %v3150, %v3154
      %v3157 = vshrl.u32 %v2988, 16
      %v3159 = vshll.u32 %v2988, 16
      %v3161 = vrot.slane %v3159, 1
      %v3162 = vor.u32 %v3157, %v3161
      %v3164 = vshll.u32 %v3052, 16
      %v3166 = vrot.slane %v3164, 1
      %v3167 = vsel %vm965, %v3162, %v3166
      %v3169 = vshrl.u32 %v2989, 16
      %v3171 = vshll.u32 %v2989, 16
      %v3173 = vrot.slane %v3171, 1
      %v3174 = vor.u32 %v3169, %v3173
      %v3176 = vshll.u32 %v3053, 16
      %v3178 = vrot.slane %v3176, 1
      %v3179 = vsel %vm965, %v3174, %v3178
      %v3181 = vshrl.u32 %v2990, 16
      %v3183 = vshll.u32 %v2990, 16
      %v3185 = vrot.slane %v3183, 1
      %v3186 = vor.u32 %v3181, %v3185
      %v3188 = vshll.u32 %v3054, 16
      %v3190 = vrot.slane %v3188, 1
      %v3191 = vsel %vm965, %v3186, %v3190
      %v3193 = vshrl.u32 %v2991, 16
      %v3195 = vshll.u32 %v2991, 16
      %v3197 = vrot.slane %v3195, 1
      %v3198 = vor.u32 %v3193, %v3197
      %v3200 = vshll.u32 %v3055, 16
      %v3202 = vrot.slane %v3200, 1
      %v3203 = vsel %vm965, %v3198, %v3202
      %v3205 = vshrl.u32 %v2992, 16
      %v3207 = vshll.u32 %v2992, 16
      %v3209 = vrot.slane %v3207, 1
      %v3210 = vor.u32 %v3205, %v3209
      %v3212 = vshll.u32 %v3056, 16
      %v3214 = vrot.slane %v3212, 1
      %v3215 = vsel %vm965, %v3210, %v3214
      %v3217 = vshrl.u32 %v2993, 16
      %v3219 = vshll.u32 %v2993, 16
      %v3221 = vrot.slane %v3219, 1
      %v3222 = vor.u32 %v3217, %v3221
      %v3224 = vshll.u32 %v3057, 16
      %v3226 = vrot.slane %v3224, 1
      %v3227 = vsel %vm965, %v3222, %v3226
      %v3229 = vshrl.u32 %v2994, 16
      %v3231 = vshll.u32 %v2994, 16
      %v3233 = vrot.slane %v3231, 1
      %v3234 = vor.u32 %v3229, %v3233
      %v3236 = vshll.u32 %v3058, 16
      %v3238 = vrot.slane %v3236, 1
      %v3239 = vsel %vm965, %v3234, %v3238
      %v3241 = vshrl.u32 %v2995, 16
      %v3243 = vshll.u32 %v2995, 16
      %v3245 = vrot.slane %v3243, 1
      %v3246 = vor.u32 %v3241, %v3245
      %v3248 = vshll.u32 %v3059, 16
      %v3250 = vrot.slane %v3248, 1
      %v3251 = vsel %vm965, %v3246, %v3250
      %v3284 = vunpack.c.l.b16 %v2900
      %v3285 = vunpack.c.l.b16 %v2901
      %v3286 = vunpack.c.l.b16 %v2902
      %v3287 = vunpack.c.l.b16 %v2903
      %v3288 = vunpack.c.l.b16 %v2904
      %v3289 = vunpack.c.l.b16 %v2905
      %v3290 = vunpack.c.l.b16 %v2906
      %v3291 = vunpack.c.l.b16 %v2907
      %v3292 = vunpack.c.l.b16 %v2908
      %v3293 = vunpack.c.l.b16 %v2909
      %v3294 = vunpack.c.l.b16 %v2910
      %v3295 = vunpack.c.l.b16 %v2911
      %v3296 = vunpack.c.l.b16 %v2912
      %v3297 = vunpack.c.l.b16 %v2913
      %v3298 = vunpack.c.l.b16 %v2914
      %v3299 = vunpack.c.l.b16 %v2915
      %v3300 = vpack.c.b16 %v2949, %v3284
      %v3301 = vpack.c.b16 %v2951, %v3285
      %v3302 = vpack.c.b16 %v2953, %v3286
      %v3303 = vpack.c.b16 %v2955, %v3287
      %v3304 = vpack.c.b16 %v2957, %v3288
      %v3305 = vpack.c.b16 %v2959, %v3289
      %v3306 = vpack.c.b16 %v2961, %v3290
      %v3307 = vpack.c.b16 %v2963, %v3291
      %v3308 = vpack.c.b16 %v2965, %v3292
      %v3309 = vpack.c.b16 %v2967, %v3293
      %v3310 = vpack.c.b16 %v2969, %v3294
      %v3311 = vpack.c.b16 %v2971, %v3295
      %v3312 = vpack.c.b16 %v2973, %v3296
      %v3313 = vpack.c.b16 %v2975, %v3297
      %v3314 = vpack.c.b16 %v2977, %v3298
      %v3315 = vpack.c.b16 %v2979, %v3299
      %v3316 = vrot.slane %v3300, 1
      %v3317 = vrot.slane %v3044, 1
      %v3318 = vsel %vm1222, %v3316, %v3317
      %v3319 = vrot.slane %v3301, 1
      %v3320 = vrot.slane %v3045, 1
      %v3321 = vsel %vm1222, %v3319, %v3320
      %v3322 = vrot.slane %v3302, 1
      %v3323 = vrot.slane %v3046, 1
      %v3324 = vsel %vm1222, %v3322, %v3323
      %v3325 = vrot.slane %v3303, 1
      %v3326 = vrot.slane %v3047, 1
      %v3327 = vsel %vm1222, %v3325, %v3326
      %v3328 = vrot.slane %v3304, 1
      %v3329 = vrot.slane %v3048, 1
      %v3330 = vsel %vm1222, %v3328, %v3329
      %v3331 = vrot.slane %v3305, 1
      %v3332 = vrot.slane %v3049, 1
      %v3333 = vsel %vm1222, %v3331, %v3332
      %v3334 = vrot.slane %v3306, 1
      %v3335 = vrot.slane %v3050, 1
      %v3336 = vsel %vm1222, %v3334, %v3335
      %v3337 = vrot.slane %v3307, 1
      %v3338 = vrot.slane %v3051, 1
      %v3339 = vsel %vm1222, %v3337, %v3338
      %v3340 = vrot.slane %v3308, 1
      %v3341 = vrot.slane %v3052, 1
      %v3342 = vsel %vm1222, %v3340, %v3341
      %v3343 = vrot.slane %v3309, 1
      %v3344 = vrot.slane %v3053, 1
      %v3345 = vsel %vm1222, %v3343, %v3344
      %v3346 = vrot.slane %v3310, 1
      %v3347 = vrot.slane %v3054, 1
      %v3348 = vsel %vm1222, %v3346, %v3347
      %v3349 = vrot.slane %v3311, 1
      %v3350 = vrot.slane %v3055, 1
      %v3351 = vsel %vm1222, %v3349, %v3350
      %v3352 = vrot.slane %v3312, 1
      %v3353 = vrot.slane %v3056, 1
      %v3354 = vsel %vm1222, %v3352, %v3353
      %v3355 = vrot.slane %v3313, 1
      %v3356 = vrot.slane %v3057, 1
      %v3357 = vsel %vm1222, %v3355, %v3356
      %v3358 = vrot.slane %v3314, 1
      %v3359 = vrot.slane %v3058, 1
      %v3360 = vsel %vm1222, %v3358, %v3359
      %v3361 = vrot.slane %v3315, 1
      %v3362 = vrot.slane %v3059, 1
      %v3363 = vsel %vm1222, %v3361, %v3362
      %s3380 = scalar_lea.vmem %s1, 384
      %v3381 = vld [vmem:[%s3380] sm:$0xf]
      %v3382 = vld [vmem:[%s3380 + $0x4] sm:$0xf]
      %v3383 = vld [vmem:[%s3380 + $0x8] sm:$0xf]
      %v3384 = vld [vmem:[%s3380 + $0xc] sm:$0xf]
      %v3385 = vld [vmem:[%s3380 + $0x10] sm:$0xf]
      %v3386 = vld [vmem:[%s3380 + $0x14] sm:$0xf]
      %v3387 = vld [vmem:[%s3380 + $0x18] sm:$0xf]
      %v3388 = vld [vmem:[%s3380 + $0x1c] sm:$0xf]
      %v3389 = vld [vmem:[%s3380 + $0x20] sm:$0xf]
      %v3390 = vld [vmem:[%s3380 + $0x24] sm:$0xf]
      %v3391 = vld [vmem:[%s3380 + $0x28] sm:$0xf]
      %v3392 = vld [vmem:[%s3380 + $0x2c] sm:$0xf]
      %v3393 = vld [vmem:[%s3380 + $0x30] sm:$0xf]
      %v3394 = vld [vmem:[%s3380 + $0x34] sm:$0xf]
      %v3395 = vld [vmem:[%s3380 + $0x38] sm:$0xf]
      %v3396 = vld [vmem:[%s3380 + $0x3c] sm:$0xf]
      %v3397 = vld [vmem:[%s3380 + $0x40] sm:$0xf]
      %v3398 = vld [vmem:[%s3380 + $0x44] sm:$0xf]
      %v3399 = vld [vmem:[%s3380 + $0x48] sm:$0xf]
      %v3400 = vld [vmem:[%s3380 + $0x4c] sm:$0xf]
      %v3401 = vld [vmem:[%s3380 + $0x50] sm:$0xf]
      %v3402 = vld [vmem:[%s3380 + $0x54] sm:$0xf]
      %v3403 = vld [vmem:[%s3380 + $0x58] sm:$0xf]
      %v3404 = vld [vmem:[%s3380 + $0x5c] sm:$0xf]
      %v3405 = vld [vmem:[%s3380 + $0x60] sm:$0xf]
      %v3406 = vld [vmem:[%s3380 + $0x64] sm:$0xf]
      %v3407 = vld [vmem:[%s3380 + $0x68] sm:$0xf]
      %v3408 = vld [vmem:[%s3380 + $0x6c] sm:$0xf]
      %v3409 = vld [vmem:[%s3380 + $0x70] sm:$0xf]
      %v3410 = vld [vmem:[%s3380 + $0x74] sm:$0xf]
      %v3411 = vld [vmem:[%s3380 + $0x78] sm:$0xf]
      %v3412 = vld [vmem:[%s3380 + $0x7c] sm:$0xf]
      %v3413 = vld [vmem:[%s3380 + $0x80] sm:$0xf]
      %v3414 = vld [vmem:[%s3380 + $0x84] sm:$0xf]
      %v3415 = vld [vmem:[%s3380 + $0x88] sm:$0xf]
      %v3416 = vld [vmem:[%s3380 + $0x8c] sm:$0xf]
      %v3417 = vld [vmem:[%s3380 + $0x90] sm:$0xf]
      %v3418 = vld [vmem:[%s3380 + $0x94] sm:$0xf]
      %v3419 = vld [vmem:[%s3380 + $0x98] sm:$0xf]
      %v3420 = vld [vmem:[%s3380 + $0x9c] sm:$0xf]
      %v3421 = vld [vmem:[%s3380 + $0xa0] sm:$0xf]
      %v3422 = vld [vmem:[%s3380 + $0xa4] sm:$0xf]
      %v3423 = vld [vmem:[%s3380 + $0xa8] sm:$0xf]
      %v3424 = vld [vmem:[%s3380 + $0xac] sm:$0xf]
      %v3425 = vld [vmem:[%s3380 + $0xb0] sm:$0xf]
      %v3426 = vld [vmem:[%s3380 + $0xb4] sm:$0xf]
      %v3427 = vld [vmem:[%s3380 + $0xb8] sm:$0xf]
      %v3428 = vld [vmem:[%s3380 + $0xbc] sm:$0xf]
      %v3477 = vunpack.c.l.b16 %v3381
      %v3478 = vunpack.c.l.b16 %v3382
      %v3479 = vunpack.c.l.b16 %v3383
      %v3480 = vunpack.c.l.b16 %v3384
      %v3481 = vunpack.c.l.b16 %v3385
      %v3482 = vunpack.c.l.b16 %v3386
      %v3483 = vunpack.c.l.b16 %v3387
      %v3484 = vunpack.c.l.b16 %v3388
      %v3485 = vunpack.c.l.b16 %v3389
      %v3486 = vunpack.c.l.b16 %v3390
      %v3487 = vunpack.c.l.b16 %v3391
      %v3488 = vunpack.c.l.b16 %v3392
      %v3489 = vunpack.c.l.b16 %v3393
      %v3490 = vunpack.c.l.b16 %v3394
      %v3491 = vunpack.c.l.b16 %v3395
      %v3492 = vunpack.c.l.b16 %v3396
      %v3493 = vunpack.c.l.b16 %v3397
      %v3494 = vunpack.c.l.b16 %v3398
      %v3495 = vunpack.c.l.b16 %v3399
      %v3496 = vunpack.c.l.b16 %v3400
      %v3497 = vunpack.c.l.b16 %v3401
      %v3498 = vunpack.c.l.b16 %v3402
      %v3499 = vunpack.c.l.b16 %v3403
      %v3500 = vunpack.c.l.b16 %v3404
      %v3501 = vunpack.c.l.b16 %v3405
      %v3502 = vunpack.c.l.b16 %v3406
      %v3503 = vunpack.c.l.b16 %v3407
      %v3504 = vunpack.c.l.b16 %v3408
      %v3505 = vunpack.c.l.b16 %v3409
      %v3506 = vunpack.c.l.b16 %v3410
      %v3507 = vunpack.c.l.b16 %v3411
      %v3508 = vunpack.c.l.b16 %v3412
      %v3509 = vunpack.c.l.b16 %v3413
      %v3510 = vunpack.c.l.b16 %v3414
      %v3511 = vunpack.c.l.b16 %v3415
      %v3512 = vunpack.c.l.b16 %v3416
      %v3513 = vunpack.c.l.b16 %v3417
      %v3514 = vunpack.c.l.b16 %v3418
      %v3515 = vunpack.c.l.b16 %v3419
      %v3516 = vunpack.c.l.b16 %v3420
      %v3517 = vunpack.c.l.b16 %v3421
      %v3518 = vunpack.c.l.b16 %v3422
      %v3519 = vunpack.c.l.b16 %v3423
      %v3520 = vunpack.c.l.b16 %v3424
      %v3521 = vunpack.c.l.b16 %v3425
      %v3522 = vunpack.c.l.b16 %v3426
      %v3523 = vunpack.c.l.b16 %v3427
      %v3524 = vunpack.c.l.b16 %v3428
      %v3525 = vpack.c.b16 %v3478, %v3477
      %v3526 = vpack.c.b16 %v3480, %v3479
      %v3527 = vpack.c.b16 %v3482, %v3481
      %v3528 = vpack.c.b16 %v3484, %v3483
      %v3529 = vpack.c.b16 %v3486, %v3485
      %v3530 = vpack.c.b16 %v3488, %v3487
      %v3531 = vpack.c.b16 %v3490, %v3489
      %v3532 = vpack.c.b16 %v3492, %v3491
      %v3533 = vpack.c.b16 %v3494, %v3493
      %v3534 = vpack.c.b16 %v3496, %v3495
      %v3535 = vpack.c.b16 %v3498, %v3497
      %v3536 = vpack.c.b16 %v3500, %v3499
      %v3537 = vpack.c.b16 %v3502, %v3501
      %v3538 = vpack.c.b16 %v3504, %v3503
      %v3539 = vpack.c.b16 %v3506, %v3505
      %v3540 = vpack.c.b16 %v3508, %v3507
      %v3541 = vpack.c.b16 %v3510, %v3509
      %v3542 = vpack.c.b16 %v3512, %v3511
      %v3543 = vpack.c.b16 %v3514, %v3513
      %v3544 = vpack.c.b16 %v3516, %v3515
      %v3545 = vpack.c.b16 %v3518, %v3517
      %v3546 = vpack.c.b16 %v3520, %v3519
      %v3547 = vpack.c.b16 %v3522, %v3521
      %v3548 = vpack.c.b16 %v3524, %v3523
      %3573 = vmatprep.subr.bf16.mxu0 0
      %3574 = vmatpush1.bf16.msra.mxu0 %v3525
      %3575 = vmatprep.subr.bf16.mxu0 0
      %3576 = vmatpush1.bf16.msra.mxu0 %v3526
      %3577 = vmatprep.subr.bf16.mxu0 0
      %3578 = vmatpush1.bf16.msra.mxu0 %v3527
      %3579 = vmatprep.subr.bf16.mxu0 0
      %3580 = vmatpush1.bf16.msra.mxu0 %v3528
      %3581 = vmatprep.subr.bf16.mxu0 0
      %3582 = vmatpush1.bf16.msra.mxu0 %v3529
      %3583 = vmatprep.subr.bf16.mxu0 0
      %3584 = vmatpush1.bf16.msra.mxu0 %v3530
      %3585 = vmatprep.subr.bf16.mxu0 0
      %3586 = vmatpush1.bf16.msra.mxu0 %v3531
      %3587 = vmatprep.subr.bf16.mxu0 0
      %3588 = vmatpush1.bf16.msra.mxu0 %v3532
      %3589 = vmatprep.subr.bf16.mxu0 0
      %3590 = vmatpush1.bf16.msra.mxu0 %v3533
      %3591 = vmatprep.subr.bf16.mxu0 0
      %3592 = vmatpush1.bf16.msra.mxu0 %v3534
      %3593 = vmatprep.subr.bf16.mxu0 0
      %3594 = vmatpush1.bf16.msra.mxu0 %v3535
      %3595 = vmatprep.subr.bf16.mxu0 0
      %3596 = vmatpush1.bf16.msra.mxu0 %v3536
      %3597 = vmatprep.subr.bf16.mxu0 0
      %3598 = vmatpush1.bf16.msra.mxu0 %v3537
      %3599 = vmatprep.subr.bf16.mxu0 0
      %3600 = vmatpush1.bf16.msra.mxu0 %v3538
      %3601 = vmatprep.subr.bf16.mxu0 0
      %3602 = vmatpush1.bf16.msra.mxu0 %v3539
      %3603 = vmatprep.subr.bf16.mxu0 0
      %3604 = vmatpush1.bf16.msra.mxu0 %v3540
      %3605 = vmatprep.mubr.bf16.mxu0 %v3071
      %3606 = vmatmul.mubr.bf16.gmra.mrb[0].mxu0 %v2980
      %v3607 = vpop.f32.mrb[0].mxu0
      %v3608 = vadd.f32 0.0, %v3607
      %v3609 = vpop.f32.mrb[0].mxu0
      %v3610 = vpop.f32.mrb[0].mxu0
      %v3611 = vadd.f32 0.0, %v3610
      %v3612 = vpop.f32.mrb[0].mxu0
      %3613 = vmatprep.mubr.bf16.mxu0 %v3083
      %3614 = vmatmul.mubr.bf16.gmra.mrb[0].mxu0 %v2981
      %v3615 = vpop.f32.mrb[0].mxu0
      %v3616 = vadd.f32 0.0, %v3615
      %v3617 = vpop.f32.mrb[0].mxu0
      %v3618 = vpop.f32.mrb[0].mxu0
      %v3619 = vadd.f32 0.0, %v3618
      %v3620 = vpop.f32.mrb[0].mxu0
      %3621 = vmatprep.mubr.bf16.mxu0 %v3095
      %3622 = vmatmul.mubr.bf16.gmra.mrb[0].mxu0 %v2982
      %v3623 = vpop.f32.mrb[0].mxu0
      %v3624 = vadd.f32 0.0, %v3623
      %v3625 = vpop.f32.mrb[0].mxu0
      %v3626 = vpop.f32.mrb[0].mxu0
      %v3627 = vadd.f32 0.0, %v3626
      %v3628 = vpop.f32.mrb[0].mxu0
      %3629 = vmatprep.mubr.bf16.mxu0 %v3107
      %3630 = vmatmul.mubr.bf16.gmra.mrb[0].mxu0 %v2983
      %v3631 = vpop.f32.mrb[0].mxu0
      %v3632 = vadd.f32 0.0, %v3631
      %v3633 = vpop.f32.mrb[0].mxu0
      %v3634 = vpop.f32.mrb[0].mxu0
      %v3635 = vadd.f32 0.0, %v3634
      %v3636 = vpop.f32.mrb[0].mxu0
      %3637 = vmatprep.mubr.bf16.mxu0 %v3119
      %3638 = vmatmul.mubr.bf16.gmra.mrb[0].mxu0 %v2984
      %v3639 = vpop.f32.mrb[0].mxu0
      %v3640 = vadd.f32 0.0, %v3639
      %v3641 = vpop.f32.mrb[0].mxu0
      %v3642 = vpop.f32.mrb[0].mxu0
      %v3643 = vadd.f32 0.0, %v3642
      %v3644 = vpop.f32.mrb[0].mxu0
      %3645 = vmatprep.mubr.bf16.mxu0 %v3131
      %3646 = vmatmul.mubr.bf16.gmra.mrb[0].mxu0 %v2985
      %v3647 = vpop.f32.mrb[0].mxu0
      %v3648 = vadd.f32 0.0, %v3647
      %v3649 = vpop.f32.mrb[0].mxu0
      %v3650 = vpop.f32.mrb[0].mxu0
      %v3651 = vadd.f32 0.0, %v3650
      %v3652 = vpop.f32.mrb[0].mxu0
      %3653 = vmatprep.mubr.bf16.mxu0 %v3143
      %3654 = vmatmul.mubr.bf16.gmra.mrb[0].mxu0 %v2986
      %v3655 = vpop.f32.mrb[0].mxu0
      %v3656 = vadd.f32 0.0, %v3655
      %v3657 = vpop.f32.mrb[0].mxu0
      %v3658 = vpop.f32.mrb[0].mxu0
      %v3659 = vadd.f32 0.0, %v3658
      %v3660 = vpop.f32.mrb[0].mxu0
      %3661 = vmatprep.mubr.bf16.mxu0 %v3155
      %3662 = vmatmul.mubr.bf16.gmra.mrb[0].mxu0 %v2987
      %v3663 = vpop.f32.mrb[0].mxu0
      %v3664 = vadd.f32 0.0, %v3663
      %v3665 = vpop.f32.mrb[0].mxu0
      %v3666 = vpop.f32.mrb[0].mxu0
      %v3667 = vadd.f32 0.0, %v3666
      %v3668 = vpop.f32.mrb[0].mxu0
      %3669 = vmatprep.mubr.bf16.mxu0 %v3167
      %3670 = vmatmul.mubr.bf16.gmra.mrb[0].mxu0 %v2988
      %v3671 = vpop.f32.mrb[0].mxu0
      %v3672 = vadd.f32 0.0, %v3671
      %v3673 = vpop.f32.mrb[0].mxu0
      %v3674 = vpop.f32.mrb[0].mxu0
      %v3675 = vadd.f32 0.0, %v3674
      %v3676 = vpop.f32.mrb[0].mxu0
      %3677 = vmatprep.mubr.bf16.mxu0 %v3179
      %3678 = vmatmul.mubr.bf16.gmra.mrb[0].mxu0 %v2989
      %v3679 = vpop.f32.mrb[0].mxu0
      %v3680 = vadd.f32 0.0, %v3679
      %v3681 = vpop.f32.mrb[0].mxu0
      %v3682 = vpop.f32.mrb[0].mxu0
      %v3683 = vadd.f32 0.0, %v3682
      %v3684 = vpop.f32.mrb[0].mxu0
      %3685 = vmatprep.mubr.bf16.mxu0 %v3191
      %3686 = vmatmul.mubr.bf16.gmra.mrb[0].mxu0 %v2990
      %v3687 = vpop.f32.mrb[0].mxu0
      %v3688 = vadd.f32 0.0, %v3687
      %v3689 = vpop.f32.mrb[0].mxu0
      %v3690 = vpop.f32.mrb[0].mxu0
      %v3691 = vadd.f32 0.0, %v3690
      %v3692 = vpop.f32.mrb[0].mxu0
      %3693 = vmatprep.mubr.bf16.mxu0 %v3203
      %3694 = vmatmul.mubr.bf16.gmra.mrb[0].mxu0 %v2991
      %v3695 = vpop.f32.mrb[0].mxu0
      %v3696 = vadd.f32 0.0, %v3695
      %v3697 = vpop.f32.mrb[0].mxu0
      %v3698 = vpop.f32.mrb[0].mxu0
      %v3699 = vadd.f32 0.0, %v3698
      %v3700 = vpop.f32.mrb[0].mxu0
      %3701 = vmatprep.mubr.bf16.mxu0 %v3215
      %3702 = vmatmul.mubr.bf16.gmra.mrb[0].mxu0 %v2992
      %v3703 = vpop.f32.mrb[0].mxu0
      %v3704 = vadd.f32 0.0, %v3703
      %v3705 = vpop.f32.mrb[0].mxu0
      %v3706 = vpop.f32.mrb[0].mxu0
      %v3707 = vadd.f32 0.0, %v3706
      %v3708 = vpop.f32.mrb[0].mxu0
      %3709 = vmatprep.mubr.bf16.mxu0 %v3227
      %3710 = vmatmul.mubr.bf16.gmra.mrb[0].mxu0 %v2993
      %v3711 = vpop.f32.mrb[0].mxu0
      %v3712 = vadd.f32 0.0, %v3711
      %v3713 = vpop.f32.mrb[0].mxu0
      %v3714 = vpop.f32.mrb[0].mxu0
      %v3715 = vadd.f32 0.0, %v3714
      %v3716 = vpop.f32.mrb[0].mxu0
      %3717 = vmatprep.mubr.bf16.mxu0 %v3239
      %3718 = vmatmul.mubr.bf16.gmra.mrb[0].mxu0 %v2994
      %v3719 = vpop.f32.mrb[0].mxu0
      %v3720 = vadd.f32 0.0, %v3719
      %v3721 = vpop.f32.mrb[0].mxu0
      %v3722 = vpop.f32.mrb[0].mxu0
      %v3723 = vadd.f32 0.0, %v3722
      %v3724 = vpop.f32.mrb[0].mxu0
      %3725 = vmatprep.mubr.bf16.mxu0 %v3251
      %3726 = vmatmul.mubr.bf16.gmra.mrb[0].mxu0 %v2995
      %v3727 = vpop.f32.mrb[0].mxu0
      %v3728 = vadd.f32 0.0, %v3727
      %v3729 = vpop.f32.mrb[0].mxu0
      %v3730 = vpop.f32.mrb[0].mxu0
      %v3731 = vadd.f32 0.0, %v3730
      %v3732 = vpop.f32.mrb[0].mxu0
      %3733 = vdwg.mxu0
      %3734 = vmatprep.subr.bf16.mxu0 0
      %3735 = vmatpush1.bf16.msra.mxu0 %v3541
      %3736 = vmatprep.subr.bf16.mxu0 0
      %3737 = vmatpush1.bf16.msra.mxu0 %v3542
      %3738 = vmatprep.subr.bf16.mxu0 0
      %3739 = vmatpush1.bf16.msra.mxu0 %v3543
      %3740 = vmatprep.subr.bf16.mxu0 0
      %3741 = vmatpush1.bf16.msra.mxu0 %v3544
      %3742 = vmatprep.subr.bf16.mxu0 0
      %3743 = vmatpush1.bf16.msra.mxu0 %v3545
      %3744 = vmatprep.subr.bf16.mxu0 0
      %3745 = vmatpush1.bf16.msra.mxu0 %v3546
      %3746 = vmatprep.subr.bf16.mxu0 0
      %3747 = vmatpush1.bf16.msra.mxu0 %v3547
      %3748 = vmatprep.subr.bf16.mxu0 0
      %3749 = vmatpush1.bf16.msra.mxu0 %v3548
      %3750 = vmatprep.subr.bf16.mxu0 0
      %3751 = vmatpush1.bf16.msra.mxu0 0
      %3752 = vmatprep.subr.bf16.mxu0 0
      %3753 = vmatpush1.bf16.msra.mxu0 0
      %3754 = vmatprep.subr.bf16.mxu0 0
      %3755 = vmatpush1.bf16.msra.mxu0 0
      %3756 = vmatprep.subr.bf16.mxu0 0
      %3757 = vmatpush1.bf16.msra.mxu0 0
      %3758 = vmatprep.subr.bf16.mxu0 0
      %3759 = vmatpush1.bf16.msra.mxu0 0
      %3760 = vmatprep.subr.bf16.mxu0 0
      %3761 = vmatpush1.bf16.msra.mxu0 0
      %3762 = vmatprep.subr.bf16.mxu0 0
      %3763 = vmatpush1.bf16.msra.mxu0 0
      %3764 = vmatprep.subr.bf16.mxu0 0
      %3765 = vmatpush1.bf16.msra.mxu0 0
      %3766 = vmatprep.mubr.bf16.mxu0 0
      %3767 = vmatmul.mubr.bf16.gmra.mrb[0].mxu0 %v3318
      %v3768 = vpop.f32.mrb[0].mxu0
      %v3769 = vadd.f32 %v3608, %v3768
      %v3770 = vpop.f32.mrb[0].mxu0
      %v3771 = vpop.f32.mrb[0].mxu0
      %v3772 = vadd.f32 %v3611, %v3771
      %v3773 = vpop.f32.mrb[0].mxu0
      %3774 = vmatprep.mubr.bf16.mxu0 0
      %3775 = vmatmul.mubr.bf16.gmra.mrb[0].mxu0 %v3321
      %v3776 = vpop.f32.mrb[0].mxu0
      %v3777 = vadd.f32 %v3616, %v3776
      %v3778 = vpop.f32.mrb[0].mxu0
      %v3779 = vpop.f32.mrb[0].mxu0
      %v3780 = vadd.f32 %v3619, %v3779
      %v3781 = vpop.f32.mrb[0].mxu0
      %3782 = vmatprep.mubr.bf16.mxu0 0
      %3783 = vmatmul.mubr.bf16.gmra.mrb[0].mxu0 %v3324
      %v3784 = vpop.f32.mrb[0].mxu0
      %v3785 = vadd.f32 %v3624, %v3784
      %v3786 = vpop.f32.mrb[0].mxu0
      %v3787 = vpop.f32.mrb[0].mxu0
      %v3788 = vadd.f32 %v3627, %v3787
      %v3789 = vpop.f32.mrb[0].mxu0
      %3790 = vmatprep.mubr.bf16.mxu0 0
      %3791 = vmatmul.mubr.bf16.gmra.mrb[0].mxu0 %v3327
      %v3792 = vpop.f32.mrb[0].mxu0
      %v3793 = vadd.f32 %v3632, %v3792
      %v3794 = vpop.f32.mrb[0].mxu0
      %v3795 = vpop.f32.mrb[0].mxu0
      %v3796 = vadd.f32 %v3635, %v3795
      %v3797 = vpop.f32.mrb[0].mxu0
      %3798 = vmatprep.mubr.bf16.mxu0 0
      %3799 = vmatmul.mubr.bf16.gmra.mrb[0].mxu0 %v3330
      %v3800 = vpop.f32.mrb[0].mxu0
      %v3801 = vadd.f32 %v3640, %v3800
      %v3802 = vpop.f32.mrb[0].mxu0
      %v3803 = vpop.f32.mrb[0].mxu0
      %v3804 = vadd.f32 %v3643, %v3803
      %v3805 = vpop.f32.mrb[0].mxu0
      %3806 = vmatprep.mubr.bf16.mxu0 0
      %3807 = vmatmul.mubr.bf16.gmra.mrb[0].mxu0 %v3333
      %v3808 = vpop.f32.mrb[0].mxu0
      %v3809 = vadd.f32 %v3648, %v3808
      %v3810 = vpop.f32.mrb[0].mxu0
      %v3811 = vpop.f32.mrb[0].mxu0
      %v3812 = vadd.f32 %v3651, %v3811
      %v3813 = vpop.f32.mrb[0].mxu0
      %3814 = vmatprep.mubr.bf16.mxu0 0
      %3815 = vmatmul.mubr.bf16.gmra.mrb[0].mxu0 %v3336
      %v3816 = vpop.f32.mrb[0].mxu0
      %v3817 = vadd.f32 %v3656, %v3816
      %v3818 = vpop.f32.mrb[0].mxu0
      %v3819 = vpop.f32.mrb[0].mxu0
      %v3820 = vadd.f32 %v3659, %v3819
      %v3821 = vpop.f32.mrb[0].mxu0
      %3822 = vmatprep.mubr.bf16.mxu0 0
      %3823 = vmatmul.mubr.bf16.gmra.mrb[0].mxu0 %v3339
      %v3824 = vpop.f32.mrb[0].mxu0
      %v3825 = vadd.f32 %v3664, %v3824
      %v3826 = vpop.f32.mrb[0].mxu0
      %v3827 = vpop.f32.mrb[0].mxu0
      %v3828 = vadd.f32 %v3667, %v3827
      %v3829 = vpop.f32.mrb[0].mxu0
      %3830 = vmatprep.mubr.bf16.mxu0 0
      %3831 = vmatmul.mubr.bf16.gmra.mrb[0].mxu0 %v3342
      %v3832 = vpop.f32.mrb[0].mxu0
      %v3833 = vadd.f32 %v3672, %v3832
      %v3834 = vpop.f32.mrb[0].mxu0
      %v3835 = vpop.f32.mrb[0].mxu0
      %v3836 = vadd.f32 %v3675, %v3835
      %v3837 = vpop.f32.mrb[0].mxu0
      %3838 = vmatprep.mubr.bf16.mxu0 0
      %3839 = vmatmul.mubr.bf16.gmra.mrb[0].mxu0 %v3345
      %v3840 = vpop.f32.mrb[0].mxu0
      %v3841 = vadd.f32 %v3680, %v3840
      %v3842 = vpop.f32.mrb[0].mxu0
      %v3843 = vpop.f32.mrb[0].mxu0
      %v3844 = vadd.f32 %v3683, %v3843
      %v3845 = vpop.f32.mrb[0].mxu0
      %3846 = vmatprep.mubr.bf16.mxu0 0
      %3847 = vmatmul.mubr.bf16.gmra.mrb[0].mxu0 %v3348
      %v3848 = vpop.f32.mrb[0].mxu0
      %v3849 = vadd.f32 %v3688, %v3848
      %v3850 = vpop.f32.mrb[0].mxu0
      %v3851 = vpop.f32.mrb[0].mxu0
      %v3852 = vadd.f32 %v3691, %v3851
      %v3853 = vpop.f32.mrb[0].mxu0
      %3854 = vmatprep.mubr.bf16.mxu0 0
      %3855 = vmatmul.mubr.bf16.gmra.mrb[0].mxu0 %v3351
      %v3856 = vpop.f32.mrb[0].mxu0
      %v3857 = vadd.f32 %v3696, %v3856
      %v3858 = vpop.f32.mrb[0].mxu0
      %v3859 = vpop.f32.mrb[0].mxu0
      %v3860 = vadd.f32 %v3699, %v3859
      %v3861 = vpop.f32.mrb[0].mxu0
      %3862 = vmatprep.mubr.bf16.mxu0 0
      %3863 = vmatmul.mubr.bf16.gmra.mrb[0].mxu0 %v3354
      %v3864 = vpop.f32.mrb[0].mxu0
      %v3865 = vadd.f32 %v3704, %v3864
      %v3866 = vpop.f32.mrb[0].mxu0
      %v3867 = vpop.f32.mrb[0].mxu0
      %v3868 = vadd.f32 %v3707, %v3867
      %v3869 = vpop.f32.mrb[0].mxu0
      %3870 = vmatprep.mubr.bf16.mxu0 0
      %3871 = vmatmul.mubr.bf16.gmra.mrb[0].mxu0 %v3357
      %v3872 = vpop.f32.mrb[0].mxu0
      %v3873 = vadd.f32 %v3712, %v3872
      %v3874 = vpop.f32.mrb[0].mxu0
      %v3875 = vpop.f32.mrb[0].mxu0
      %v3876 = vadd.f32 %v3715, %v3875
      %v3877 = vpop.f32.mrb[0].mxu0
      %3878 = vmatprep.mubr.bf16.mxu0 0
      %3879 = vmatmul.mubr.bf16.gmra.mrb[0].mxu0 %v3360
      %v3880 = vpop.f32.mrb[0].mxu0
      %v3881 = vadd.f32 %v3720, %v3880
      %v3882 = vpop.f32.mrb[0].mxu0
      %v3883 = vpop.f32.mrb[0].mxu0
      %v3884 = vadd.f32 %v3723, %v3883
      %v3885 = vpop.f32.mrb[0].mxu0
      %3886 = vmatprep.mubr.bf16.mxu0 0
      %3887 = vmatmul.mubr.bf16.gmra.mrb[0].mxu0 %v3363
      %v3888 = vpop.f32.mrb[0].mxu0
      %v3889 = vadd.f32 %v3728, %v3888
      %v3890 = vpop.f32.mrb[0].mxu0
      %v3891 = vpop.f32.mrb[0].mxu0
      %v3892 = vadd.f32 %v3731, %v3891
      %v3893 = vpop.f32.mrb[0].mxu0
      %3894 = vdwg.mxu0
      %v3895 = vadd.f32 %v2722, %v3769
      %v3896 = vadd.f32 %v2725, %v3772
      %v3897 = vadd.f32 %v2730, %v3777
      %v3898 = vadd.f32 %v2733, %v3780
      %v3899 = vadd.f32 %v2738, %v3785
      %v3900 = vadd.f32 %v2741, %v3788
      %v3901 = vadd.f32 %v2746, %v3793
      %v3902 = vadd.f32 %v2749, %v3796
      %v3903 = vadd.f32 %v2754, %v3801
      %v3904 = vadd.f32 %v2757, %v3804
      %v3905 = vadd.f32 %v2762, %v3809
      %v3906 = vadd.f32 %v2765, %v3812
      %v3907 = vadd.f32 %v2770, %v3817
      %v3908 = vadd.f32 %v2773, %v3820
      %v3909 = vadd.f32 %v2778, %v3825
      %v3910 = vadd.f32 %v2781, %v3828
      %v3911 = vadd.f32 %v2786, %v3833
      %v3912 = vadd.f32 %v2789, %v3836
      %v3913 = vadd.f32 %v2794, %v3841
      %v3914 = vadd.f32 %v2797, %v3844
      %v3915 = vadd.f32 %v2802, %v3849
      %v3916 = vadd.f32 %v2805, %v3852
      %v3917 = vadd.f32 %v2810, %v3857
      %v3918 = vadd.f32 %v2813, %v3860
      %v3919 = vadd.f32 %v2818, %v3865
      %v3920 = vadd.f32 %v2821, %v3868
      %v3921 = vadd.f32 %v2826, %v3873
      %v3922 = vadd.f32 %v2829, %v3876
      %v3923 = vadd.f32 %v2834, %v3881
      %v3924 = vadd.f32 %v2837, %v3884
      %v3925 = vadd.f32 %v2842, %v3889
      %v3926 = vadd.f32 %v2845, %v3892
      %v3927 = vld [vmem:[%s2] sm:$0x1]
      %v3929 = vlaneseq
      %v3930 = vshrl.u32 %v3929, 7
      %v3931 = vsub.s32 0, %v3930
      %v3932 = vrot.slane %v3927, %v3931
      %v3934 = vmul.f32 %v3895, %v3932
      %v3935 = vmul.f32 %v3896, %v3932
      %v3936 = vmul.f32 %v3897, %v3932
      %v3937 = vmul.f32 %v3898, %v3932
      %v3938 = vmul.f32 %v3899, %v3932
      %v3939 = vmul.f32 %v3900, %v3932
      %v3940 = vmul.f32 %v3901, %v3932
      %v3941 = vmul.f32 %v3902, %v3932
      %v3942 = vmul.f32 %v3903, %v3932
      %v3943 = vmul.f32 %v3904, %v3932
      %v3944 = vmul.f32 %v3905, %v3932
      %v3945 = vmul.f32 %v3906, %v3932
      %v3946 = vmul.f32 %v3907, %v3932
      %v3947 = vmul.f32 %v3908, %v3932
      %v3948 = vmul.f32 %v3909, %v3932
      %v3949 = vmul.f32 %v3910, %v3932
      %v3950 = vmul.f32 %v3911, %v3932
      %v3951 = vmul.f32 %v3912, %v3932
      %v3952 = vmul.f32 %v3913, %v3932
      %v3953 = vmul.f32 %v3914, %v3932
      %v3954 = vmul.f32 %v3915, %v3932
      %v3955 = vmul.f32 %v3916, %v3932
      %v3956 = vmul.f32 %v3917, %v3932
      %v3957 = vmul.f32 %v3918, %v3932
      %v3958 = vmul.f32 %v3919, %v3932
      %v3959 = vmul.f32 %v3920, %v3932
      %v3960 = vmul.f32 %v3921, %v3932
      %v3961 = vmul.f32 %v3922, %v3932
      %v3962 = vmul.f32 %v3923, %v3932
      %v3963 = vmul.f32 %v3924, %v3932
      %v3964 = vmul.f32 %v3925, %v3932
      %v3965 = vmul.f32 %v3926, %v3932
      %v3966 = vld [vmem:[%s3] sm:$0x1]
      %v3968 = vlaneseq
      %v3969 = vshrl.u32 %v3968, 7
      %v3970 = vsub.s32 0, %v3969
      %v3971 = vrot.slane %v3966, %v3970
      %v3973 = vadd.f32 %v3934, %v3971
      %v3974 = vadd.f32 %v3935, %v3971
      %v3975 = vadd.f32 %v3936, %v3971
      %v3976 = vadd.f32 %v3937, %v3971
      %v3977 = vadd.f32 %v3938, %v3971
      %v3978 = vadd.f32 %v3939, %v3971
      %v3979 = vadd.f32 %v3940, %v3971
      %v3980 = vadd.f32 %v3941, %v3971
      %v3981 = vadd.f32 %v3942, %v3971
      %v3982 = vadd.f32 %v3943, %v3971
      %v3983 = vadd.f32 %v3944, %v3971
      %v3984 = vadd.f32 %v3945, %v3971
      %v3985 = vadd.f32 %v3946, %v3971
      %v3986 = vadd.f32 %v3947, %v3971
      %v3987 = vadd.f32 %v3948, %v3971
      %v3988 = vadd.f32 %v3949, %v3971
      %v3989 = vadd.f32 %v3950, %v3971
      %v3990 = vadd.f32 %v3951, %v3971
      %v3991 = vadd.f32 %v3952, %v3971
      %v3992 = vadd.f32 %v3953, %v3971
      %v3993 = vadd.f32 %v3954, %v3971
      %v3994 = vadd.f32 %v3955, %v3971
      %v3995 = vadd.f32 %v3956, %v3971
      %v3996 = vadd.f32 %v3957, %v3971
      %v3997 = vadd.f32 %v3958, %v3971
      %v3998 = vadd.f32 %v3959, %v3971
      %v3999 = vadd.f32 %v3960, %v3971
      %v4000 = vadd.f32 %v3961, %v3971
      %v4001 = vadd.f32 %v3962, %v3971
      %v4002 = vadd.f32 %v3963, %v3971
      %v4003 = vadd.f32 %v3964, %v3971
      %v4004 = vadd.f32 %v3965, %v3971
      %v4005 = vmax.f32 %v3973, 0.0
      %v4006 = vmax.f32 %v3974, 0.0
      %v4007 = vmax.f32 %v3975, 0.0
      %v4008 = vmax.f32 %v3976, 0.0
      %v4009 = vmax.f32 %v3977, 0.0
      %v4010 = vmax.f32 %v3978, 0.0
      %v4011 = vmax.f32 %v3979, 0.0
      %v4012 = vmax.f32 %v3980, 0.0
      %v4013 = vmax.f32 %v3981, 0.0
      %v4014 = vmax.f32 %v3982, 0.0
      %v4015 = vmax.f32 %v3983, 0.0
      %v4016 = vmax.f32 %v3984, 0.0
      %v4017 = vmax.f32 %v3985, 0.0
      %v4018 = vmax.f32 %v3986, 0.0
      %v4019 = vmax.f32 %v3987, 0.0
      %v4020 = vmax.f32 %v3988, 0.0
      %v4021 = vmax.f32 %v3989, 0.0
      %v4022 = vmax.f32 %v3990, 0.0
      %v4023 = vmax.f32 %v3991, 0.0
      %v4024 = vmax.f32 %v3992, 0.0
      %v4025 = vmax.f32 %v3993, 0.0
      %v4026 = vmax.f32 %v3994, 0.0
      %v4027 = vmax.f32 %v3995, 0.0
      %v4028 = vmax.f32 %v3996, 0.0
      %v4029 = vmax.f32 %v3997, 0.0
      %v4030 = vmax.f32 %v3998, 0.0
      %v4031 = vmax.f32 %v3999, 0.0
      %v4032 = vmax.f32 %v4000, 0.0
      %v4033 = vmax.f32 %v4001, 0.0
      %v4034 = vmax.f32 %v4002, 0.0
      %v4035 = vmax.f32 %v4003, 0.0
      %v4036 = vmax.f32 %v4004, 0.0
      %v4037 = vpack.c.bf16 %v4006, %v4005
      %v4038 = vpack.c.bf16 %v4008, %v4007
      %v4039 = vpack.c.bf16 %v4010, %v4009
      %v4040 = vpack.c.bf16 %v4012, %v4011
      %v4041 = vpack.c.bf16 %v4014, %v4013
      %v4042 = vpack.c.bf16 %v4016, %v4015
      %v4043 = vpack.c.bf16 %v4018, %v4017
      %v4044 = vpack.c.bf16 %v4020, %v4019
      %v4045 = vpack.c.bf16 %v4022, %v4021
      %v4046 = vpack.c.bf16 %v4024, %v4023
      %v4047 = vpack.c.bf16 %v4026, %v4025
      %v4048 = vpack.c.bf16 %v4028, %v4027
      %v4049 = vpack.c.bf16 %v4030, %v4029
      %v4050 = vpack.c.bf16 %v4032, %v4031
      %v4051 = vpack.c.bf16 %v4034, %v4033
      %v4052 = vpack.c.bf16 %v4036, %v4035
      %v4069 = vunpack.c.l.b16 %v4037
      %v4070 = vunpack.c.h.b16 %v4037
      %v4071 = vunpack.c.l.b16 %v4038
      %v4072 = vunpack.c.h.b16 %v4038
      %v4073 = vunpack.c.l.b16 %v4039
      %v4074 = vunpack.c.h.b16 %v4039
      %v4075 = vunpack.c.l.b16 %v4040
      %v4076 = vunpack.c.h.b16 %v4040
      %v4077 = vunpack.c.l.b16 %v4041
      %v4078 = vunpack.c.h.b16 %v4041
      %v4079 = vunpack.c.l.b16 %v4042
      %v4080 = vunpack.c.h.b16 %v4042
      %v4081 = vunpack.c.l.b16 %v4043
      %v4082 = vunpack.c.h.b16 %v4043
      %v4083 = vunpack.c.l.b16 %v4044
      %v4084 = vunpack.c.h.b16 %v4044
      %v4085 = vunpack.c.l.b16 %v4045
      %v4086 = vunpack.c.h.b16 %v4045
      %v4087 = vunpack.c.l.b16 %v4046
      %v4088 = vunpack.c.h.b16 %v4046
      %v4089 = vunpack.c.l.b16 %v4047
      %v4090 = vunpack.c.h.b16 %v4047
      %v4091 = vunpack.c.l.b16 %v4048
      %v4092 = vunpack.c.h.b16 %v4048
      %v4093 = vunpack.c.l.b16 %v4049
      %v4094 = vunpack.c.h.b16 %v4049
      %v4095 = vunpack.c.l.b16 %v4050
      %v4096 = vunpack.c.h.b16 %v4050
      %v4097 = vunpack.c.l.b16 %v4051
      %v4098 = vunpack.c.h.b16 %v4051
      %v4099 = vunpack.c.l.b16 %v4052
      %v4100 = vunpack.c.h.b16 %v4052
      %v4101 = vpack.c.b16 %v4069, %v4069
      %v4102 = vpack.c.b16 %v4070, %v4070
      %v4103 = vpack.c.b16 %v4071, %v4071
      %v4104 = vpack.c.b16 %v4072, %v4072
      %v4105 = vpack.c.b16 %v4073, %v4073
      %v4106 = vpack.c.b16 %v4074, %v4074
      %v4107 = vpack.c.b16 %v4075, %v4075
      %v4108 = vpack.c.b16 %v4076, %v4076
      %v4109 = vpack.c.b16 %v4077, %v4077
      %v4110 = vpack.c.b16 %v4078, %v4078
      %v4111 = vpack.c.b16 %v4079, %v4079
      %v4112 = vpack.c.b16 %v4080, %v4080
      %v4113 = vpack.c.b16 %v4081, %v4081
      %v4114 = vpack.c.b16 %v4082, %v4082
      %v4115 = vpack.c.b16 %v4083, %v4083
      %v4116 = vpack.c.b16 %v4084, %v4084
      %v4117 = vpack.c.b16 %v4085, %v4085
      %v4118 = vpack.c.b16 %v4086, %v4086
      %v4119 = vpack.c.b16 %v4087, %v4087
      %v4120 = vpack.c.b16 %v4088, %v4088
      %v4121 = vpack.c.b16 %v4089, %v4089
      %v4122 = vpack.c.b16 %v4090, %v4090
      %v4123 = vpack.c.b16 %v4091, %v4091
      %v4124 = vpack.c.b16 %v4092, %v4092
      %v4125 = vpack.c.b16 %v4093, %v4093
      %v4126 = vpack.c.b16 %v4094, %v4094
      %v4127 = vpack.c.b16 %v4095, %v4095
      %v4128 = vpack.c.b16 %v4096, %v4096
      %v4129 = vpack.c.b16 %v4097, %v4097
      %v4130 = vpack.c.b16 %v4098, %v4098
      %v4131 = vpack.c.b16 %v4099, %v4099
      %v4132 = vpack.c.b16 %v4100, %v4100
      %4165 = vst [vmem:[%s219] sm:$0xf] %v4101
      %4166 = vst [vmem:[%s219 + $0x4] sm:$0xf] %v4102
      %4167 = vst [vmem:[%s219 + $0x8] sm:$0xf] %v4103
      %4168 = vst [vmem:[%s219 + $0xc] sm:$0xf] %v4104
      %4169 = vst [vmem:[%s219 + $0x10] sm:$0xf] %v4105
      %4170 = vst [vmem:[%s219 + $0x14] sm:$0xf] %v4106
      %4171 = vst [vmem:[%s219 + $0x18] sm:$0xf] %v4107
      %4172 = vst [vmem:[%s219 + $0x1c] sm:$0xf] %v4108
      %4173 = vst [vmem:[%s219 + $0x20] sm:$0xf] %v4109
      %4174 = vst [vmem:[%s219 + $0x24] sm:$0xf] %v4110
      %4175 = vst [vmem:[%s219 + $0x28] sm:$0xf] %v4111
      %4176 = vst [vmem:[%s219 + $0x2c] sm:$0xf] %v4112
      %4177 = vst [vmem:[%s219 + $0x30] sm:$0xf] %v4113
      %4178 = vst [vmem:[%s219 + $0x34] sm:$0xf] %v4114
      %4179 = vst [vmem:[%s219 + $0x38] sm:$0xf] %v4115
      %4180 = vst [vmem:[%s219 + $0x3c] sm:$0xf] %v4116
      %4181 = vst [vmem:[%s219 + $0x40] sm:$0xf] %v4117
      %4182 = vst [vmem:[%s219 + $0x44] sm:$0xf] %v4118
      %4183 = vst [vmem:[%s219 + $0x48] sm:$0xf] %v4119
      %4184 = vst [vmem:[%s219 + $0x4c] sm:$0xf] %v4120
      %4185 = vst [vmem:[%s219 + $0x50] sm:$0xf] %v4121
      %4186 = vst [vmem:[%s219 + $0x54] sm:$0xf] %v4122
      %4187 = vst [vmem:[%s219 + $0x58] sm:$0xf] %v4123
      %4188 = vst [vmem:[%s219 + $0x5c] sm:$0xf] %v4124
      %4189 = vst [vmem:[%s219 + $0x60] sm:$0xf] %v4125
      %4190 = vst [vmem:[%s219 + $0x64] sm:$0xf] %v4126
      %4191 = vst [vmem:[%s219 + $0x68] sm:$0xf] %v4127
      %4192 = vst [vmem:[%s219 + $0x6c] sm:$0xf] %v4128
      %4193 = vst [vmem:[%s219 + $0x70] sm:$0xf] %v4129
      %4194 = vst [vmem:[%s219 + $0x74] sm:$0xf] %v4130
      %4195 = vst [vmem:[%s219 + $0x78] sm:$0xf] %v4131
      %4196 = vst [vmem:[%s219 + $0x7c] sm:$0xf] %v4132
      %s4197 = smul.u32 32, %s20
      %p4198 = scmp.lt.s32.totalorder %s19, 1
      %s4199 = scalar_select %p4198, %s19, 1
      %p4200 = scmp.lt.s32.totalorder %s4197, 31
      %s4201 = scalar_select %p4200, %s4197, 31
      %s4202 = smul.addr %s4199, 32
      %s4203 = sadd.s32 %s4201, %s4202
      %s4204 = smul.addr %s4203, 4
      %s4205 = scalar_lea.vmem %s4, %s4204
      // Predicated region
      $region41: #{bottleneck_forward.4} parent=35 // pred_check
        %p4206 = pneg %p136
      $region42: #{bottleneck_forward.4} parent=35 // pred_check_branch
        %4208 = sbr.rel (%p4206) target = $region44
      $region43: #{bottleneck_forward.4} parent=35 // pred_region
        %s4209 = smul.u32 32, %s20
      $region44: #{bottleneck_forward.4} parent=35 // pred_fallthru
        _
    $region36: #{bottleneck_forward.4} parent=5 // pred_fallthru
      _
    %p4210 = scmp.le.s32.totalorder 2, %s10
    // Predicated region
    $region45: #{bottleneck_forward.4} parent=5 // pred_check
      %p4211 = pneg %p4210
    $region46: #{bottleneck_forward.4} parent=5 // pred_check_branch
      %4213 = sbr.rel (%p4211) target = $region48
    $region47: #{bottleneck_forward.4} parent=5 // pred_region
      %s4214 = ssub.s32 %s10, 2
      // Predicated region
      $region49: #{bottleneck_forward.4} parent=47 // pred_check
        %p4215 = pneg %p142
      $region50: #{bottleneck_forward.4} parent=47 // pred_check_branch
        %4217 = sbr.rel (%p4215) target = $region52
      $region51: #{bottleneck_forward.4} parent=47 // pred_region
        %s4218 = smul.u32 32, %s22
        %p4219 = scmp.lt.s32.totalorder %s21, 1
        %s4220 = scalar_select %p4219, %s21, 1
        %p4221 = scmp.lt.s32.totalorder %s4218, 31
        %s4222 = scalar_select %p4221, %s4218, 31
        %s4223 = smul.addr %s4220, 32
        %s4224 = sadd.s32 %s4222, %s4223
        %s4225 = smul.addr %s4224, 4
        %s4226 = scalar_lea.vmem %s4, %s4225
      $region52: #{bottleneck_forward.4} parent=47 // pred_fallthru
        _
    $region48: #{bottleneck_forward.4} parent=5 // pred_fallthru
      _
  $region6: #{bottleneck_forward.4} parent=0 // loop_footer
    %s14 = sadd.s32 1, %s10
  $region7: #{bottleneck_forward.4} parent=0 // loop_footer_branch
    %9 = sbr.rel target = $region3
  $region8: #{bottleneck_forward.4} parent=0 // loop_exit
    _

</llo_original>
